<compile_context>
chip_gen: v6e
topology: v6e:2x2x1
jax: 0.10.0
libtpu: 0.0.40
codegen_flags: <defaults>
</compile_context>

<pallas_src>
import jax
import jax.numpy as jnp
from jax import lax
from jax.experimental import pallas as pl
from jax.experimental.pallas import tpu as pltpu

# ---------------------------------------------------------------------------
# Problem sizes
# ---------------------------------------------------------------------------
N = 2                       # batch
CIN = 4                     # in_channels
COUT = 8                    # out_channels per ASPP branch
H = W = 16                  # spatial
RATES = (1, 2, 3, 4, 6)     # atrous rates (each branch is an _ASPPConv)
NB = len(RATES)
MAXR = max(RATES)

PADW = 8                    # horizontal pad  (>= MAXR, makes WP = 32)
WP = W + 2 * PADW           # padded row width = 32
PADH = 8                    # top / bottom zero rows (>= MAXR)
GAP = 16                    # zero rows between the two batch images (>= MAXR)
OUT_ROWS = 2 * H + GAP      # 48 rows of the tall layout the conv is computed on
OUT_LANES = OUT_ROWS * WP   # 1536 lanes  (12 * 128 -> unmasked stores)
TOT_ROWS = OUT_ROWS + 2 * PADH   # 64
TOT_LANES = TOT_ROWS * WP        # 2048
OUT_BASE = PADH * WP             # 256
K_TAPS = 9 * CIN                 # 36 im2col rows per branch
K_ALL = NB * K_TAPS + 1          # 181 (block-diag branches + bias/ones row)
M_ALL = NB * COUT + 1            # 41  (branch feats + passthrough-ones row)
EPS = 1e-5

# Correctness of the flattened-tap trick depends on these (see review note):
# garbage is produced only in the horizontal-pad columns and in the gap rows,
# both of which are sliced away in the wrapper.
assert PADW >= MAXR and PADH >= MAXR and GAP >= MAXR
assert OUT_BASE - MAXR * (WP + 1) >= 0
assert OUT_BASE + MAXR * (WP + 1) + OUT_LANES <= TOT_LANES


# ---------------------------------------------------------------------------
# Pallas kernel: one invocation, two matmuls, everything lane-dense in VMEM
# ---------------------------------------------------------------------------
def _aspp_kernel(x_ref, wbig_ref, wproj_ref, o_ref):
    # x_ref    : (CIN, TOT_LANES)   flattened tall padded image (both batches)
    # wbig_ref : (M_ALL, K_ALL)     block-diagonal branch weights, BN-scaled,
    #                               last col = BN shifts, last row = ones pass.
    # wproj_ref: (CIN, M_ALL)       BN-scaled 1x1 projection, last col = shift.
    # o_ref    : (CIN, OUT_LANES)   conv over full padded rows (valid window
    #                               sliced outside).
    x = x_ref[...]

    # Block-diagonal im2col: every dilated tap of every branch is ONE
    # contiguous lane slice (covers both batch images at once).
    cache = {}
    rows = []
    for r in RATES:
        for dy in range(3):
            for dx in range(3):
                s = OUT_BASE + (dy - 1) * r * WP + (dx - 1) * r
                if s not in cache:                      # center tap shared
                    cache[s] = x[:, s:s + OUT_LANES]    # (CIN, OUT_LANES)
                rows.append(cache[s])
    rows.append(jnp.ones((1, OUT_LANES), jnp.float32))  # bias / ones row
    patch = jnp.concatenate(rows, axis=0)                # (K_ALL, OUT_LANES)

    # All five branch convs + fused BN (+shift via bias col) in one matmul.
    f = jnp.dot(wbig_ref[...], patch, preferred_element_type=jnp.float32)
    f = jnp.maximum(f, 0.0)          # ReLU; passthrough-ones row stays 1.0

    # 1x1 projection + fused BN (shift rides the passthrough-ones row) + ReLU.
    p = jnp.dot(wproj_ref[...], f, preferred_element_type=jnp.float32)
    # TODO(synk): Dropout(0.5) is identity in eval mode; training-mode dropout
    # would need pltpu.prng_* — intentionally omitted.
    o_ref[...] = jnp.maximum(p, 0.0).astype(o_ref.dtype)


@jax.jit
def aspp_pallas(x_nchw, wbig, wproj):
    """x_nchw: (N, CIN, H, W) f32 -> (N, CIN, H, W) f32 (NCHW end-to-end)."""
    # Pad each image horizontally, then stack both batch images vertically with
    # zero gap rows so dilated taps over BOTH images are single lane slices.
    xw = jnp.pad(x_nchw, ((0, 0), (0, 0), (0, 0), (PADW, PADW)))  # (N,CIN,H,WP)
    z_pad = jnp.zeros((CIN, PADH, WP), jnp.float32)
    z_gap = jnp.zeros((CIN, GAP, WP), jnp.float32)
    tall = jnp.concatenate([z_pad, xw[0], z_gap, xw[1], z_pad], axis=1)
    x_flat = tall.reshape(CIN, TOT_LANES)

    out = pl.pallas_call(
        _aspp_kernel,
        out_shape=jax.ShapeDtypeStruct((CIN, OUT_LANES), jnp.float32),
        grid_spec=pltpu.PrefetchScalarGridSpec(
            num_scalar_prefetch=0,
            grid=(1,),                                   # single invocation
            in_specs=[
                pl.BlockSpec((CIN, TOT_LANES), lambda i: (0, 0)),
                pl.BlockSpec((M_ALL, K_ALL), lambda i: (0, 0)),
                pl.BlockSpec((CIN, M_ALL), lambda i: (0, 0)),
            ],
            out_specs=pl.BlockSpec((CIN, OUT_LANES), lambda i: (0, 0)),
        ),
        compiler_params=pltpu.CompilerParams(
            dimension_semantics=("arbitrary",)),
    )(x_flat, wbig, wproj)

    # Keep only the valid window of each image (gap rows and horizontal pad
    # columns are garbage by design — see static asserts above).
    y = out.reshape(CIN, OUT_ROWS, WP)
    y0 = y[:, :H, PADW:PADW + W]
    y1 = y[:, H + GAP:H + GAP + H, PADW:PADW + W]
    return jnp.stack([y0, y1], axis=0)                   # (N, CIN, H, W)


# ---------------------------------------------------------------------------
# Weight packing: fold BN, build block-diagonal conv weight + bias columns
# ---------------------------------------------------------------------------
def pack_weights(branch_w_oihw, b_scale, b_shift, proj_w_oihw, p_scale, p_shift):
    # branch weights OIHW (NB, COUT, CIN, 3, 3) -> rows=cout, cols=(ky,kx,cin),
    # with the fused-BN scale folded into the rows.
    wrows = jnp.transpose(branch_w_oihw, (0, 1, 3, 4, 2)).reshape(NB, COUT, K_TAPS)
    wrows = wrows * b_scale[:, :, None]
    wbig = jnp.zeros((M_ALL, K_ALL), jnp.float32)
    for bi in range(NB):
        wbig = wbig.at[bi * COUT:(bi + 1) * COUT,
                       bi * K_TAPS:(bi + 1) * K_TAPS].set(wrows[bi])
        wbig = wbig.at[bi * COUT:(bi + 1) * COUT, K_ALL - 1].set(b_shift[bi])
    wbig = wbig.at[M_ALL - 1, K_ALL - 1].set(1.0)        # passthrough-ones row

    wproj = proj_w_oihw[:, :, 0, 0] * p_scale[:, None]              # (CIN, 40)
    wproj = jnp.concatenate([wproj, p_shift[:, None]], axis=1)      # (CIN, 41)
    return wbig, wproj


# ---------------------------------------------------------------------------
# Pure-JAX reference (lax conv) for correctness checking
# ---------------------------------------------------------------------------
def aspp_reference(x, branch_w_oihw, b_scale, b_shift, proj_w_oihw,
                   p_scale, p_shift):
    feats = []
    for bi, r in enumerate(RATES):
        y = lax.conv_general_dilated(
            x, branch_w_oihw[bi],
            window_strides=(1, 1), padding=[(r, r), (r, r)],
            rhs_dilation=(r, r),
            dimension_numbers=("NCHW", "OIHW", "NCHW"))
        y = y * b_scale[bi][None, :, None, None] + b_shift[bi][None, :, None, None]
        feats.append(jnp.maximum(y, 0.0))
    cat = jnp.concatenate(feats, axis=1)
    y = lax.conv_general_dilated(
        cat, proj_w_oihw, window_strides=(1, 1), padding=[(0, 0), (0, 0)],
        dimension_numbers=("NCHW", "OIHW", "NCHW"))
    y = y * p_scale[None, :, None, None] + p_shift[None, :, None, None]
    return jnp.maximum(y, 0.0)


# ---------------------------------------------------------------------------
# Main
# ---------------------------------------------------------------------------
if __name__ == "__main__":
    key = jax.random.PRNGKey(0)
    keys = jax.random.split(key, 12)

    x = jax.random.normal(keys[0], (N, CIN, H, W), jnp.float32)

    # Branch conv weights, PyTorch OIHW layout: (COUT, CIN, 3, 3) per branch.
    branch_w_oihw = 0.1 * jax.random.normal(keys[1], (NB, COUT, CIN, 3, 3),
                                            jnp.float32)
    # BatchNorm (inference) params per branch.
    b_gamma = 1.0 + 0.1 * jax.random.normal(keys[2], (NB, COUT), jnp.float32)
    b_beta = 0.1 * jax.random.normal(keys[3], (NB, COUT), jnp.float32)
    b_mean = 0.1 * jax.random.normal(keys[4], (NB, COUT), jnp.float32)
    b_var = jnp.abs(jax.random.normal(keys[5], (NB, COUT), jnp.float32)) + 0.5

    # Projection 1x1 conv: (CIN, NB*COUT, 1, 1) in OIHW.
    proj_w_oihw = 0.1 * jax.random.normal(keys[6], (CIN, NB * COUT, 1, 1),
                                          jnp.float32)
    p_gamma = 1.0 + 0.1 * jax.random.normal(keys[7], (CIN,), jnp.float32)
    p_beta = 0.1 * jax.random.normal(keys[8], (CIN,), jnp.float32)
    p_mean = 0.1 * jax.random.normal(keys[9], (CIN,), jnp.float32)
    p_var = jnp.abs(jax.random.normal(keys[10], (CIN,), jnp.float32)) + 0.5

    # Fuse BN (inference mode) into scale/shift.
    b_scale = b_gamma / jnp.sqrt(b_var + EPS)          # (NB, COUT)
    b_shift = b_beta - b_mean * b_scale                # (NB, COUT)
    p_scale = p_gamma / jnp.sqrt(p_var + EPS)          # (CIN,)
    p_shift = p_beta - p_mean * p_scale                # (CIN,)

    wbig, wproj = pack_weights(branch_w_oihw, b_scale, b_shift,
                               proj_w_oihw, p_scale, p_shift)

    out = aspp_pallas(x, wbig, wproj)
    out = jax.block_until_ready(out)

    ref = aspp_reference(x, branch_w_oihw, b_scale, b_shift, proj_w_oihw,
                         p_scale, p_shift)
    ref = jax.block_until_ready(ref)

    assert out.shape == (N, CIN, H, W)
    assert jnp.allclose(out, ref, atol=5e-4, rtol=5e-4), (
        float(jnp.max(jnp.abs(out - ref))))

    print("KERNEL_OK")
</pallas_src>

<mosaic_0001>
module attributes {stable_mosaic.version = 11 : i64} {
  func.func @_aspp_kernel(%arg0: i32, %arg1: memref<4x2048xf32, #tpu.memory_space<vmem>>, %arg2: memref<41x181xf32, #tpu.memory_space<vmem>>, %arg3: memref<4x41xf32, #tpu.memory_space<vmem>>, %arg4: memref<4x1536xf32, #tpu.memory_space<vmem>>) attributes {dimension_semantics = [#tpu.dimension_semantics<arbitrary>], iteration_bounds = array<i64: 1>, scalar_prefetch = 0 : i64, scratch_operands = 0 : i64, tpu.core_type = #tpu.core_type<tc>, window_params = [{pipeline_mode = #tpu.pipeline_mode<synchronous>, transform_indices = @transform_0, window_bounds = array<i64: 4, 2048>}, {pipeline_mode = #tpu.pipeline_mode<synchronous>, transform_indices = @transform_1, window_bounds = array<i64: 41, 181>}, {pipeline_mode = #tpu.pipeline_mode<synchronous>, transform_indices = @transform_2, window_bounds = array<i64: 4, 41>}, {pipeline_mode = #tpu.pipeline_mode<synchronous>, transform_indices = @transform_3, window_bounds = array<i64: 4, 1536>}]} {
    %c0 = arith.constant 0 : index
    %c0_0 = arith.constant 0 : index
    %0 = vector.load %arg1[%c0, %c0_0] : memref<4x2048xf32, #tpu.memory_space<vmem>>, vector<4x2048xf32>
    %1 = vector.extract_strided_slice %0 {offsets = [0, 223], sizes = [4, 1536], strides = [1, 1]} : vector<4x2048xf32> to vector<4x1536xf32>
    %2 = vector.extract_strided_slice %0 {offsets = [0, 224], sizes = [4, 1536], strides = [1, 1]} : vector<4x2048xf32> to vector<4x1536xf32>
    %3 = vector.extract_strided_slice %0 {offsets = [0, 225], sizes = [4, 1536], strides = [1, 1]} : vector<4x2048xf32> to vector<4x1536xf32>
    %4 = vector.extract_strided_slice %0 {offsets = [0, 255], sizes = [4, 1536], strides = [1, 1]} : vector<4x2048xf32> to vector<4x1536xf32>
    %5 = vector.extract_strided_slice %0 {offsets = [0, 256], sizes = [4, 1536], strides = [1, 1]} : vector<4x2048xf32> to vector<4x1536xf32>
    %6 = vector.extract_strided_slice %0 {offsets = [0, 257], sizes = [4, 1536], strides = [1, 1]} : vector<4x2048xf32> to vector<4x1536xf32>
    %7 = vector.extract_strided_slice %0 {offsets = [0, 287], sizes = [4, 1536], strides = [1, 1]} : vector<4x2048xf32> to vector<4x1536xf32>
    %8 = vector.extract_strided_slice %0 {offsets = [0, 288], sizes = [4, 1536], strides = [1, 1]} : vector<4x2048xf32> to vector<4x1536xf32>
    %9 = vector.extract_strided_slice %0 {offsets = [0, 289], sizes = [4, 1536], strides = [1, 1]} : vector<4x2048xf32> to vector<4x1536xf32>
    %10 = vector.extract_strided_slice %0 {offsets = [0, 190], sizes = [4, 1536], strides = [1, 1]} : vector<4x2048xf32> to vector<4x1536xf32>
    %11 = vector.extract_strided_slice %0 {offsets = [0, 192], sizes = [4, 1536], strides = [1, 1]} : vector<4x2048xf32> to vector<4x1536xf32>
    %12 = vector.extract_strided_slice %0 {offsets = [0, 194], sizes = [4, 1536], strides = [1, 1]} : vector<4x2048xf32> to vector<4x1536xf32>
    %13 = vector.extract_strided_slice %0 {offsets = [0, 254], sizes = [4, 1536], strides = [1, 1]} : vector<4x2048xf32> to vector<4x1536xf32>
    %14 = vector.extract_strided_slice %0 {offsets = [0, 258], sizes = [4, 1536], strides = [1, 1]} : vector<4x2048xf32> to vector<4x1536xf32>
    %15 = vector.extract_strided_slice %0 {offsets = [0, 318], sizes = [4, 1536], strides = [1, 1]} : vector<4x2048xf32> to vector<4x1536xf32>
    %16 = vector.extract_strided_slice %0 {offsets = [0, 320], sizes = [4, 1536], strides = [1, 1]} : vector<4x2048xf32> to vector<4x1536xf32>
    %17 = vector.extract_strided_slice %0 {offsets = [0, 322], sizes = [4, 1536], strides = [1, 1]} : vector<4x2048xf32> to vector<4x1536xf32>
    %18 = vector.extract_strided_slice %0 {offsets = [0, 157], sizes = [4, 1536], strides = [1, 1]} : vector<4x2048xf32> to vector<4x1536xf32>
    %19 = vector.extract_strided_slice %0 {offsets = [0, 160], sizes = [4, 1536], strides = [1, 1]} : vector<4x2048xf32> to vector<4x1536xf32>
    %20 = vector.extract_strided_slice %0 {offsets = [0, 163], sizes = [4, 1536], strides = [1, 1]} : vector<4x2048xf32> to vector<4x1536xf32>
    %21 = vector.extract_strided_slice %0 {offsets = [0, 253], sizes = [4, 1536], strides = [1, 1]} : vector<4x2048xf32> to vector<4x1536xf32>
    %22 = vector.extract_strided_slice %0 {offsets = [0, 259], sizes = [4, 1536], strides = [1, 1]} : vector<4x2048xf32> to vector<4x1536xf32>
    %23 = vector.extract_strided_slice %0 {offsets = [0, 349], sizes = [4, 1536], strides = [1, 1]} : vector<4x2048xf32> to vector<4x1536xf32>
    %24 = vector.extract_strided_slice %0 {offsets = [0, 352], sizes = [4, 1536], strides = [1, 1]} : vector<4x2048xf32> to vector<4x1536xf32>
    %25 = vector.extract_strided_slice %0 {offsets = [0, 355], sizes = [4, 1536], strides = [1, 1]} : vector<4x2048xf32> to vector<4x1536xf32>
    %26 = vector.extract_strided_slice %0 {offsets = [0, 124], sizes = [4, 1536], strides = [1, 1]} : vector<4x2048xf32> to vector<4x1536xf32>
    %27 = vector.extract_strided_slice %0 {offsets = [0, 128], sizes = [4, 1536], strides = [1, 1]} : vector<4x2048xf32> to vector<4x1536xf32>
    %28 = vector.extract_strided_slice %0 {offsets = [0, 132], sizes = [4, 1536], strides = [1, 1]} : vector<4x2048xf32> to vector<4x1536xf32>
    %29 = vector.extract_strided_slice %0 {offsets = [0, 252], sizes = [4, 1536], strides = [1, 1]} : vector<4x2048xf32> to vector<4x1536xf32>
    %30 = vector.extract_strided_slice %0 {offsets = [0, 260], sizes = [4, 1536], strides = [1, 1]} : vector<4x2048xf32> to vector<4x1536xf32>
    %31 = vector.extract_strided_slice %0 {offsets = [0, 380], sizes = [4, 1536], strides = [1, 1]} : vector<4x2048xf32> to vector<4x1536xf32>
    %32 = vector.extract_strided_slice %0 {offsets = [0, 384], sizes = [4, 1536], strides = [1, 1]} : vector<4x2048xf32> to vector<4x1536xf32>
    %33 = vector.extract_strided_slice %0 {offsets = [0, 388], sizes = [4, 1536], strides = [1, 1]} : vector<4x2048xf32> to vector<4x1536xf32>
    %34 = vector.extract_strided_slice %0 {offsets = [0, 58], sizes = [4, 1536], strides = [1, 1]} : vector<4x2048xf32> to vector<4x1536xf32>
    %35 = vector.extract_strided_slice %0 {offsets = [0, 64], sizes = [4, 1536], strides = [1, 1]} : vector<4x2048xf32> to vector<4x1536xf32>
    %36 = vector.extract_strided_slice %0 {offsets = [0, 70], sizes = [4, 1536], strides = [1, 1]} : vector<4x2048xf32> to vector<4x1536xf32>
    %37 = vector.extract_strided_slice %0 {offsets = [0, 250], sizes = [4, 1536], strides = [1, 1]} : vector<4x2048xf32> to vector<4x1536xf32>
    %38 = vector.extract_strided_slice %0 {offsets = [0, 262], sizes = [4, 1536], strides = [1, 1]} : vector<4x2048xf32> to vector<4x1536xf32>
    %39 = vector.extract_strided_slice %0 {offsets = [0, 442], sizes = [4, 1536], strides = [1, 1]} : vector<4x2048xf32> to vector<4x1536xf32>
    %40 = vector.extract_strided_slice %0 {offsets = [0, 448], sizes = [4, 1536], strides = [1, 1]} : vector<4x2048xf32> to vector<4x1536xf32>
    %41 = vector.extract_strided_slice %0 {offsets = [0, 454], sizes = [4, 1536], strides = [1, 1]} : vector<4x2048xf32> to vector<4x1536xf32>
    %cst = arith.constant 1.000000e+00 : f32
    %42 = vector.broadcast %cst : f32 to vector<1x1536xf32>
    %43 = tpu.concatenate %1, %2, %3, %4, %5, %6, %7, %8, %9, %10, %11, %12, %13, %5, %14, %15 in 0 : vector<4x1536xf32>, vector<4x1536xf32>, vector<4x1536xf32>, vector<4x1536xf32>, vector<4x1536xf32>, vector<4x1536xf32>, vector<4x1536xf32>, vector<4x1536xf32>, vector<4x1536xf32>, vector<4x1536xf32>, vector<4x1536xf32>, vector<4x1536xf32>, vector<4x1536xf32>, vector<4x1536xf32>, vector<4x1536xf32>, vector<4x1536xf32> -> vector<64x1536xf32>
    %44 = tpu.concatenate %16, %17, %18, %19, %20, %21, %5, %22, %23, %24, %25, %26, %27, %28, %29, %5 in 0 : vector<4x1536xf32>, vector<4x1536xf32>, vector<4x1536xf32>, vector<4x1536xf32>, vector<4x1536xf32>, vector<4x1536xf32>, vector<4x1536xf32>, vector<4x1536xf32>, vector<4x1536xf32>, vector<4x1536xf32>, vector<4x1536xf32>, vector<4x1536xf32>, vector<4x1536xf32>, vector<4x1536xf32>, vector<4x1536xf32>, vector<4x1536xf32> -> vector<64x1536xf32>
    %45 = tpu.concatenate %30, %31, %32, %33, %34, %35, %36, %37, %5, %38, %39, %40, %41, %42 in 0 : vector<4x1536xf32>, vector<4x1536xf32>, vector<4x1536xf32>, vector<4x1536xf32>, vector<4x1536xf32>, vector<4x1536xf32>, vector<4x1536xf32>, vector<4x1536xf32>, vector<4x1536xf32>, vector<4x1536xf32>, vector<4x1536xf32>, vector<4x1536xf32>, vector<4x1536xf32>, vector<1x1536xf32> -> vector<53x1536xf32>
    %46 = tpu.concatenate %43, %44, %45 in 0 : vector<64x1536xf32>, vector<64x1536xf32>, vector<53x1536xf32> -> vector<181x1536xf32>
    %c0_1 = arith.constant 0 : index
    %c0_2 = arith.constant 0 : index
    %47 = vector.load %arg2[%c0_1, %c0_2] : memref<41x181xf32, #tpu.memory_space<vmem>>, vector<41x181xf32>
    %cst_3 = arith.constant dense<0.000000e+00> : vector<41x1536xf32>
    %48 = tpu.matmul %47, %46, %cst_3 {dimension_numbers = #tpu.dot_dimension_numbers<[1], [0], [0], [1], [0, 0, 1, 1], [], []>} : vector<41x181xf32>, vector<181x1536xf32>, vector<41x1536xf32> -> vector<41x1536xf32>
    %cst_4 = arith.constant 0.000000e+00 : f32
    %49 = vector.broadcast %cst_4 : f32 to vector<41x1536xf32>
    %50 = arith.maximumf %48, %49 : vector<41x1536xf32>
    %c0_5 = arith.constant 0 : index
    %c0_6 = arith.constant 0 : index
    %51 = vector.load %arg3[%c0_5, %c0_6] : memref<4x41xf32, #tpu.memory_space<vmem>>, vector<4x41xf32>
    %cst_7 = arith.constant dense<0.000000e+00> : vector<4x1536xf32>
    %52 = tpu.matmul %51, %50, %cst_7 {dimension_numbers = #tpu.dot_dimension_numbers<[1], [0], [0], [1], [0, 0, 1, 1], [], []>} : vector<4x41xf32>, vector<41x1536xf32>, vector<4x1536xf32> -> vector<4x1536xf32>
    %cst_8 = arith.constant 0.000000e+00 : f32
    %53 = vector.broadcast %cst_8 : f32 to vector<4x1536xf32>
    %54 = arith.maximumf %52, %53 : vector<4x1536xf32>
    %c0_9 = arith.constant 0 : index
    %c0_10 = arith.constant 0 : index
    %55 = vector.load %arg4[%c0_9, %c0_10] : memref<4x1536xf32, #tpu.memory_space<vmem>>, vector<4x1536xf32>
    tpu.vector_store %arg4[%c0_9, %c0_10], %54 {strides = array<i32>} : memref<4x1536xf32, #tpu.memory_space<vmem>>, vector<4x1536xf32>,
    return
  }
  func.func @transform_0(%arg0: i32) -> (i32, i32) {
    %c0_i32 = arith.constant 0 : i32
    %c0_i32_0 = arith.constant 0 : i32
    %c0_i32_1 = arith.constant 0 : i32
    return %c0_i32, %c0_i32_0 : i32, i32
  }
  func.func @transform_1(%arg0: i32) -> (i32, i32) {
    %c0_i32 = arith.constant 0 : i32
    %c0_i32_0 = arith.constant 0 : i32
    %c0_i32_1 = arith.constant 0 : i32
    return %c0_i32, %c0_i32_0 : i32, i32
  }
  func.func @transform_2(%arg0: i32) -> (i32, i32) {
    %c0_i32 = arith.constant 0 : i32
    %c0_i32_0 = arith.constant 0 : i32
    %c0_i32_1 = arith.constant 0 : i32
    return %c0_i32, %c0_i32_0 : i32, i32
  }
  func.func @transform_3(%arg0: i32) -> (i32, i32) {
    %c0_i32 = arith.constant 0 : i32
    %c0_i32_0 = arith.constant 0 : i32
    %c0_i32_1 = arith.constant 0 : i32
    return %c0_i32, %c0_i32_0 : i32, i32
  }
}

</mosaic_0001>

<llo_original>
// kernel: aspp_pallas.1
$region0: #{aspp_pallas.1}
  #allocation0 [shape = 'u32[]', space=smem, size = 0x4, offset = 0x4, fixed_abs, tag = 'smem constant byte address 0x4 - core index']
  #allocation1 [shape = 'u32[144,128]{1,0:T(1,128)}', space=vmem, size = 0x12000, scoped, tag = 'internal scratch']
  %s0 = inlined_call_operand.vmem [shape: f32[4,2048], index: 0, kind: input, shape index: {}]
  %s1 = inlined_call_operand.vmem [shape: f32[41,181], index: 1, kind: input, shape index: {}]
  %s2 = inlined_call_operand.vmem [shape: f32[4,41], index: 2, kind: input, shape index: {}]
  %s3 = inlined_call_operand.vmem [shape: f32[4,1536], index: 3, kind: output, shape index: {}]
  %s4 = sld [smem:[#allocation0]]
  $region22: #{aspp_pallas.1} parent=0
    _
  %s6 = ssub.s32 1, %s4
  %s7 = scalar_select 0, %s6, %s4
  // Predicated region
  $region2: #{aspp_pallas.1} parent=0 // pred_check
    _
  $region3: #{aspp_pallas.1} parent=0 // pred_check_branch
    %9 = sbr.rel (0) target = $region5
  $region4: #{aspp_pallas.1} parent=0 // pred_region
    _
  $region5: #{aspp_pallas.1} parent=0 // pred_fallthru
    _
  // Predicated region
  $region6: #{aspp_pallas.1} parent=0 // pred_check
    _
  $region7: #{aspp_pallas.1} parent=0 // pred_check_branch
    %11 = sbr.rel (0) target = $region9
  $region8: #{aspp_pallas.1} parent=0 // pred_region
    _
  $region9: #{aspp_pallas.1} parent=0 // pred_fallthru
    _
  // Predicated region
  $region10: #{aspp_pallas.1} parent=0 // pred_check
    _
  $region11: #{aspp_pallas.1} parent=0 // pred_check_branch
    %13 = sbr.rel (0) target = $region13
  $region12: #{aspp_pallas.1} parent=0 // pred_region
    _
  $region13: #{aspp_pallas.1} parent=0 // pred_fallthru
    _
  %v14 = vld [vmem:[%s0] sm:$0xff]
  %v15 = vld [vmem:[%s0 + $0x8] sm:$0xff]
  %v16 = vld [vmem:[%s0 + $0x10] sm:$0xff]
  %v17 = vld [vmem:[%s0 + $0x18] sm:$0xff]
  %v18 = vld [vmem:[%s0 + $0x20] sm:$0xff]
  %v19 = vld [vmem:[%s0 + $0x28] sm:$0xff]
  %v20 = vld [vmem:[%s0 + $0x30] sm:$0xff]
  %v21 = vld [vmem:[%s0 + $0x38] sm:$0xff]
  %v29 = vcombine.high %v14, %v14
  %v30 = vcombine.high %v15, %v15
  %v31 = vcombine.high %v16, %v16
  %v32 = vcombine.high %v17, %v17
  %v33 = vcombine.high %v18, %v18
  %v34 = vcombine.high %v19, %v19
  %v35 = vcombine.high %v20, %v20
  %36 = vrot.lane.b32.xlu0 %v29, 33
  %v37 = vpop.permute.xlu0 %36
  %38 = vrot.lane.b32.xlu0 %v15, 33
  %v39 = vpop.permute.xlu0 %38
  %40 = vrot.lane.b32.xlu0 %v30, 33
  %v41 = vpop.permute.xlu0 %40
  %42 = vrot.lane.b32.xlu0 %v16, 33
  %v43 = vpop.permute.xlu0 %42
  %44 = vrot.lane.b32.xlu0 %v31, 33
  %v45 = vpop.permute.xlu0 %44
  %46 = vrot.lane.b32.xlu0 %v17, 33
  %v47 = vpop.permute.xlu0 %46
  %48 = vrot.lane.b32.xlu0 %v32, 33
  %v49 = vpop.permute.xlu0 %48
  %50 = vrot.lane.b32.xlu0 %v18, 33
  %v51 = vpop.permute.xlu0 %50
  %52 = vrot.lane.b32.xlu0 %v33, 33
  %v53 = vpop.permute.xlu0 %52
  %54 = vrot.lane.b32.xlu0 %v19, 33
  %v55 = vpop.permute.xlu0 %54
  %56 = vrot.lane.b32.xlu0 %v34, 33
  %v57 = vpop.permute.xlu0 %56
  %58 = vrot.lane.b32.xlu0 %v20, 33
  %v59 = vpop.permute.xlu0 %58
  %60 = vrot.lane.b32.xlu0 %v35, 33
  %v61 = vpop.permute.xlu0 %60
  %vm62 = vcmask 269312
  %v63 = vsel %vm62, %v37, %v39
  %v64 = vsel %vm62, %v39, %v41
  %v65 = vsel %vm62, %v41, %v43
  %v66 = vsel %vm62, %v43, %v45
  %v67 = vsel %vm62, %v45, %v47
  %v68 = vsel %vm62, %v47, %v49
  %v69 = vsel %vm62, %v49, %v51
  %v70 = vsel %vm62, %v51, %v53
  %v71 = vsel %vm62, %v53, %v55
  %v72 = vsel %vm62, %v55, %v57
  %v73 = vsel %vm62, %v57, %v59
  %v74 = vsel %vm62, %v59, %v61
  %v87 = vcombine.low %v15, %v15
  %v88 = vcombine.low %v16, %v16
  %v89 = vcombine.low %v17, %v17
  %v90 = vcombine.low %v18, %v18
  %v91 = vcombine.low %v19, %v19
  %v92 = vcombine.low %v20, %v20
  %93 = vrot.lane.b32.xlu0 %v14, 32
  %v94 = vpop.permute.xlu0 %93
  %95 = vrot.lane.b32.xlu0 %v87, 32
  %v96 = vpop.permute.xlu0 %95
  %97 = vrot.lane.b32.xlu0 %v15, 32
  %v98 = vpop.permute.xlu0 %97
  %99 = vrot.lane.b32.xlu0 %v88, 32
  %v100 = vpop.permute.xlu0 %99
  %101 = vrot.lane.b32.xlu0 %v16, 32
  %v102 = vpop.permute.xlu0 %101
  %103 = vrot.lane.b32.xlu0 %v89, 32
  %v104 = vpop.permute.xlu0 %103
  %105 = vrot.lane.b32.xlu0 %v17, 32
  %v106 = vpop.permute.xlu0 %105
  %107 = vrot.lane.b32.xlu0 %v90, 32
  %v108 = vpop.permute.xlu0 %107
  %109 = vrot.lane.b32.xlu0 %v18, 32
  %v110 = vpop.permute.xlu0 %109
  %111 = vrot.lane.b32.xlu0 %v91, 32
  %v112 = vpop.permute.xlu0 %111
  %113 = vrot.lane.b32.xlu0 %v19, 32
  %v114 = vpop.permute.xlu0 %113
  %115 = vrot.lane.b32.xlu0 %v92, 32
  %v116 = vpop.permute.xlu0 %115
  %117 = vrot.lane.b32.xlu0 %v20, 32
  %v118 = vpop.permute.xlu0 %117
  %vm119 = vcmask 261120
  %v120 = vsel %vm119, %v94, %v96
  %v121 = vsel %vm119, %v96, %v98
  %v122 = vsel %vm119, %v98, %v100
  %v123 = vsel %vm119, %v100, %v102
  %v124 = vsel %vm119, %v102, %v104
  %v125 = vsel %vm119, %v104, %v106
  %v126 = vsel %vm119, %v106, %v108
  %v127 = vsel %vm119, %v108, %v110
  %v128 = vsel %vm119, %v110, %v112
  %v129 = vsel %vm119, %v112, %v114
  %v130 = vsel %vm119, %v114, %v116
  %v131 = vsel %vm119, %v116, %v118
  %144 = vrot.lane.b32.xlu0 %v29, 31
  %v145 = vpop.permute.xlu0 %144
  %146 = vrot.lane.b32.xlu0 %v15, 31
  %v147 = vpop.permute.xlu0 %146
  %148 = vrot.lane.b32.xlu0 %v30, 31
  %v149 = vpop.permute.xlu0 %148
  %150 = vrot.lane.b32.xlu0 %v16, 31
  %v151 = vpop.permute.xlu0 %150
  %152 = vrot.lane.b32.xlu0 %v31, 31
  %v153 = vpop.permute.xlu0 %152
  %154 = vrot.lane.b32.xlu0 %v17, 31
  %v155 = vpop.permute.xlu0 %154
  %156 = vrot.lane.b32.xlu0 %v32, 31
  %v157 = vpop.permute.xlu0 %156
  %158 = vrot.lane.b32.xlu0 %v18, 31
  %v159 = vpop.permute.xlu0 %158
  %160 = vrot.lane.b32.xlu0 %v33, 31
  %v161 = vpop.permute.xlu0 %160
  %162 = vrot.lane.b32.xlu0 %v19, 31
  %v163 = vpop.permute.xlu0 %162
  %164 = vrot.lane.b32.xlu0 %v34, 31
  %v165 = vpop.permute.xlu0 %164
  %166 = vrot.lane.b32.xlu0 %v20, 31
  %v167 = vpop.permute.xlu0 %166
  %168 = vrot.lane.b32.xlu0 %v35, 31
  %v169 = vpop.permute.xlu0 %168
  %vm170 = vcmask 252928
  %v171 = vsel %vm170, %v145, %v147
  %v172 = vsel %vm170, %v147, %v149
  %v173 = vsel %vm170, %v149, %v151
  %v174 = vsel %vm170, %v151, %v153
  %v175 = vsel %vm170, %v153, %v155
  %v176 = vsel %vm170, %v155, %v157
  %v177 = vsel %vm170, %v157, %v159
  %v178 = vsel %vm170, %v159, %v161
  %v179 = vsel %vm170, %v161, %v163
  %v180 = vsel %vm170, %v163, %v165
  %v181 = vsel %vm170, %v165, %v167
  %v182 = vsel %vm170, %v167, %v169
  %195 = vrot.lane.b32.xlu0 %v14, 1
  %v196 = vpop.permute.xlu0 %195
  %197 = vrot.lane.b32.xlu0 %v87, 1
  %v198 = vpop.permute.xlu0 %197
  %199 = vrot.lane.b32.xlu0 %v15, 1
  %v200 = vpop.permute.xlu0 %199
  %201 = vrot.lane.b32.xlu0 %v88, 1
  %v202 = vpop.permute.xlu0 %201
  %203 = vrot.lane.b32.xlu0 %v16, 1
  %v204 = vpop.permute.xlu0 %203
  %205 = vrot.lane.b32.xlu0 %v89, 1
  %v206 = vpop.permute.xlu0 %205
  %207 = vrot.lane.b32.xlu0 %v17, 1
  %v208 = vpop.permute.xlu0 %207
  %209 = vrot.lane.b32.xlu0 %v90, 1
  %v210 = vpop.permute.xlu0 %209
  %211 = vrot.lane.b32.xlu0 %v18, 1
  %v212 = vpop.permute.xlu0 %211
  %213 = vrot.lane.b32.xlu0 %v91, 1
  %v214 = vpop.permute.xlu0 %213
  %215 = vrot.lane.b32.xlu0 %v19, 1
  %v216 = vpop.permute.xlu0 %215
  %217 = vrot.lane.b32.xlu0 %v92, 1
  %v218 = vpop.permute.xlu0 %217
  %219 = vrot.lane.b32.xlu0 %v20, 1
  %v220 = vpop.permute.xlu0 %219
  %vm221 = vcmask 7168
  %v222 = vsel %vm221, %v196, %v198
  %v223 = vsel %vm221, %v198, %v200
  %v224 = vsel %vm221, %v200, %v202
  %v225 = vsel %vm221, %v202, %v204
  %v226 = vsel %vm221, %v204, %v206
  %v227 = vsel %vm221, %v206, %v208
  %v228 = vsel %vm221, %v208, %v210
  %v229 = vsel %vm221, %v210, %v212
  %v230 = vsel %vm221, %v212, %v214
  %v231 = vsel %vm221, %v214, %v216
  %v232 = vsel %vm221, %v216, %v218
  %v233 = vsel %vm221, %v218, %v220
  %v253 = vcombine.low %v21, %v21
  %254 = vrot.lane.b32.xlu0 %v87, 127
  %v255 = vpop.permute.xlu0 %254
  %256 = vrot.lane.b32.xlu0 %v15, 127
  %v257 = vpop.permute.xlu0 %256
  %258 = vrot.lane.b32.xlu0 %v88, 127
  %v259 = vpop.permute.xlu0 %258
  %260 = vrot.lane.b32.xlu0 %v16, 127
  %v261 = vpop.permute.xlu0 %260
  %262 = vrot.lane.b32.xlu0 %v89, 127
  %v263 = vpop.permute.xlu0 %262
  %264 = vrot.lane.b32.xlu0 %v17, 127
  %v265 = vpop.permute.xlu0 %264
  %266 = vrot.lane.b32.xlu0 %v90, 127
  %v267 = vpop.permute.xlu0 %266
  %268 = vrot.lane.b32.xlu0 %v18, 127
  %v269 = vpop.permute.xlu0 %268
  %270 = vrot.lane.b32.xlu0 %v91, 127
  %v271 = vpop.permute.xlu0 %270
  %272 = vrot.lane.b32.xlu0 %v19, 127
  %v273 = vpop.permute.xlu0 %272
  %274 = vrot.lane.b32.xlu0 %v92, 127
  %v275 = vpop.permute.xlu0 %274
  %276 = vrot.lane.b32.xlu0 %v20, 127
  %v277 = vpop.permute.xlu0 %276
  %278 = vrot.lane.b32.xlu0 %v253, 127
  %v279 = vpop.permute.xlu0 %278
  %vm280 = vcmask 1039360
  %v281 = vsel %vm280, %v255, %v257
  %v282 = vsel %vm280, %v257, %v259
  %v283 = vsel %vm280, %v259, %v261
  %v284 = vsel %vm280, %v261, %v263
  %v285 = vsel %vm280, %v263, %v265
  %v286 = vsel %vm280, %v265, %v267
  %v287 = vsel %vm280, %v267, %v269
  %v288 = vsel %vm280, %v269, %v271
  %v289 = vsel %vm280, %v271, %v273
  %v290 = vsel %vm280, %v273, %v275
  %v291 = vsel %vm280, %v275, %v277
  %v292 = vsel %vm280, %v277, %v279
  %305 = vrot.lane.b32.xlu0 %v15, 97
  %v306 = vpop.permute.xlu0 %305
  %307 = vrot.lane.b32.xlu0 %v30, 97
  %v308 = vpop.permute.xlu0 %307
  %309 = vrot.lane.b32.xlu0 %v16, 97
  %v310 = vpop.permute.xlu0 %309
  %311 = vrot.lane.b32.xlu0 %v31, 97
  %v312 = vpop.permute.xlu0 %311
  %313 = vrot.lane.b32.xlu0 %v17, 97
  %v314 = vpop.permute.xlu0 %313
  %315 = vrot.lane.b32.xlu0 %v32, 97
  %v316 = vpop.permute.xlu0 %315
  %317 = vrot.lane.b32.xlu0 %v18, 97
  %v318 = vpop.permute.xlu0 %317
  %319 = vrot.lane.b32.xlu0 %v33, 97
  %v320 = vpop.permute.xlu0 %319
  %321 = vrot.lane.b32.xlu0 %v19, 97
  %v322 = vpop.permute.xlu0 %321
  %323 = vrot.lane.b32.xlu0 %v34, 97
  %v324 = vpop.permute.xlu0 %323
  %325 = vrot.lane.b32.xlu0 %v20, 97
  %v326 = vpop.permute.xlu0 %325
  %327 = vrot.lane.b32.xlu0 %v35, 97
  %v328 = vpop.permute.xlu0 %327
  %329 = vrot.lane.b32.xlu0 %v21, 97
  %v330 = vpop.permute.xlu0 %329
  %vm331 = vcmask 793600
  %v332 = vsel %vm331, %v306, %v308
  %v333 = vsel %vm331, %v308, %v310
  %v334 = vsel %vm331, %v310, %v312
  %v335 = vsel %vm331, %v312, %v314
  %v336 = vsel %vm331, %v314, %v316
  %v337 = vsel %vm331, %v316, %v318
  %v338 = vsel %vm331, %v318, %v320
  %v339 = vsel %vm331, %v320, %v322
  %v340 = vsel %vm331, %v322, %v324
  %v341 = vsel %vm331, %v324, %v326
  %v342 = vsel %vm331, %v326, %v328
  %v343 = vsel %vm331, %v328, %v330
  %356 = vrot.lane.b32.xlu0 %v87, 96
  %v357 = vpop.permute.xlu0 %356
  %358 = vrot.lane.b32.xlu0 %v15, 96
  %v359 = vpop.permute.xlu0 %358
  %360 = vrot.lane.b32.xlu0 %v88, 96
  %v361 = vpop.permute.xlu0 %360
  %362 = vrot.lane.b32.xlu0 %v16, 96
  %v363 = vpop.permute.xlu0 %362
  %364 = vrot.lane.b32.xlu0 %v89, 96
  %v365 = vpop.permute.xlu0 %364
  %366 = vrot.lane.b32.xlu0 %v17, 96
  %v367 = vpop.permute.xlu0 %366
  %368 = vrot.lane.b32.xlu0 %v90, 96
  %v369 = vpop.permute.xlu0 %368
  %370 = vrot.lane.b32.xlu0 %v18, 96
  %v371 = vpop.permute.xlu0 %370
  %372 = vrot.lane.b32.xlu0 %v91, 96
  %v373 = vpop.permute.xlu0 %372
  %374 = vrot.lane.b32.xlu0 %v19, 96
  %v375 = vpop.permute.xlu0 %374
  %376 = vrot.lane.b32.xlu0 %v92, 96
  %v377 = vpop.permute.xlu0 %376
  %378 = vrot.lane.b32.xlu0 %v20, 96
  %v379 = vpop.permute.xlu0 %378
  %380 = vrot.lane.b32.xlu0 %v253, 96
  %v381 = vpop.permute.xlu0 %380
  %vm382 = vcmask 785408
  %v383 = vsel %vm382, %v357, %v359
  %v384 = vsel %vm382, %v359, %v361
  %v385 = vsel %vm382, %v361, %v363
  %v386 = vsel %vm382, %v363, %v365
  %v387 = vsel %vm382, %v365, %v367
  %v388 = vsel %vm382, %v367, %v369
  %v389 = vsel %vm382, %v369, %v371
  %v390 = vsel %vm382, %v371, %v373
  %v391 = vsel %vm382, %v373, %v375
  %v392 = vsel %vm382, %v375, %v377
  %v393 = vsel %vm382, %v377, %v379
  %v394 = vsel %vm382, %v379, %v381
  %407 = vrot.lane.b32.xlu0 %v15, 95
  %v408 = vpop.permute.xlu0 %407
  %409 = vrot.lane.b32.xlu0 %v30, 95
  %v410 = vpop.permute.xlu0 %409
  %411 = vrot.lane.b32.xlu0 %v16, 95
  %v412 = vpop.permute.xlu0 %411
  %413 = vrot.lane.b32.xlu0 %v31, 95
  %v414 = vpop.permute.xlu0 %413
  %415 = vrot.lane.b32.xlu0 %v17, 95
  %v416 = vpop.permute.xlu0 %415
  %417 = vrot.lane.b32.xlu0 %v32, 95
  %v418 = vpop.permute.xlu0 %417
  %419 = vrot.lane.b32.xlu0 %v18, 95
  %v420 = vpop.permute.xlu0 %419
  %421 = vrot.lane.b32.xlu0 %v33, 95
  %v422 = vpop.permute.xlu0 %421
  %423 = vrot.lane.b32.xlu0 %v19, 95
  %v424 = vpop.permute.xlu0 %423
  %425 = vrot.lane.b32.xlu0 %v34, 95
  %v426 = vpop.permute.xlu0 %425
  %427 = vrot.lane.b32.xlu0 %v20, 95
  %v428 = vpop.permute.xlu0 %427
  %429 = vrot.lane.b32.xlu0 %v35, 95
  %v430 = vpop.permute.xlu0 %429
  %431 = vrot.lane.b32.xlu0 %v21, 95
  %v432 = vpop.permute.xlu0 %431
  %vm433 = vcmask 777216
  %v434 = vsel %vm433, %v408, %v410
  %v435 = vsel %vm433, %v410, %v412
  %v436 = vsel %vm433, %v412, %v414
  %v437 = vsel %vm433, %v414, %v416
  %v438 = vsel %vm433, %v416, %v418
  %v439 = vsel %vm433, %v418, %v420
  %v440 = vsel %vm433, %v420, %v422
  %v441 = vsel %vm433, %v422, %v424
  %v442 = vsel %vm433, %v424, %v426
  %v443 = vsel %vm433, %v426, %v428
  %v444 = vsel %vm433, %v428, %v430
  %v445 = vsel %vm433, %v430, %v432
  %458 = vrot.lane.b32.xlu0 %v14, 66
  %v459 = vpop.permute.xlu0 %458
  %460 = vrot.lane.b32.xlu0 %v87, 66
  %v461 = vpop.permute.xlu0 %460
  %462 = vrot.lane.b32.xlu0 %v15, 66
  %v463 = vpop.permute.xlu0 %462
  %464 = vrot.lane.b32.xlu0 %v88, 66
  %v465 = vpop.permute.xlu0 %464
  %466 = vrot.lane.b32.xlu0 %v16, 66
  %v467 = vpop.permute.xlu0 %466
  %468 = vrot.lane.b32.xlu0 %v89, 66
  %v469 = vpop.permute.xlu0 %468
  %470 = vrot.lane.b32.xlu0 %v17, 66
  %v471 = vpop.permute.xlu0 %470
  %472 = vrot.lane.b32.xlu0 %v90, 66
  %v473 = vpop.permute.xlu0 %472
  %474 = vrot.lane.b32.xlu0 %v18, 66
  %v475 = vpop.permute.xlu0 %474
  %476 = vrot.lane.b32.xlu0 %v91, 66
  %v477 = vpop.permute.xlu0 %476
  %478 = vrot.lane.b32.xlu0 %v19, 66
  %v479 = vpop.permute.xlu0 %478
  %480 = vrot.lane.b32.xlu0 %v92, 66
  %v481 = vpop.permute.xlu0 %480
  %482 = vrot.lane.b32.xlu0 %v20, 66
  %v483 = vpop.permute.xlu0 %482
  %vm484 = vcmask 539648
  %v485 = vsel %vm484, %v459, %v461
  %v486 = vsel %vm484, %v461, %v463
  %v487 = vsel %vm484, %v463, %v465
  %v488 = vsel %vm484, %v465, %v467
  %v489 = vsel %vm484, %v467, %v469
  %v490 = vsel %vm484, %v469, %v471
  %v491 = vsel %vm484, %v471, %v473
  %v492 = vsel %vm484, %v473, %v475
  %v493 = vsel %vm484, %v475, %v477
  %v494 = vsel %vm484, %v477, %v479
  %v495 = vsel %vm484, %v479, %v481
  %v496 = vsel %vm484, %v481, %v483
  %509 = vrot.lane.b32.xlu0 %v29, 64
  %v510 = vpop.permute.xlu0 %509
  %511 = vrot.lane.b32.xlu0 %v15, 64
  %v512 = vpop.permute.xlu0 %511
  %513 = vrot.lane.b32.xlu0 %v30, 64
  %v514 = vpop.permute.xlu0 %513
  %515 = vrot.lane.b32.xlu0 %v16, 64
  %v516 = vpop.permute.xlu0 %515
  %517 = vrot.lane.b32.xlu0 %v31, 64
  %v518 = vpop.permute.xlu0 %517
  %519 = vrot.lane.b32.xlu0 %v17, 64
  %v520 = vpop.permute.xlu0 %519
  %521 = vrot.lane.b32.xlu0 %v32, 64
  %v522 = vpop.permute.xlu0 %521
  %523 = vrot.lane.b32.xlu0 %v18, 64
  %v524 = vpop.permute.xlu0 %523
  %525 = vrot.lane.b32.xlu0 %v33, 64
  %v526 = vpop.permute.xlu0 %525
  %527 = vrot.lane.b32.xlu0 %v19, 64
  %v528 = vpop.permute.xlu0 %527
  %529 = vrot.lane.b32.xlu0 %v34, 64
  %v530 = vpop.permute.xlu0 %529
  %531 = vrot.lane.b32.xlu0 %v20, 64
  %v532 = vpop.permute.xlu0 %531
  %533 = vrot.lane.b32.xlu0 %v35, 64
  %v534 = vpop.permute.xlu0 %533
  %vm535 = vcmask 523264
  %v536 = vsel %vm535, %v510, %v512
  %v537 = vsel %vm535, %v512, %v514
  %v538 = vsel %vm535, %v514, %v516
  %v539 = vsel %vm535, %v516, %v518
  %v540 = vsel %vm535, %v518, %v520
  %v541 = vsel %vm535, %v520, %v522
  %v542 = vsel %vm535, %v522, %v524
  %v543 = vsel %vm535, %v524, %v526
  %v544 = vsel %vm535, %v526, %v528
  %v545 = vsel %vm535, %v528, %v530
  %v546 = vsel %vm535, %v530, %v532
  %v547 = vsel %vm535, %v532, %v534
  %560 = vrot.lane.b32.xlu0 %v14, 62
  %v561 = vpop.permute.xlu0 %560
  %562 = vrot.lane.b32.xlu0 %v87, 62
  %v563 = vpop.permute.xlu0 %562
  %564 = vrot.lane.b32.xlu0 %v15, 62
  %v565 = vpop.permute.xlu0 %564
  %566 = vrot.lane.b32.xlu0 %v88, 62
  %v567 = vpop.permute.xlu0 %566
  %568 = vrot.lane.b32.xlu0 %v16, 62
  %v569 = vpop.permute.xlu0 %568
  %570 = vrot.lane.b32.xlu0 %v89, 62
  %v571 = vpop.permute.xlu0 %570
  %572 = vrot.lane.b32.xlu0 %v17, 62
  %v573 = vpop.permute.xlu0 %572
  %574 = vrot.lane.b32.xlu0 %v90, 62
  %v575 = vpop.permute.xlu0 %574
  %576 = vrot.lane.b32.xlu0 %v18, 62
  %v577 = vpop.permute.xlu0 %576
  %578 = vrot.lane.b32.xlu0 %v91, 62
  %v579 = vpop.permute.xlu0 %578
  %580 = vrot.lane.b32.xlu0 %v19, 62
  %v581 = vpop.permute.xlu0 %580
  %582 = vrot.lane.b32.xlu0 %v92, 62
  %v583 = vpop.permute.xlu0 %582
  %584 = vrot.lane.b32.xlu0 %v20, 62
  %v585 = vpop.permute.xlu0 %584
  %vm586 = vcmask 506880
  %v587 = vsel %vm586, %v561, %v563
  %v588 = vsel %vm586, %v563, %v565
  %v589 = vsel %vm586, %v565, %v567
  %v590 = vsel %vm586, %v567, %v569
  %v591 = vsel %vm586, %v569, %v571
  %v592 = vsel %vm586, %v571, %v573
  %v593 = vsel %vm586, %v573, %v575
  %v594 = vsel %vm586, %v575, %v577
  %v595 = vsel %vm586, %v577, %v579
  %v596 = vsel %vm586, %v579, %v581
  %v597 = vsel %vm586, %v581, %v583
  %v598 = vsel %vm586, %v583, %v585
  %611 = vrot.lane.b32.xlu0 %v29, 2
  %v612 = vpop.permute.xlu0 %611
  %613 = vrot.lane.b32.xlu0 %v15, 2
  %v614 = vpop.permute.xlu0 %613
  %615 = vrot.lane.b32.xlu0 %v30, 2
  %v616 = vpop.permute.xlu0 %615
  %617 = vrot.lane.b32.xlu0 %v16, 2
  %v618 = vpop.permute.xlu0 %617
  %619 = vrot.lane.b32.xlu0 %v31, 2
  %v620 = vpop.permute.xlu0 %619
  %621 = vrot.lane.b32.xlu0 %v17, 2
  %v622 = vpop.permute.xlu0 %621
  %623 = vrot.lane.b32.xlu0 %v32, 2
  %v624 = vpop.permute.xlu0 %623
  %625 = vrot.lane.b32.xlu0 %v18, 2
  %v626 = vpop.permute.xlu0 %625
  %627 = vrot.lane.b32.xlu0 %v33, 2
  %v628 = vpop.permute.xlu0 %627
  %629 = vrot.lane.b32.xlu0 %v19, 2
  %v630 = vpop.permute.xlu0 %629
  %631 = vrot.lane.b32.xlu0 %v34, 2
  %v632 = vpop.permute.xlu0 %631
  %633 = vrot.lane.b32.xlu0 %v20, 2
  %v634 = vpop.permute.xlu0 %633
  %635 = vrot.lane.b32.xlu0 %v35, 2
  %v636 = vpop.permute.xlu0 %635
  %vm637 = vcmask 15360
  %v638 = vsel %vm637, %v612, %v614
  %v639 = vsel %vm637, %v614, %v616
  %v640 = vsel %vm637, %v616, %v618
  %v641 = vsel %vm637, %v618, %v620
  %v642 = vsel %vm637, %v620, %v622
  %v643 = vsel %vm637, %v622, %v624
  %v644 = vsel %vm637, %v624, %v626
  %v645 = vsel %vm637, %v626, %v628
  %v646 = vsel %vm637, %v628, %v630
  %v647 = vsel %vm637, %v630, %v632
  %v648 = vsel %vm637, %v632, %v634
  %v649 = vsel %vm637, %v634, %v636
  %668 = vrot.lane.b32.xlu0 %v15, 126
  %v669 = vpop.permute.xlu0 %668
  %670 = vrot.lane.b32.xlu0 %v30, 126
  %v671 = vpop.permute.xlu0 %670
  %672 = vrot.lane.b32.xlu0 %v16, 126
  %v673 = vpop.permute.xlu0 %672
  %674 = vrot.lane.b32.xlu0 %v31, 126
  %v675 = vpop.permute.xlu0 %674
  %676 = vrot.lane.b32.xlu0 %v17, 126
  %v677 = vpop.permute.xlu0 %676
  %678 = vrot.lane.b32.xlu0 %v32, 126
  %v679 = vpop.permute.xlu0 %678
  %680 = vrot.lane.b32.xlu0 %v18, 126
  %v681 = vpop.permute.xlu0 %680
  %682 = vrot.lane.b32.xlu0 %v33, 126
  %v683 = vpop.permute.xlu0 %682
  %684 = vrot.lane.b32.xlu0 %v19, 126
  %v685 = vpop.permute.xlu0 %684
  %686 = vrot.lane.b32.xlu0 %v34, 126
  %v687 = vpop.permute.xlu0 %686
  %688 = vrot.lane.b32.xlu0 %v20, 126
  %v689 = vpop.permute.xlu0 %688
  %690 = vrot.lane.b32.xlu0 %v35, 126
  %v691 = vpop.permute.xlu0 %690
  %692 = vrot.lane.b32.xlu0 %v21, 126
  %v693 = vpop.permute.xlu0 %692
  %vm694 = vcmask 1031168
  %v695 = vsel %vm694, %v669, %v671
  %v696 = vsel %vm694, %v671, %v673
  %v697 = vsel %vm694, %v673, %v675
  %v698 = vsel %vm694, %v675, %v677
  %v699 = vsel %vm694, %v677, %v679
  %v700 = vsel %vm694, %v679, %v681
  %v701 = vsel %vm694, %v681, %v683
  %v702 = vsel %vm694, %v683, %v685
  %v703 = vsel %vm694, %v685, %v687
  %v704 = vsel %vm694, %v687, %v689
  %v705 = vsel %vm694, %v689, %v691
  %v706 = vsel %vm694, %v691, %v693
  %719 = vrot.lane.b32.xlu0 %v253, 66
  %v720 = vpop.permute.xlu0 %719
  %v721 = vsel %vm484, %v483, %v720
  %vm723 = vcmask 1043456
  %v724 = vsel %vm723, %v63, %v120
  %v725 = vsel %vm723, %v64, %v121
  %v726 = vsel %vm723, %v65, %v122
  %v727 = vsel %vm723, %v66, %v123
  %v728 = vsel %vm723, %v67, %v124
  %v729 = vsel %vm723, %v68, %v125
  %v730 = vsel %vm723, %v69, %v126
  %v731 = vsel %vm723, %v70, %v127
  %v732 = vsel %vm723, %v71, %v128
  %v733 = vsel %vm723, %v72, %v129
  %v734 = vsel %vm723, %v73, %v130
  %v735 = vsel %vm723, %v74, %v131
  %v736 = vsel %vm723, %v171, %v222
  %v737 = vsel %vm723, %v172, %v223
  %v738 = vsel %vm723, %v173, %v224
  %v739 = vsel %vm723, %v174, %v225
  %v740 = vsel %vm723, %v175, %v226
  %v741 = vsel %vm723, %v176, %v227
  %v742 = vsel %vm723, %v177, %v228
  %v743 = vsel %vm723, %v178, %v229
  %v744 = vsel %vm723, %v179, %v230
  %v745 = vsel %vm723, %v180, %v231
  %v746 = vsel %vm723, %v181, %v232
  %v747 = vsel %vm723, %v182, %v233
  %v748 = vsel %vm723, %v15, %v281
  %v749 = vsel %vm723, %v30, %v282
  %v750 = vsel %vm723, %v16, %v283
  %v751 = vsel %vm723, %v31, %v284
  %v752 = vsel %vm723, %v17, %v285
  %v753 = vsel %vm723, %v32, %v286
  %v754 = vsel %vm723, %v18, %v287
  %v755 = vsel %vm723, %v33, %v288
  %v756 = vsel %vm723, %v19, %v289
  %v757 = vsel %vm723, %v34, %v290
  %v758 = vsel %vm723, %v20, %v291
  %v759 = vsel %vm723, %v35, %v292
  %v760 = vsel %vm723, %v332, %v383
  %v761 = vsel %vm723, %v333, %v384
  %v762 = vsel %vm723, %v334, %v385
  %v763 = vsel %vm723, %v335, %v386
  %v764 = vsel %vm723, %v336, %v387
  %v765 = vsel %vm723, %v337, %v388
  %v766 = vsel %vm723, %v338, %v389
  %v767 = vsel %vm723, %v339, %v390
  %v768 = vsel %vm723, %v340, %v391
  %v769 = vsel %vm723, %v341, %v392
  %v770 = vsel %vm723, %v342, %v393
  %v771 = vsel %vm723, %v343, %v394
  %v772 = vsel %vm723, %v434, %v485
  %v773 = vsel %vm723, %v435, %v486
  %v774 = vsel %vm723, %v436, %v487
  %v775 = vsel %vm723, %v437, %v488
  %v776 = vsel %vm723, %v438, %v489
  %v777 = vsel %vm723, %v439, %v490
  %v778 = vsel %vm723, %v440, %v491
  %v779 = vsel %vm723, %v441, %v492
  %v780 = vsel %vm723, %v442, %v493
  %v781 = vsel %vm723, %v443, %v494
  %v782 = vsel %vm723, %v444, %v495
  %v783 = vsel %vm723, %v445, %v496
  %v784 = vsel %vm723, %v536, %v587
  %v785 = vsel %vm723, %v537, %v588
  %v786 = vsel %vm723, %v538, %v589
  %v787 = vsel %vm723, %v539, %v590
  %v788 = vsel %vm723, %v540, %v591
  %v789 = vsel %vm723, %v541, %v592
  %v790 = vsel %vm723, %v542, %v593
  %v791 = vsel %vm723, %v543, %v594
  %v792 = vsel %vm723, %v544, %v595
  %v793 = vsel %vm723, %v545, %v596
  %v794 = vsel %vm723, %v546, %v597
  %v795 = vsel %vm723, %v547, %v598
  %v796 = vsel %vm723, %v638, %v87
  %v797 = vsel %vm723, %v639, %v15
  %v798 = vsel %vm723, %v640, %v88
  %v799 = vsel %vm723, %v641, %v16
  %v800 = vsel %vm723, %v642, %v89
  %v801 = vsel %vm723, %v643, %v17
  %v802 = vsel %vm723, %v644, %v90
  %v803 = vsel %vm723, %v645, %v18
  %v804 = vsel %vm723, %v646, %v91
  %v805 = vsel %vm723, %v647, %v19
  %v806 = vsel %vm723, %v648, %v92
  %v807 = vsel %vm723, %v649, %v20
  %v808 = vsel %vm723, %v695, %v486
  %v809 = vsel %vm723, %v696, %v487
  %v810 = vsel %vm723, %v697, %v488
  %v811 = vsel %vm723, %v698, %v489
  %v812 = vsel %vm723, %v699, %v490
  %v813 = vsel %vm723, %v700, %v491
  %v814 = vsel %vm723, %v701, %v492
  %v815 = vsel %vm723, %v702, %v493
  %v816 = vsel %vm723, %v703, %v494
  %v817 = vsel %vm723, %v704, %v495
  %v818 = vsel %vm723, %v705, %v496
  %v819 = vsel %vm723, %v706, %v721
  %820 = vrot.lane.b32.xlu0 %v87, 126
  %v821 = vpop.permute.xlu0 %820
  %822 = vrot.lane.b32.xlu0 %v88, 126
  %v823 = vpop.permute.xlu0 %822
  %824 = vrot.lane.b32.xlu0 %v89, 126
  %v825 = vpop.permute.xlu0 %824
  %826 = vrot.lane.b32.xlu0 %v90, 126
  %v827 = vpop.permute.xlu0 %826
  %828 = vrot.lane.b32.xlu0 %v91, 126
  %v829 = vpop.permute.xlu0 %828
  %830 = vrot.lane.b32.xlu0 %v92, 126
  %v831 = vpop.permute.xlu0 %830
  %832 = vrot.lane.b32.xlu0 %v253, 126
  %v833 = vpop.permute.xlu0 %832
  %v834 = vsel %vm694, %v821, %v669
  %v835 = vsel %vm694, %v669, %v823
  %v836 = vsel %vm694, %v823, %v673
  %v837 = vsel %vm694, %v673, %v825
  %v838 = vsel %vm694, %v825, %v677
  %v839 = vsel %vm694, %v677, %v827
  %v840 = vsel %vm694, %v827, %v681
  %v841 = vsel %vm694, %v681, %v829
  %v842 = vsel %vm694, %v829, %v685
  %v843 = vsel %vm694, %v685, %v831
  %v844 = vsel %vm694, %v831, %v689
  %v845 = vsel %vm694, %v689, %v833
  %859 = vrot.lane.b32.xlu0 %v29, 35
  %v860 = vpop.permute.xlu0 %859
  %861 = vrot.lane.b32.xlu0 %v15, 35
  %v862 = vpop.permute.xlu0 %861
  %863 = vrot.lane.b32.xlu0 %v30, 35
  %v864 = vpop.permute.xlu0 %863
  %865 = vrot.lane.b32.xlu0 %v16, 35
  %v866 = vpop.permute.xlu0 %865
  %867 = vrot.lane.b32.xlu0 %v31, 35
  %v868 = vpop.permute.xlu0 %867
  %869 = vrot.lane.b32.xlu0 %v17, 35
  %v870 = vpop.permute.xlu0 %869
  %871 = vrot.lane.b32.xlu0 %v32, 35
  %v872 = vpop.permute.xlu0 %871
  %873 = vrot.lane.b32.xlu0 %v18, 35
  %v874 = vpop.permute.xlu0 %873
  %875 = vrot.lane.b32.xlu0 %v33, 35
  %v876 = vpop.permute.xlu0 %875
  %877 = vrot.lane.b32.xlu0 %v19, 35
  %v878 = vpop.permute.xlu0 %877
  %879 = vrot.lane.b32.xlu0 %v34, 35
  %v880 = vpop.permute.xlu0 %879
  %881 = vrot.lane.b32.xlu0 %v20, 35
  %v882 = vpop.permute.xlu0 %881
  %883 = vrot.lane.b32.xlu0 %v35, 35
  %v884 = vpop.permute.xlu0 %883
  %vm885 = vcmask 285696
  %v886 = vsel %vm885, %v860, %v862
  %v887 = vsel %vm885, %v862, %v864
  %v888 = vsel %vm885, %v864, %v866
  %v889 = vsel %vm885, %v866, %v868
  %v890 = vsel %vm885, %v868, %v870
  %v891 = vsel %vm885, %v870, %v872
  %v892 = vsel %vm885, %v872, %v874
  %v893 = vsel %vm885, %v874, %v876
  %v894 = vsel %vm885, %v876, %v878
  %v895 = vsel %vm885, %v878, %v880
  %v896 = vsel %vm885, %v880, %v882
  %v897 = vsel %vm885, %v882, %v884
  %912 = vrot.lane.b32.xlu0 %v29, 29
  %v913 = vpop.permute.xlu0 %912
  %914 = vrot.lane.b32.xlu0 %v15, 29
  %v915 = vpop.permute.xlu0 %914
  %916 = vrot.lane.b32.xlu0 %v30, 29
  %v917 = vpop.permute.xlu0 %916
  %918 = vrot.lane.b32.xlu0 %v16, 29
  %v919 = vpop.permute.xlu0 %918
  %920 = vrot.lane.b32.xlu0 %v31, 29
  %v921 = vpop.permute.xlu0 %920
  %922 = vrot.lane.b32.xlu0 %v17, 29
  %v923 = vpop.permute.xlu0 %922
  %924 = vrot.lane.b32.xlu0 %v32, 29
  %v925 = vpop.permute.xlu0 %924
  %926 = vrot.lane.b32.xlu0 %v18, 29
  %v927 = vpop.permute.xlu0 %926
  %928 = vrot.lane.b32.xlu0 %v33, 29
  %v929 = vpop.permute.xlu0 %928
  %930 = vrot.lane.b32.xlu0 %v19, 29
  %v931 = vpop.permute.xlu0 %930
  %932 = vrot.lane.b32.xlu0 %v34, 29
  %v933 = vpop.permute.xlu0 %932
  %934 = vrot.lane.b32.xlu0 %v20, 29
  %v935 = vpop.permute.xlu0 %934
  %936 = vrot.lane.b32.xlu0 %v35, 29
  %v937 = vpop.permute.xlu0 %936
  %vm938 = vcmask 236544
  %v939 = vsel %vm938, %v913, %v915
  %v940 = vsel %vm938, %v915, %v917
  %v941 = vsel %vm938, %v917, %v919
  %v942 = vsel %vm938, %v919, %v921
  %v943 = vsel %vm938, %v921, %v923
  %v944 = vsel %vm938, %v923, %v925
  %v945 = vsel %vm938, %v925, %v927
  %v946 = vsel %vm938, %v927, %v929
  %v947 = vsel %vm938, %v929, %v931
  %v948 = vsel %vm938, %v931, %v933
  %v949 = vsel %vm938, %v933, %v935
  %v950 = vsel %vm938, %v935, %v937
  %964 = vrot.lane.b32.xlu0 %v14, 67
  %v965 = vpop.permute.xlu0 %964
  %966 = vrot.lane.b32.xlu0 %v87, 67
  %v967 = vpop.permute.xlu0 %966
  %968 = vrot.lane.b32.xlu0 %v15, 67
  %v969 = vpop.permute.xlu0 %968
  %970 = vrot.lane.b32.xlu0 %v88, 67
  %v971 = vpop.permute.xlu0 %970
  %972 = vrot.lane.b32.xlu0 %v16, 67
  %v973 = vpop.permute.xlu0 %972
  %974 = vrot.lane.b32.xlu0 %v89, 67
  %v975 = vpop.permute.xlu0 %974
  %976 = vrot.lane.b32.xlu0 %v17, 67
  %v977 = vpop.permute.xlu0 %976
  %978 = vrot.lane.b32.xlu0 %v90, 67
  %v979 = vpop.permute.xlu0 %978
  %980 = vrot.lane.b32.xlu0 %v18, 67
  %v981 = vpop.permute.xlu0 %980
  %982 = vrot.lane.b32.xlu0 %v91, 67
  %v983 = vpop.permute.xlu0 %982
  %984 = vrot.lane.b32.xlu0 %v19, 67
  %v985 = vpop.permute.xlu0 %984
  %986 = vrot.lane.b32.xlu0 %v92, 67
  %v987 = vpop.permute.xlu0 %986
  %988 = vrot.lane.b32.xlu0 %v20, 67
  %v989 = vpop.permute.xlu0 %988
  %vm990 = vcmask 547840
  %v991 = vsel %vm990, %v965, %v967
  %v992 = vsel %vm990, %v967, %v969
  %v993 = vsel %vm990, %v969, %v971
  %v994 = vsel %vm990, %v971, %v973
  %v995 = vsel %vm990, %v973, %v975
  %v996 = vsel %vm990, %v975, %v977
  %v997 = vsel %vm990, %v977, %v979
  %v998 = vsel %vm990, %v979, %v981
  %v999 = vsel %vm990, %v981, %v983
  %v1000 = vsel %vm990, %v983, %v985
  %v1001 = vsel %vm990, %v985, %v987
  %v1002 = vsel %vm990, %v987, %v989
  %1018 = vrot.lane.b32.xlu0 %v87, 61
  %v1019 = vpop.permute.xlu0 %1018
  %1020 = vrot.lane.b32.xlu0 %v15, 61
  %v1021 = vpop.permute.xlu0 %1020
  %1022 = vrot.lane.b32.xlu0 %v88, 61
  %v1023 = vpop.permute.xlu0 %1022
  %1024 = vrot.lane.b32.xlu0 %v16, 61
  %v1025 = vpop.permute.xlu0 %1024
  %1026 = vrot.lane.b32.xlu0 %v89, 61
  %v1027 = vpop.permute.xlu0 %1026
  %1028 = vrot.lane.b32.xlu0 %v17, 61
  %v1029 = vpop.permute.xlu0 %1028
  %1030 = vrot.lane.b32.xlu0 %v90, 61
  %v1031 = vpop.permute.xlu0 %1030
  %1032 = vrot.lane.b32.xlu0 %v18, 61
  %v1033 = vpop.permute.xlu0 %1032
  %1034 = vrot.lane.b32.xlu0 %v91, 61
  %v1035 = vpop.permute.xlu0 %1034
  %1036 = vrot.lane.b32.xlu0 %v19, 61
  %v1037 = vpop.permute.xlu0 %1036
  %1038 = vrot.lane.b32.xlu0 %v92, 61
  %v1039 = vpop.permute.xlu0 %1038
  %1040 = vrot.lane.b32.xlu0 %v20, 61
  %v1041 = vpop.permute.xlu0 %1040
  %1042 = vrot.lane.b32.xlu0 %v253, 61
  %v1043 = vpop.permute.xlu0 %1042
  %vm1044 = vcmask 498688
  %v1045 = vsel %vm1044, %v1019, %v1021
  %v1046 = vsel %vm1044, %v1021, %v1023
  %v1047 = vsel %vm1044, %v1023, %v1025
  %v1048 = vsel %vm1044, %v1025, %v1027
  %v1049 = vsel %vm1044, %v1027, %v1029
  %v1050 = vsel %vm1044, %v1029, %v1031
  %v1051 = vsel %vm1044, %v1031, %v1033
  %v1052 = vsel %vm1044, %v1033, %v1035
  %v1053 = vsel %vm1044, %v1035, %v1037
  %v1054 = vsel %vm1044, %v1037, %v1039
  %v1055 = vsel %vm1044, %v1039, %v1041
  %v1056 = vsel %vm1044, %v1041, %v1043
  %1070 = vrot.lane.b32.xlu0 %v15, 99
  %v1071 = vpop.permute.xlu0 %1070
  %1072 = vrot.lane.b32.xlu0 %v30, 99
  %v1073 = vpop.permute.xlu0 %1072
  %1074 = vrot.lane.b32.xlu0 %v16, 99
  %v1075 = vpop.permute.xlu0 %1074
  %1076 = vrot.lane.b32.xlu0 %v31, 99
  %v1077 = vpop.permute.xlu0 %1076
  %1078 = vrot.lane.b32.xlu0 %v17, 99
  %v1079 = vpop.permute.xlu0 %1078
  %1080 = vrot.lane.b32.xlu0 %v32, 99
  %v1081 = vpop.permute.xlu0 %1080
  %1082 = vrot.lane.b32.xlu0 %v18, 99
  %v1083 = vpop.permute.xlu0 %1082
  %1084 = vrot.lane.b32.xlu0 %v33, 99
  %v1085 = vpop.permute.xlu0 %1084
  %1086 = vrot.lane.b32.xlu0 %v19, 99
  %v1087 = vpop.permute.xlu0 %1086
  %1088 = vrot.lane.b32.xlu0 %v34, 99
  %v1089 = vpop.permute.xlu0 %1088
  %1090 = vrot.lane.b32.xlu0 %v20, 99
  %v1091 = vpop.permute.xlu0 %1090
  %1092 = vrot.lane.b32.xlu0 %v35, 99
  %v1093 = vpop.permute.xlu0 %1092
  %1094 = vrot.lane.b32.xlu0 %v21, 99
  %v1095 = vpop.permute.xlu0 %1094
  %vm1096 = vcmask 809984
  %v1097 = vsel %vm1096, %v1071, %v1073
  %v1098 = vsel %vm1096, %v1073, %v1075
  %v1099 = vsel %vm1096, %v1075, %v1077
  %v1100 = vsel %vm1096, %v1077, %v1079
  %v1101 = vsel %vm1096, %v1079, %v1081
  %v1102 = vsel %vm1096, %v1081, %v1083
  %v1103 = vsel %vm1096, %v1083, %v1085
  %v1104 = vsel %vm1096, %v1085, %v1087
  %v1105 = vsel %vm1096, %v1087, %v1089
  %v1106 = vsel %vm1096, %v1089, %v1091
  %v1107 = vsel %vm1096, %v1091, %v1093
  %v1108 = vsel %vm1096, %v1093, %v1095
  %1123 = vrot.lane.b32.xlu0 %v15, 93
  %v1124 = vpop.permute.xlu0 %1123
  %1125 = vrot.lane.b32.xlu0 %v30, 93
  %v1126 = vpop.permute.xlu0 %1125
  %1127 = vrot.lane.b32.xlu0 %v16, 93
  %v1128 = vpop.permute.xlu0 %1127
  %1129 = vrot.lane.b32.xlu0 %v31, 93
  %v1130 = vpop.permute.xlu0 %1129
  %1131 = vrot.lane.b32.xlu0 %v17, 93
  %v1132 = vpop.permute.xlu0 %1131
  %1133 = vrot.lane.b32.xlu0 %v32, 93
  %v1134 = vpop.permute.xlu0 %1133
  %1135 = vrot.lane.b32.xlu0 %v18, 93
  %v1136 = vpop.permute.xlu0 %1135
  %1137 = vrot.lane.b32.xlu0 %v33, 93
  %v1138 = vpop.permute.xlu0 %1137
  %1139 = vrot.lane.b32.xlu0 %v19, 93
  %v1140 = vpop.permute.xlu0 %1139
  %1141 = vrot.lane.b32.xlu0 %v34, 93
  %v1142 = vpop.permute.xlu0 %1141
  %1143 = vrot.lane.b32.xlu0 %v20, 93
  %v1144 = vpop.permute.xlu0 %1143
  %1145 = vrot.lane.b32.xlu0 %v35, 93
  %v1146 = vpop.permute.xlu0 %1145
  %1147 = vrot.lane.b32.xlu0 %v21, 93
  %v1148 = vpop.permute.xlu0 %1147
  %vm1149 = vcmask 760832
  %v1150 = vsel %vm1149, %v1124, %v1126
  %v1151 = vsel %vm1149, %v1126, %v1128
  %v1152 = vsel %vm1149, %v1128, %v1130
  %v1153 = vsel %vm1149, %v1130, %v1132
  %v1154 = vsel %vm1149, %v1132, %v1134
  %v1155 = vsel %vm1149, %v1134, %v1136
  %v1156 = vsel %vm1149, %v1136, %v1138
  %v1157 = vsel %vm1149, %v1138, %v1140
  %v1158 = vsel %vm1149, %v1140, %v1142
  %v1159 = vsel %vm1149, %v1142, %v1144
  %v1160 = vsel %vm1149, %v1144, %v1146
  %v1161 = vsel %vm1149, %v1146, %v1148
  %v1175 = vcombine.low %v14, %v14
  %1176 = vrot.lane.b32.xlu0 %v1175, 68
  %v1177 = vpop.permute.xlu0 %1176
  %1178 = vrot.lane.b32.xlu0 %v14, 68
  %v1179 = vpop.permute.xlu0 %1178
  %1180 = vrot.lane.b32.xlu0 %v87, 68
  %v1181 = vpop.permute.xlu0 %1180
  %1182 = vrot.lane.b32.xlu0 %v15, 68
  %v1183 = vpop.permute.xlu0 %1182
  %1184 = vrot.lane.b32.xlu0 %v88, 68
  %v1185 = vpop.permute.xlu0 %1184
  %1186 = vrot.lane.b32.xlu0 %v16, 68
  %v1187 = vpop.permute.xlu0 %1186
  %1188 = vrot.lane.b32.xlu0 %v89, 68
  %v1189 = vpop.permute.xlu0 %1188
  %1190 = vrot.lane.b32.xlu0 %v17, 68
  %v1191 = vpop.permute.xlu0 %1190
  %1192 = vrot.lane.b32.xlu0 %v90, 68
  %v1193 = vpop.permute.xlu0 %1192
  %1194 = vrot.lane.b32.xlu0 %v18, 68
  %v1195 = vpop.permute.xlu0 %1194
  %1196 = vrot.lane.b32.xlu0 %v91, 68
  %v1197 = vpop.permute.xlu0 %1196
  %1198 = vrot.lane.b32.xlu0 %v19, 68
  %v1199 = vpop.permute.xlu0 %1198
  %1200 = vrot.lane.b32.xlu0 %v92, 68
  %v1201 = vpop.permute.xlu0 %1200
  %vm1202 = vcmask 556032
  %v1203 = vsel %vm1202, %v1177, %v1179
  %v1204 = vsel %vm1202, %v1179, %v1181
  %v1205 = vsel %vm1202, %v1181, %v1183
  %v1206 = vsel %vm1202, %v1183, %v1185
  %v1207 = vsel %vm1202, %v1185, %v1187
  %v1208 = vsel %vm1202, %v1187, %v1189
  %v1209 = vsel %vm1202, %v1189, %v1191
  %v1210 = vsel %vm1202, %v1191, %v1193
  %v1211 = vsel %vm1202, %v1193, %v1195
  %v1212 = vsel %vm1202, %v1195, %v1197
  %v1213 = vsel %vm1202, %v1197, %v1199
  %v1214 = vsel %vm1202, %v1199, %v1201
  %1230 = vrot.lane.b32.xlu0 %v14, 60
  %v1231 = vpop.permute.xlu0 %1230
  %1232 = vrot.lane.b32.xlu0 %v87, 60
  %v1233 = vpop.permute.xlu0 %1232
  %1234 = vrot.lane.b32.xlu0 %v15, 60
  %v1235 = vpop.permute.xlu0 %1234
  %1236 = vrot.lane.b32.xlu0 %v88, 60
  %v1237 = vpop.permute.xlu0 %1236
  %1238 = vrot.lane.b32.xlu0 %v16, 60
  %v1239 = vpop.permute.xlu0 %1238
  %1240 = vrot.lane.b32.xlu0 %v89, 60
  %v1241 = vpop.permute.xlu0 %1240
  %1242 = vrot.lane.b32.xlu0 %v17, 60
  %v1243 = vpop.permute.xlu0 %1242
  %1244 = vrot.lane.b32.xlu0 %v90, 60
  %v1245 = vpop.permute.xlu0 %1244
  %1246 = vrot.lane.b32.xlu0 %v18, 60
  %v1247 = vpop.permute.xlu0 %1246
  %1248 = vrot.lane.b32.xlu0 %v91, 60
  %v1249 = vpop.permute.xlu0 %1248
  %1250 = vrot.lane.b32.xlu0 %v19, 60
  %v1251 = vpop.permute.xlu0 %1250
  %1252 = vrot.lane.b32.xlu0 %v92, 60
  %v1253 = vpop.permute.xlu0 %1252
  %1254 = vrot.lane.b32.xlu0 %v20, 60
  %v1255 = vpop.permute.xlu0 %1254
  %vm1256 = vcmask 490496
  %v1257 = vsel %vm1256, %v1231, %v1233
  %v1258 = vsel %vm1256, %v1233, %v1235
  %v1259 = vsel %vm1256, %v1235, %v1237
  %v1260 = vsel %vm1256, %v1237, %v1239
  %v1261 = vsel %vm1256, %v1239, %v1241
  %v1262 = vsel %vm1256, %v1241, %v1243
  %v1263 = vsel %vm1256, %v1243, %v1245
  %v1264 = vsel %vm1256, %v1245, %v1247
  %v1265 = vsel %vm1256, %v1247, %v1249
  %v1266 = vsel %vm1256, %v1249, %v1251
  %v1267 = vsel %vm1256, %v1251, %v1253
  %v1268 = vsel %vm1256, %v1253, %v1255
  %1282 = vrot.lane.b32.xlu0 %v29, 68
  %v1283 = vpop.permute.xlu0 %1282
  %1284 = vrot.lane.b32.xlu0 %v30, 68
  %v1285 = vpop.permute.xlu0 %1284
  %1286 = vrot.lane.b32.xlu0 %v31, 68
  %v1287 = vpop.permute.xlu0 %1286
  %1288 = vrot.lane.b32.xlu0 %v32, 68
  %v1289 = vpop.permute.xlu0 %1288
  %1290 = vrot.lane.b32.xlu0 %v33, 68
  %v1291 = vpop.permute.xlu0 %1290
  %1292 = vrot.lane.b32.xlu0 %v34, 68
  %v1293 = vpop.permute.xlu0 %1292
  %1294 = vrot.lane.b32.xlu0 %v20, 68
  %v1295 = vpop.permute.xlu0 %1294
  %1296 = vrot.lane.b32.xlu0 %v35, 68
  %v1297 = vpop.permute.xlu0 %1296
  %v1298 = vsel %vm1202, %v1283, %v1183
  %v1299 = vsel %vm1202, %v1183, %v1285
  %v1300 = vsel %vm1202, %v1285, %v1187
  %v1301 = vsel %vm1202, %v1187, %v1287
  %v1302 = vsel %vm1202, %v1287, %v1191
  %v1303 = vsel %vm1202, %v1191, %v1289
  %v1304 = vsel %vm1202, %v1289, %v1195
  %v1305 = vsel %vm1202, %v1195, %v1291
  %v1306 = vsel %vm1202, %v1291, %v1199
  %v1307 = vsel %vm1202, %v1199, %v1293
  %v1308 = vsel %vm1202, %v1293, %v1295
  %v1309 = vsel %vm1202, %v1295, %v1297
  %1323 = vrot.lane.b32.xlu0 %v87, 64
  %v1324 = vpop.permute.xlu0 %1323
  %1325 = vrot.lane.b32.xlu0 %v88, 64
  %v1326 = vpop.permute.xlu0 %1325
  %1327 = vrot.lane.b32.xlu0 %v89, 64
  %v1328 = vpop.permute.xlu0 %1327
  %1329 = vrot.lane.b32.xlu0 %v90, 64
  %v1330 = vpop.permute.xlu0 %1329
  %1331 = vrot.lane.b32.xlu0 %v91, 64
  %v1332 = vpop.permute.xlu0 %1331
  %1333 = vrot.lane.b32.xlu0 %v92, 64
  %v1334 = vpop.permute.xlu0 %1333
  %v1335 = vsel %vm535, %v1324, %v512
  %v1336 = vsel %vm535, %v512, %v1326
  %v1337 = vsel %vm535, %v1326, %v516
  %v1338 = vsel %vm535, %v516, %v1328
  %v1339 = vsel %vm535, %v1328, %v520
  %v1340 = vsel %vm535, %v520, %v1330
  %v1341 = vsel %vm535, %v1330, %v524
  %v1342 = vsel %vm535, %v524, %v1332
  %v1343 = vsel %vm535, %v1332, %v528
  %v1344 = vsel %vm535, %v528, %v1334
  %v1345 = vsel %vm535, %v1334, %v532
  %v1358 = vsel %vm723, %v15, %v834
  %v1359 = vsel %vm723, %v30, %v835
  %v1360 = vsel %vm723, %v16, %v836
  %v1361 = vsel %vm723, %v31, %v837
  %v1362 = vsel %vm723, %v17, %v838
  %v1363 = vsel %vm723, %v32, %v839
  %v1364 = vsel %vm723, %v18, %v840
  %v1365 = vsel %vm723, %v33, %v841
  %v1366 = vsel %vm723, %v19, %v842
  %v1367 = vsel %vm723, %v34, %v843
  %v1368 = vsel %vm723, %v20, %v844
  %v1369 = vsel %vm723, %v35, %v845
  %v1370 = vsel %vm723, %v21, %v833
  %v1371 = vsel %vm723, %v860, %v94
  %v1372 = vsel %vm723, %v886, %v120
  %v1373 = vsel %vm723, %v887, %v121
  %v1374 = vsel %vm723, %v888, %v122
  %v1375 = vsel %vm723, %v889, %v123
  %v1376 = vsel %vm723, %v890, %v124
  %v1377 = vsel %vm723, %v891, %v125
  %v1378 = vsel %vm723, %v892, %v126
  %v1379 = vsel %vm723, %v893, %v127
  %v1380 = vsel %vm723, %v894, %v128
  %v1381 = vsel %vm723, %v895, %v129
  %v1382 = vsel %vm723, %v896, %v130
  %v1383 = vsel %vm723, %v897, %v131
  %v1384 = vsel %vm723, %v913, %v991
  %v1385 = vsel %vm723, %v939, %v992
  %v1386 = vsel %vm723, %v940, %v993
  %v1387 = vsel %vm723, %v941, %v994
  %v1388 = vsel %vm723, %v942, %v995
  %v1389 = vsel %vm723, %v943, %v996
  %v1390 = vsel %vm723, %v944, %v997
  %v1391 = vsel %vm723, %v945, %v998
  %v1392 = vsel %vm723, %v946, %v999
  %v1393 = vsel %vm723, %v947, %v1000
  %v1394 = vsel %vm723, %v948, %v1001
  %v1395 = vsel %vm723, %v949, %v1002
  %v1396 = vsel %vm723, %v950, %v989
  %v1397 = vsel %vm723, %v512, %v1019
  %v1398 = vsel %vm723, %v537, %v1045
  %v1399 = vsel %vm723, %v538, %v1046
  %v1400 = vsel %vm723, %v539, %v1047
  %v1401 = vsel %vm723, %v540, %v1048
  %v1402 = vsel %vm723, %v541, %v1049
  %v1403 = vsel %vm723, %v542, %v1050
  %v1404 = vsel %vm723, %v543, %v1051
  %v1405 = vsel %vm723, %v544, %v1052
  %v1406 = vsel %vm723, %v545, %v1053
  %v1407 = vsel %vm723, %v546, %v1054
  %v1408 = vsel %vm723, %v547, %v1055
  %v1409 = vsel %vm723, %v534, %v1056
  %v1410 = vsel %vm723, %v1097, %v383
  %v1411 = vsel %vm723, %v1098, %v384
  %v1412 = vsel %vm723, %v1099, %v385
  %v1413 = vsel %vm723, %v1100, %v386
  %v1414 = vsel %vm723, %v1101, %v387
  %v1415 = vsel %vm723, %v1102, %v388
  %v1416 = vsel %vm723, %v1103, %v389
  %v1417 = vsel %vm723, %v1104, %v390
  %v1418 = vsel %vm723, %v1105, %v391
  %v1419 = vsel %vm723, %v1106, %v392
  %v1420 = vsel %vm723, %v1107, %v393
  %v1421 = vsel %vm723, %v1108, %v394
  %v1422 = vsel %vm723, %v1095, %v381
  %v1423 = vsel %vm723, %v1150, %v1203
  %v1424 = vsel %vm723, %v1151, %v1204
  %v1425 = vsel %vm723, %v1152, %v1205
  %v1426 = vsel %vm723, %v1153, %v1206
  %v1427 = vsel %vm723, %v1154, %v1207
  %v1428 = vsel %vm723, %v1155, %v1208
  %v1429 = vsel %vm723, %v1156, %v1209
  %v1430 = vsel %vm723, %v1157, %v1210
  %v1431 = vsel %vm723, %v1158, %v1211
  %v1432 = vsel %vm723, %v1159, %v1212
  %v1433 = vsel %vm723, %v1160, %v1213
  %v1434 = vsel %vm723, %v1161, %v1214
  %v1435 = vsel %vm723, %v1148, %v1201
  %v1436 = vsel %vm723, %v510, %v1231
  %v1437 = vsel %vm723, %v536, %v1257
  %v1438 = vsel %vm723, %v537, %v1258
  %v1439 = vsel %vm723, %v538, %v1259
  %v1440 = vsel %vm723, %v539, %v1260
  %v1441 = vsel %vm723, %v540, %v1261
  %v1442 = vsel %vm723, %v541, %v1262
  %v1443 = vsel %vm723, %v542, %v1263
  %v1444 = vsel %vm723, %v543, %v1264
  %v1445 = vsel %vm723, %v544, %v1265
  %v1446 = vsel %vm723, %v545, %v1266
  %v1447 = vsel %vm723, %v546, %v1267
  %v1448 = vsel %vm723, %v532, %v1268
  %v1449 = vsel %vm723, %v1298, %v1324
  %v1450 = vsel %vm723, %v1299, %v1335
  %v1451 = vsel %vm723, %v1300, %v1336
  %v1452 = vsel %vm723, %v1301, %v1337
  %v1453 = vsel %vm723, %v1302, %v1338
  %v1454 = vsel %vm723, %v1303, %v1339
  %v1455 = vsel %vm723, %v1304, %v1340
  %v1456 = vsel %vm723, %v1305, %v1341
  %v1457 = vsel %vm723, %v1306, %v1342
  %v1458 = vsel %vm723, %v1307, %v1343
  %v1459 = vsel %vm723, %v1308, %v1344
  %v1460 = vsel %vm723, %v1309, %v1345
  %v1461 = vsel %vm723, %v1297, %v532
  %1462 = vrot.lane.b32.xlu0 %v87, 8
  %v1463 = vpop.permute.xlu0 %1462
  %1464 = vrot.lane.b32.xlu0 %v15, 8
  %v1465 = vpop.permute.xlu0 %1464
  %1466 = vrot.lane.b32.xlu0 %v88, 8
  %v1467 = vpop.permute.xlu0 %1466
  %1468 = vrot.lane.b32.xlu0 %v16, 8
  %v1469 = vpop.permute.xlu0 %1468
  %1470 = vrot.lane.b32.xlu0 %v89, 8
  %v1471 = vpop.permute.xlu0 %1470
  %1472 = vrot.lane.b32.xlu0 %v17, 8
  %v1473 = vpop.permute.xlu0 %1472
  %1474 = vrot.lane.b32.xlu0 %v90, 8
  %v1475 = vpop.permute.xlu0 %1474
  %1476 = vrot.lane.b32.xlu0 %v18, 8
  %v1477 = vpop.permute.xlu0 %1476
  %1478 = vrot.lane.b32.xlu0 %v91, 8
  %v1479 = vpop.permute.xlu0 %1478
  %1480 = vrot.lane.b32.xlu0 %v19, 8
  %v1481 = vpop.permute.xlu0 %1480
  %1482 = vrot.lane.b32.xlu0 %v92, 8
  %v1483 = vpop.permute.xlu0 %1482
  %1484 = vrot.lane.b32.xlu0 %v20, 8
  %v1485 = vpop.permute.xlu0 %1484
  %1486 = vrot.lane.b32.xlu0 %v253, 8
  %v1487 = vpop.permute.xlu0 %1486
  %vm1488 = vcmask 64512
  %v1489 = vsel %vm1488, %v1463, %v1465
  %v1490 = vsel %vm1488, %v1465, %v1467
  %v1491 = vsel %vm1488, %v1467, %v1469
  %v1492 = vsel %vm1488, %v1469, %v1471
  %v1493 = vsel %vm1488, %v1471, %v1473
  %v1494 = vsel %vm1488, %v1473, %v1475
  %v1495 = vsel %vm1488, %v1475, %v1477
  %v1496 = vsel %vm1488, %v1477, %v1479
  %v1497 = vsel %vm1488, %v1479, %v1481
  %v1498 = vsel %vm1488, %v1481, %v1483
  %v1499 = vsel %vm1488, %v1483, %v1485
  %v1500 = vsel %vm1488, %v1485, %v1487
  %1514 = vrot.lane.b32.xlu0 %v30, 4
  %v1515 = vpop.permute.xlu0 %1514
  %1516 = vrot.lane.b32.xlu0 %v16, 4
  %v1517 = vpop.permute.xlu0 %1516
  %1518 = vrot.lane.b32.xlu0 %v31, 4
  %v1519 = vpop.permute.xlu0 %1518
  %1520 = vrot.lane.b32.xlu0 %v17, 4
  %v1521 = vpop.permute.xlu0 %1520
  %1522 = vrot.lane.b32.xlu0 %v32, 4
  %v1523 = vpop.permute.xlu0 %1522
  %1524 = vrot.lane.b32.xlu0 %v18, 4
  %v1525 = vpop.permute.xlu0 %1524
  %1526 = vrot.lane.b32.xlu0 %v33, 4
  %v1527 = vpop.permute.xlu0 %1526
  %1528 = vrot.lane.b32.xlu0 %v19, 4
  %v1529 = vpop.permute.xlu0 %1528
  %1530 = vrot.lane.b32.xlu0 %v34, 4
  %v1531 = vpop.permute.xlu0 %1530
  %1532 = vrot.lane.b32.xlu0 %v20, 4
  %v1533 = vpop.permute.xlu0 %1532
  %1534 = vrot.lane.b32.xlu0 %v35, 4
  %v1535 = vpop.permute.xlu0 %1534
  %1536 = vrot.lane.b32.xlu0 %v21, 4
  %v1537 = vpop.permute.xlu0 %1536
  %vm1538 = vcmask 31744
  %v1539 = vsel %vm1538, %v1515, %v1517
  %v1540 = vsel %vm1538, %v1517, %v1519
  %v1541 = vsel %vm1538, %v1519, %v1521
  %v1542 = vsel %vm1538, %v1521, %v1523
  %v1543 = vsel %vm1538, %v1523, %v1525
  %v1544 = vsel %vm1538, %v1525, %v1527
  %v1545 = vsel %vm1538, %v1527, %v1529
  %v1546 = vsel %vm1538, %v1529, %v1531
  %v1547 = vsel %vm1538, %v1531, %v1533
  %v1548 = vsel %vm1538, %v1533, %v1535
  %v1549 = vsel %vm1538, %v1535, %v1537
  %1564 = vrot.lane.b32.xlu0 %v14, 74
  %v1565 = vpop.permute.xlu0 %1564
  %1566 = vrot.lane.b32.xlu0 %v29, 74
  %v1567 = vpop.permute.xlu0 %1566
  %1568 = vrot.lane.b32.xlu0 %v15, 74
  %v1569 = vpop.permute.xlu0 %1568
  %1570 = vrot.lane.b32.xlu0 %v30, 74
  %v1571 = vpop.permute.xlu0 %1570
  %1572 = vrot.lane.b32.xlu0 %v16, 74
  %v1573 = vpop.permute.xlu0 %1572
  %1574 = vrot.lane.b32.xlu0 %v31, 74
  %v1575 = vpop.permute.xlu0 %1574
  %1576 = vrot.lane.b32.xlu0 %v17, 74
  %v1577 = vpop.permute.xlu0 %1576
  %1578 = vrot.lane.b32.xlu0 %v32, 74
  %v1579 = vpop.permute.xlu0 %1578
  %1580 = vrot.lane.b32.xlu0 %v18, 74
  %v1581 = vpop.permute.xlu0 %1580
  %1582 = vrot.lane.b32.xlu0 %v33, 74
  %v1583 = vpop.permute.xlu0 %1582
  %1584 = vrot.lane.b32.xlu0 %v19, 74
  %v1585 = vpop.permute.xlu0 %1584
  %1586 = vrot.lane.b32.xlu0 %v34, 74
  %v1587 = vpop.permute.xlu0 %1586
  %1588 = vrot.lane.b32.xlu0 %v20, 74
  %v1589 = vpop.permute.xlu0 %1588
  %vm1590 = vcmask 605184
  %v1591 = vsel %vm1590, %v1565, %v1567
  %v1592 = vsel %vm1590, %v1567, %v1569
  %v1593 = vsel %vm1590, %v1569, %v1571
  %v1594 = vsel %vm1590, %v1571, %v1573
  %v1595 = vsel %vm1590, %v1573, %v1575
  %v1596 = vsel %vm1590, %v1575, %v1577
  %v1597 = vsel %vm1590, %v1577, %v1579
  %v1598 = vsel %vm1590, %v1579, %v1581
  %v1599 = vsel %vm1590, %v1581, %v1583
  %v1600 = vsel %vm1590, %v1583, %v1585
  %v1601 = vsel %vm1590, %v1585, %v1587
  %v1602 = vsel %vm1590, %v1587, %v1589
  %1616 = vrot.lane.b32.xlu0 %v29, 62
  %v1617 = vpop.permute.xlu0 %1616
  %1618 = vrot.lane.b32.xlu0 %v30, 62
  %v1619 = vpop.permute.xlu0 %1618
  %1620 = vrot.lane.b32.xlu0 %v31, 62
  %v1621 = vpop.permute.xlu0 %1620
  %1622 = vrot.lane.b32.xlu0 %v32, 62
  %v1623 = vpop.permute.xlu0 %1622
  %1624 = vrot.lane.b32.xlu0 %v33, 62
  %v1625 = vpop.permute.xlu0 %1624
  %1626 = vrot.lane.b32.xlu0 %v34, 62
  %v1627 = vpop.permute.xlu0 %1626
  %v1628 = vsel %vm586, %v561, %v1617
  %v1629 = vsel %vm586, %v1617, %v565
  %v1630 = vsel %vm586, %v565, %v1619
  %v1631 = vsel %vm586, %v1619, %v569
  %v1632 = vsel %vm586, %v569, %v1621
  %v1633 = vsel %vm586, %v1621, %v573
  %v1634 = vsel %vm586, %v573, %v1623
  %v1635 = vsel %vm586, %v1623, %v577
  %v1636 = vsel %vm586, %v577, %v1625
  %v1637 = vsel %vm586, %v1625, %v581
  %v1638 = vsel %vm586, %v581, %v1627
  %v1639 = vsel %vm586, %v1627, %v585
  %1653 = vrot.lane.b32.xlu0 %v14, 10
  %v1654 = vpop.permute.xlu0 %1653
  %1655 = vrot.lane.b32.xlu0 %v87, 10
  %v1656 = vpop.permute.xlu0 %1655
  %1657 = vrot.lane.b32.xlu0 %v15, 10
  %v1658 = vpop.permute.xlu0 %1657
  %1659 = vrot.lane.b32.xlu0 %v88, 10
  %v1660 = vpop.permute.xlu0 %1659
  %1661 = vrot.lane.b32.xlu0 %v16, 10
  %v1662 = vpop.permute.xlu0 %1661
  %1663 = vrot.lane.b32.xlu0 %v89, 10
  %v1664 = vpop.permute.xlu0 %1663
  %1665 = vrot.lane.b32.xlu0 %v17, 10
  %v1666 = vpop.permute.xlu0 %1665
  %1667 = vrot.lane.b32.xlu0 %v90, 10
  %v1668 = vpop.permute.xlu0 %1667
  %1669 = vrot.lane.b32.xlu0 %v18, 10
  %v1670 = vpop.permute.xlu0 %1669
  %1671 = vrot.lane.b32.xlu0 %v91, 10
  %v1672 = vpop.permute.xlu0 %1671
  %1673 = vrot.lane.b32.xlu0 %v19, 10
  %v1674 = vpop.permute.xlu0 %1673
  %1675 = vrot.lane.b32.xlu0 %v92, 10
  %v1676 = vpop.permute.xlu0 %1675
  %1677 = vrot.lane.b32.xlu0 %v20, 10
  %v1678 = vpop.permute.xlu0 %1677
  %vm1679 = vcmask 80896
  %v1680 = vsel %vm1679, %v1654, %v1656
  %v1681 = vsel %vm1679, %v1656, %v1658
  %v1682 = vsel %vm1679, %v1658, %v1660
  %v1683 = vsel %vm1679, %v1660, %v1662
  %v1684 = vsel %vm1679, %v1662, %v1664
  %v1685 = vsel %vm1679, %v1664, %v1666
  %v1686 = vsel %vm1679, %v1666, %v1668
  %v1687 = vsel %vm1679, %v1668, %v1670
  %v1688 = vsel %vm1679, %v1670, %v1672
  %v1689 = vsel %vm1679, %v1672, %v1674
  %v1690 = vsel %vm1679, %v1674, %v1676
  %v1691 = vsel %vm1679, %v1676, %v1678
  %1705 = vrot.lane.b32.xlu0 %v15, 4
  %v1706 = vpop.permute.xlu0 %1705
  %v1707 = vsel %vm1538, %v1706, %v1515
  %v1711 = vcombine.high %v21, %v21
  %1712 = vrot.lane.b32.xlu0 %v35, 74
  %v1713 = vpop.permute.xlu0 %1712
  %1714 = vrot.lane.b32.xlu0 %v21, 74
  %v1715 = vpop.permute.xlu0 %1714
  %1716 = vrot.lane.b32.xlu0 %v1711, 74
  %v1717 = vpop.permute.xlu0 %1716
  %v1718 = vsel %vm1590, %v1589, %v1713
  %v1719 = vsel %vm1590, %v1713, %v1715
  %v1720 = vsel %vm1590, %v1715, %v1717
  %1725 = vrot.lane.b32.xlu0 %v253, 68
  %v1726 = vpop.permute.xlu0 %1725
  %1727 = vrot.lane.b32.xlu0 %v21, 68
  %v1728 = vpop.permute.xlu0 %1727
  %v1729 = vsel %vm1202, %v1201, %v1295
  %v1730 = vsel %vm1202, %v1295, %v1726
  %v1731 = vsel %vm1202, %v1726, %v1728
  %1736 = vrot.lane.b32.xlu0 %v35, 62
  %v1737 = vpop.permute.xlu0 %1736
  %1738 = vrot.lane.b32.xlu0 %v21, 62
  %v1739 = vpop.permute.xlu0 %1738
  %1740 = vrot.lane.b32.xlu0 %v1711, 62
  %v1741 = vpop.permute.xlu0 %1740
  %v1742 = vsel %vm586, %v585, %v1737
  %v1743 = vsel %vm586, %v1737, %v1739
  %v1744 = vsel %vm586, %v1739, %v1741
  %v1749 = vsel %vm723, %v15, %v1489
  %v1750 = vsel %vm723, %v30, %v1490
  %v1751 = vsel %vm723, %v16, %v1491
  %v1752 = vsel %vm723, %v31, %v1492
  %v1753 = vsel %vm723, %v17, %v1493
  %v1754 = vsel %vm723, %v32, %v1494
  %v1755 = vsel %vm723, %v18, %v1495
  %v1756 = vsel %vm723, %v33, %v1496
  %v1757 = vsel %vm723, %v19, %v1497
  %v1758 = vsel %vm723, %v34, %v1498
  %v1759 = vsel %vm723, %v20, %v1499
  %v1760 = vsel %vm723, %v35, %v1500
  %v1761 = vsel %vm723, %v21, %v1487
  %v1762 = vsel %vm723, %v1515, %v15
  %v1763 = vsel %vm723, %v1539, %v88
  %v1764 = vsel %vm723, %v1540, %v16
  %v1765 = vsel %vm723, %v1541, %v89
  %v1766 = vsel %vm723, %v1542, %v17
  %v1767 = vsel %vm723, %v1543, %v90
  %v1768 = vsel %vm723, %v1544, %v18
  %v1769 = vsel %vm723, %v1545, %v91
  %v1770 = vsel %vm723, %v1546, %v19
  %v1771 = vsel %vm723, %v1547, %v92
  %v1772 = vsel %vm723, %v1548, %v20
  %v1773 = vsel %vm723, %v1549, %v253
  %v1774 = vsel %vm723, %v1537, %v21
  %v1775 = vsel %vm723, %v1591, %v1203
  %v1776 = vsel %vm723, %v1592, %v1204
  %v1777 = vsel %vm723, %v1593, %v1205
  %v1778 = vsel %vm723, %v1594, %v1206
  %v1779 = vsel %vm723, %v1595, %v1207
  %v1780 = vsel %vm723, %v1596, %v1208
  %v1781 = vsel %vm723, %v1597, %v1209
  %v1782 = vsel %vm723, %v1598, %v1210
  %v1783 = vsel %vm723, %v1599, %v1211
  %v1784 = vsel %vm723, %v1600, %v1212
  %v1785 = vsel %vm723, %v1601, %v1213
  %v1786 = vsel %vm723, %v1602, %v1214
  %v1787 = vsel %vm723, %v1589, %v1201
  %v1788 = vsel %vm723, %v1628, %v1680
  %v1789 = vsel %vm723, %v1629, %v1681
  %v1790 = vsel %vm723, %v1630, %v1682
  %v1791 = vsel %vm723, %v1631, %v1683
  %v1792 = vsel %vm723, %v1632, %v1684
  %v1793 = vsel %vm723, %v1633, %v1685
  %v1794 = vsel %vm723, %v1634, %v1686
  %v1795 = vsel %vm723, %v1635, %v1687
  %v1796 = vsel %vm723, %v1636, %v1688
  %v1797 = vsel %vm723, %v1637, %v1689
  %v1798 = vsel %vm723, %v1638, %v1690
  %v1799 = vsel %vm723, %v1639, %v1691
  %v1800 = vsel %vm723, %v585, %v1678
  %v1801 = vsel %vm723, %v1706, %v834
  %v1802 = vsel %vm723, %v1707, %v835
  %v1803 = vsel %vm723, %v1539, %v836
  %v1804 = vsel %vm723, %v1540, %v837
  %v1805 = vsel %vm723, %v1541, %v838
  %v1806 = vsel %vm723, %v1542, %v839
  %v1807 = vsel %vm723, %v1543, %v840
  %v1808 = vsel %vm723, %v1544, %v841
  %v1809 = vsel %vm723, %v1545, %v842
  %v1810 = vsel %vm723, %v1546, %v843
  %v1811 = vsel %vm723, %v1547, %v844
  %v1812 = vsel %vm723, %v1548, %v845
  %v1813 = vsel %vm723, %v1535, %v833
  %v1814 = vsel %vm723, %v1718, %v1729
  %v1815 = vsel %vm723, %v1719, %v1730
  %v1816 = vsel %vm723, %v1720, %v1731
  %v1817 = vsel %vm723, %v1717, %v1728
  %v1818 = vsel %vm723, %v1631, 1.0
  %v1819 = vsel %vm723, %v1632, 1.0
  %v1820 = vsel %vm723, %v1633, 1.0
  %v1821 = vsel %vm723, %v1634, 1.0
  %v1822 = vsel %vm723, %v1635, 1.0
  %v1823 = vsel %vm723, %v1636, 1.0
  %v1824 = vsel %vm723, %v1637, 1.0
  %v1825 = vsel %vm723, %v1638, 1.0
  %v1826 = vsel %vm723, %v1639, 1.0
  %v1827 = vsel %vm723, %v1742, 1.0
  %v1828 = vsel %vm723, %v1743, 1.0
  %v1829 = vsel %vm723, %v1744, 1.0
  %v1830 = vsel %vm723, %v1741, 1.0
  %1935 = vrot.lane.b32.xlu0 %v1358, 64
  %v1936 = vpop.permute.xlu0 %1935
  %1937 = vrot.lane.b32.xlu0 %v1359, 64
  %v1938 = vpop.permute.xlu0 %1937
  %1939 = vrot.lane.b32.xlu0 %v1360, 64
  %v1940 = vpop.permute.xlu0 %1939
  %1941 = vrot.lane.b32.xlu0 %v1361, 64
  %v1942 = vpop.permute.xlu0 %1941
  %1943 = vrot.lane.b32.xlu0 %v1362, 64
  %v1944 = vpop.permute.xlu0 %1943
  %1945 = vrot.lane.b32.xlu0 %v1363, 64
  %v1946 = vpop.permute.xlu0 %1945
  %1947 = vrot.lane.b32.xlu0 %v1364, 64
  %v1948 = vpop.permute.xlu0 %1947
  %1949 = vrot.lane.b32.xlu0 %v1365, 64
  %v1950 = vpop.permute.xlu0 %1949
  %1951 = vrot.lane.b32.xlu0 %v1366, 64
  %v1952 = vpop.permute.xlu0 %1951
  %1953 = vrot.lane.b32.xlu0 %v1367, 64
  %v1954 = vpop.permute.xlu0 %1953
  %1955 = vrot.lane.b32.xlu0 %v1368, 64
  %v1956 = vpop.permute.xlu0 %1955
  %1957 = vrot.lane.b32.xlu0 %v1369, 64
  %v1958 = vpop.permute.xlu0 %1957
  %1959 = vrot.lane.b32.xlu0 %v1370, 64
  %v1960 = vpop.permute.xlu0 %1959
  %1961 = vrot.lane.b32.xlu0 %v1371, 64
  %v1962 = vpop.permute.xlu0 %1961
  %1963 = vrot.lane.b32.xlu0 %v1372, 64
  %v1964 = vpop.permute.xlu0 %1963
  %1965 = vrot.lane.b32.xlu0 %v1373, 64
  %v1966 = vpop.permute.xlu0 %1965
  %1967 = vrot.lane.b32.xlu0 %v1374, 64
  %v1968 = vpop.permute.xlu0 %1967
  %1969 = vrot.lane.b32.xlu0 %v1375, 64
  %v1970 = vpop.permute.xlu0 %1969
  %1971 = vrot.lane.b32.xlu0 %v1376, 64
  %v1972 = vpop.permute.xlu0 %1971
  %1973 = vrot.lane.b32.xlu0 %v1377, 64
  %v1974 = vpop.permute.xlu0 %1973
  %1975 = vrot.lane.b32.xlu0 %v1378, 64
  %v1976 = vpop.permute.xlu0 %1975
  %1977 = vrot.lane.b32.xlu0 %v1379, 64
  %v1978 = vpop.permute.xlu0 %1977
  %1979 = vrot.lane.b32.xlu0 %v1380, 64
  %v1980 = vpop.permute.xlu0 %1979
  %1981 = vrot.lane.b32.xlu0 %v1381, 64
  %v1982 = vpop.permute.xlu0 %1981
  %1983 = vrot.lane.b32.xlu0 %v1382, 64
  %v1984 = vpop.permute.xlu0 %1983
  %1985 = vrot.lane.b32.xlu0 %v1383, 64
  %v1986 = vpop.permute.xlu0 %1985
  %1987 = vrot.lane.b32.xlu0 %v1384, 64
  %v1988 = vpop.permute.xlu0 %1987
  %1989 = vrot.lane.b32.xlu0 %v1385, 64
  %v1990 = vpop.permute.xlu0 %1989
  %1991 = vrot.lane.b32.xlu0 %v1386, 64
  %v1992 = vpop.permute.xlu0 %1991
  %1993 = vrot.lane.b32.xlu0 %v1387, 64
  %v1994 = vpop.permute.xlu0 %1993
  %1995 = vrot.lane.b32.xlu0 %v1388, 64
  %v1996 = vpop.permute.xlu0 %1995
  %1997 = vrot.lane.b32.xlu0 %v1389, 64
  %v1998 = vpop.permute.xlu0 %1997
  %1999 = vrot.lane.b32.xlu0 %v1390, 64
  %v2000 = vpop.permute.xlu0 %1999
  %2001 = vrot.lane.b32.xlu0 %v1391, 64
  %v2002 = vpop.permute.xlu0 %2001
  %2003 = vrot.lane.b32.xlu0 %v1392, 64
  %v2004 = vpop.permute.xlu0 %2003
  %2005 = vrot.lane.b32.xlu0 %v1393, 64
  %v2006 = vpop.permute.xlu0 %2005
  %2007 = vrot.lane.b32.xlu0 %v1394, 64
  %v2008 = vpop.permute.xlu0 %2007
  %2009 = vrot.lane.b32.xlu0 %v1395, 64
  %v2010 = vpop.permute.xlu0 %2009
  %2011 = vrot.lane.b32.xlu0 %v1396, 64
  %v2012 = vpop.permute.xlu0 %2011
  %2013 = vrot.lane.b32.xlu0 %v1397, 64
  %v2014 = vpop.permute.xlu0 %2013
  %2015 = vrot.lane.b32.xlu0 %v1398, 64
  %v2016 = vpop.permute.xlu0 %2015
  %2017 = vrot.lane.b32.xlu0 %v1399, 64
  %v2018 = vpop.permute.xlu0 %2017
  %2019 = vrot.lane.b32.xlu0 %v1400, 64
  %v2020 = vpop.permute.xlu0 %2019
  %2021 = vrot.lane.b32.xlu0 %v1401, 64
  %v2022 = vpop.permute.xlu0 %2021
  %2023 = vrot.lane.b32.xlu0 %v1402, 64
  %v2024 = vpop.permute.xlu0 %2023
  %2025 = vrot.lane.b32.xlu0 %v1403, 64
  %v2026 = vpop.permute.xlu0 %2025
  %2027 = vrot.lane.b32.xlu0 %v1404, 64
  %v2028 = vpop.permute.xlu0 %2027
  %2029 = vrot.lane.b32.xlu0 %v1405, 64
  %v2030 = vpop.permute.xlu0 %2029
  %2031 = vrot.lane.b32.xlu0 %v1406, 64
  %v2032 = vpop.permute.xlu0 %2031
  %2033 = vrot.lane.b32.xlu0 %v1407, 64
  %v2034 = vpop.permute.xlu0 %2033
  %2035 = vrot.lane.b32.xlu0 %v1408, 64
  %v2036 = vpop.permute.xlu0 %2035
  %2037 = vrot.lane.b32.xlu0 %v1409, 64
  %v2038 = vpop.permute.xlu0 %2037
  %2039 = vrot.lane.b32.xlu0 %v1410, 64
  %v2040 = vpop.permute.xlu0 %2039
  %2041 = vrot.lane.b32.xlu0 %v1411, 64
  %v2042 = vpop.permute.xlu0 %2041
  %2043 = vrot.lane.b32.xlu0 %v1412, 64
  %v2044 = vpop.permute.xlu0 %2043
  %2045 = vrot.lane.b32.xlu0 %v1413, 64
  %v2046 = vpop.permute.xlu0 %2045
  %2047 = vrot.lane.b32.xlu0 %v1414, 64
  %v2048 = vpop.permute.xlu0 %2047
  %2049 = vrot.lane.b32.xlu0 %v1415, 64
  %v2050 = vpop.permute.xlu0 %2049
  %2051 = vrot.lane.b32.xlu0 %v1416, 64
  %v2052 = vpop.permute.xlu0 %2051
  %2053 = vrot.lane.b32.xlu0 %v1417, 64
  %v2054 = vpop.permute.xlu0 %2053
  %2055 = vrot.lane.b32.xlu0 %v1418, 64
  %v2056 = vpop.permute.xlu0 %2055
  %2057 = vrot.lane.b32.xlu0 %v1419, 64
  %v2058 = vpop.permute.xlu0 %2057
  %2059 = vrot.lane.b32.xlu0 %v1420, 64
  %v2060 = vpop.permute.xlu0 %2059
  %2061 = vrot.lane.b32.xlu0 %v1421, 64
  %v2062 = vpop.permute.xlu0 %2061
  %2063 = vrot.lane.b32.xlu0 %v1422, 64
  %v2064 = vpop.permute.xlu0 %2063
  %2065 = vrot.lane.b32.xlu0 %v1423, 64
  %v2066 = vpop.permute.xlu0 %2065
  %2067 = vrot.lane.b32.xlu0 %v1424, 64
  %v2068 = vpop.permute.xlu0 %2067
  %2069 = vrot.lane.b32.xlu0 %v1425, 64
  %v2070 = vpop.permute.xlu0 %2069
  %2071 = vrot.lane.b32.xlu0 %v1426, 64
  %v2072 = vpop.permute.xlu0 %2071
  %2073 = vrot.lane.b32.xlu0 %v1427, 64
  %v2074 = vpop.permute.xlu0 %2073
  %2075 = vrot.lane.b32.xlu0 %v1428, 64
  %v2076 = vpop.permute.xlu0 %2075
  %2077 = vrot.lane.b32.xlu0 %v1429, 64
  %v2078 = vpop.permute.xlu0 %2077
  %2079 = vrot.lane.b32.xlu0 %v1430, 64
  %v2080 = vpop.permute.xlu0 %2079
  %2081 = vrot.lane.b32.xlu0 %v1431, 64
  %v2082 = vpop.permute.xlu0 %2081
  %2083 = vrot.lane.b32.xlu0 %v1432, 64
  %v2084 = vpop.permute.xlu0 %2083
  %2085 = vrot.lane.b32.xlu0 %v1433, 64
  %v2086 = vpop.permute.xlu0 %2085
  %2087 = vrot.lane.b32.xlu0 %v1434, 64
  %v2088 = vpop.permute.xlu0 %2087
  %2089 = vrot.lane.b32.xlu0 %v1435, 64
  %v2090 = vpop.permute.xlu0 %2089
  %2091 = vrot.lane.b32.xlu0 %v1436, 64
  %v2092 = vpop.permute.xlu0 %2091
  %2093 = vrot.lane.b32.xlu0 %v1437, 64
  %v2094 = vpop.permute.xlu0 %2093
  %2095 = vrot.lane.b32.xlu0 %v1438, 64
  %v2096 = vpop.permute.xlu0 %2095
  %2097 = vrot.lane.b32.xlu0 %v1439, 64
  %v2098 = vpop.permute.xlu0 %2097
  %2099 = vrot.lane.b32.xlu0 %v1440, 64
  %v2100 = vpop.permute.xlu0 %2099
  %2101 = vrot.lane.b32.xlu0 %v1441, 64
  %v2102 = vpop.permute.xlu0 %2101
  %2103 = vrot.lane.b32.xlu0 %v1442, 64
  %v2104 = vpop.permute.xlu0 %2103
  %2105 = vrot.lane.b32.xlu0 %v1443, 64
  %v2106 = vpop.permute.xlu0 %2105
  %2107 = vrot.lane.b32.xlu0 %v1444, 64
  %v2108 = vpop.permute.xlu0 %2107
  %2109 = vrot.lane.b32.xlu0 %v1445, 64
  %v2110 = vpop.permute.xlu0 %2109
  %2111 = vrot.lane.b32.xlu0 %v1446, 64
  %v2112 = vpop.permute.xlu0 %2111
  %2113 = vrot.lane.b32.xlu0 %v1447, 64
  %v2114 = vpop.permute.xlu0 %2113
  %2115 = vrot.lane.b32.xlu0 %v1448, 64
  %v2116 = vpop.permute.xlu0 %2115
  %2117 = vrot.lane.b32.xlu0 %v1449, 64
  %v2118 = vpop.permute.xlu0 %2117
  %2119 = vrot.lane.b32.xlu0 %v1450, 64
  %v2120 = vpop.permute.xlu0 %2119
  %2121 = vrot.lane.b32.xlu0 %v1451, 64
  %v2122 = vpop.permute.xlu0 %2121
  %2123 = vrot.lane.b32.xlu0 %v1452, 64
  %v2124 = vpop.permute.xlu0 %2123
  %2125 = vrot.lane.b32.xlu0 %v1453, 64
  %v2126 = vpop.permute.xlu0 %2125
  %2127 = vrot.lane.b32.xlu0 %v1454, 64
  %v2128 = vpop.permute.xlu0 %2127
  %2129 = vrot.lane.b32.xlu0 %v1455, 64
  %v2130 = vpop.permute.xlu0 %2129
  %2131 = vrot.lane.b32.xlu0 %v1456, 64
  %v2132 = vpop.permute.xlu0 %2131
  %2133 = vrot.lane.b32.xlu0 %v1457, 64
  %v2134 = vpop.permute.xlu0 %2133
  %2135 = vrot.lane.b32.xlu0 %v1458, 64
  %v2136 = vpop.permute.xlu0 %2135
  %2137 = vrot.lane.b32.xlu0 %v1459, 64
  %v2138 = vpop.permute.xlu0 %2137
  %2139 = vrot.lane.b32.xlu0 %v1460, 64
  %v2140 = vpop.permute.xlu0 %2139
  %2141 = vrot.lane.b32.xlu0 %v1461, 64
  %v2142 = vpop.permute.xlu0 %2141
  %v2143 = vsel %vm535, %v1936, %v1938
  %v2144 = vsel %vm535, %v1938, %v1940
  %v2145 = vsel %vm535, %v1940, %v1942
  %v2146 = vsel %vm535, %v1942, %v1944
  %v2147 = vsel %vm535, %v1944, %v1946
  %v2148 = vsel %vm535, %v1946, %v1948
  %v2149 = vsel %vm535, %v1948, %v1950
  %v2150 = vsel %vm535, %v1950, %v1952
  %v2151 = vsel %vm535, %v1952, %v1954
  %v2152 = vsel %vm535, %v1954, %v1956
  %v2153 = vsel %vm535, %v1956, %v1958
  %v2154 = vsel %vm535, %v1958, %v1960
  %v2155 = vsel %vm535, %v1962, %v1964
  %v2156 = vsel %vm535, %v1964, %v1966
  %v2157 = vsel %vm535, %v1966, %v1968
  %v2158 = vsel %vm535, %v1968, %v1970
  %v2159 = vsel %vm535, %v1970, %v1972
  %v2160 = vsel %vm535, %v1972, %v1974
  %v2161 = vsel %vm535, %v1974, %v1976
  %v2162 = vsel %vm535, %v1976, %v1978
  %v2163 = vsel %vm535, %v1978, %v1980
  %v2164 = vsel %vm535, %v1980, %v1982
  %v2165 = vsel %vm535, %v1982, %v1984
  %v2166 = vsel %vm535, %v1984, %v1986
  %v2167 = vsel %vm535, %v1988, %v1990
  %v2168 = vsel %vm535, %v1990, %v1992
  %v2169 = vsel %vm535, %v1992, %v1994
  %v2170 = vsel %vm535, %v1994, %v1996
  %v2171 = vsel %vm535, %v1996, %v1998
  %v2172 = vsel %vm535, %v1998, %v2000
  %v2173 = vsel %vm535, %v2000, %v2002
  %v2174 = vsel %vm535, %v2002, %v2004
  %v2175 = vsel %vm535, %v2004, %v2006
  %v2176 = vsel %vm535, %v2006, %v2008
  %v2177 = vsel %vm535, %v2008, %v2010
  %v2178 = vsel %vm535, %v2010, %v2012
  %v2179 = vsel %vm535, %v2014, %v2016
  %v2180 = vsel %vm535, %v2016, %v2018
  %v2181 = vsel %vm535, %v2018, %v2020
  %v2182 = vsel %vm535, %v2020, %v2022
  %v2183 = vsel %vm535, %v2022, %v2024
  %v2184 = vsel %vm535, %v2024, %v2026
  %v2185 = vsel %vm535, %v2026, %v2028
  %v2186 = vsel %vm535, %v2028, %v2030
  %v2187 = vsel %vm535, %v2030, %v2032
  %v2188 = vsel %vm535, %v2032, %v2034
  %v2189 = vsel %vm535, %v2034, %v2036
  %v2190 = vsel %vm535, %v2036, %v2038
  %v2191 = vsel %vm535, %v2040, %v2042
  %v2192 = vsel %vm535, %v2042, %v2044
  %v2193 = vsel %vm535, %v2044, %v2046
  %v2194 = vsel %vm535, %v2046, %v2048
  %v2195 = vsel %vm535, %v2048, %v2050
  %v2196 = vsel %vm535, %v2050, %v2052
  %v2197 = vsel %vm535, %v2052, %v2054
  %v2198 = vsel %vm535, %v2054, %v2056
  %v2199 = vsel %vm535, %v2056, %v2058
  %v2200 = vsel %vm535, %v2058, %v2060
  %v2201 = vsel %vm535, %v2060, %v2062
  %v2202 = vsel %vm535, %v2062, %v2064
  %v2203 = vsel %vm535, %v2066, %v2068
  %v2204 = vsel %vm535, %v2068, %v2070
  %v2205 = vsel %vm535, %v2070, %v2072
  %v2206 = vsel %vm535, %v2072, %v2074
  %v2207 = vsel %vm535, %v2074, %v2076
  %v2208 = vsel %vm535, %v2076, %v2078
  %v2209 = vsel %vm535, %v2078, %v2080
  %v2210 = vsel %vm535, %v2080, %v2082
  %v2211 = vsel %vm535, %v2082, %v2084
  %v2212 = vsel %vm535, %v2084, %v2086
  %v2213 = vsel %vm535, %v2086, %v2088
  %v2214 = vsel %vm535, %v2088, %v2090
  %v2215 = vsel %vm535, %v2092, %v2094
  %v2216 = vsel %vm535, %v2094, %v2096
  %v2217 = vsel %vm535, %v2096, %v2098
  %v2218 = vsel %vm535, %v2098, %v2100
  %v2219 = vsel %vm535, %v2100, %v2102
  %v2220 = vsel %vm535, %v2102, %v2104
  %v2221 = vsel %vm535, %v2104, %v2106
  %v2222 = vsel %vm535, %v2106, %v2108
  %v2223 = vsel %vm535, %v2108, %v2110
  %v2224 = vsel %vm535, %v2110, %v2112
  %v2225 = vsel %vm535, %v2112, %v2114
  %v2226 = vsel %vm535, %v2114, %v2116
  %v2227 = vsel %vm535, %v2118, %v2120
  %v2228 = vsel %vm535, %v2120, %v2122
  %v2229 = vsel %vm535, %v2122, %v2124
  %v2230 = vsel %vm535, %v2124, %v2126
  %v2231 = vsel %vm535, %v2126, %v2128
  %v2232 = vsel %vm535, %v2128, %v2130
  %v2233 = vsel %vm535, %v2130, %v2132
  %v2234 = vsel %vm535, %v2132, %v2134
  %v2235 = vsel %vm535, %v2134, %v2136
  %v2236 = vsel %vm535, %v2136, %v2138
  %v2237 = vsel %vm535, %v2138, %v2140
  %v2238 = vsel %vm535, %v2140, %v2142
  %2417 = vrot.lane.b32.xlu0 %v1749, 124
  %v2418 = vpop.permute.xlu0 %2417
  %2419 = vrot.lane.b32.xlu0 %v1750, 124
  %v2420 = vpop.permute.xlu0 %2419
  %2421 = vrot.lane.b32.xlu0 %v1751, 124
  %v2422 = vpop.permute.xlu0 %2421
  %2423 = vrot.lane.b32.xlu0 %v1752, 124
  %v2424 = vpop.permute.xlu0 %2423
  %2425 = vrot.lane.b32.xlu0 %v1753, 124
  %v2426 = vpop.permute.xlu0 %2425
  %2427 = vrot.lane.b32.xlu0 %v1754, 124
  %v2428 = vpop.permute.xlu0 %2427
  %2429 = vrot.lane.b32.xlu0 %v1755, 124
  %v2430 = vpop.permute.xlu0 %2429
  %2431 = vrot.lane.b32.xlu0 %v1756, 124
  %v2432 = vpop.permute.xlu0 %2431
  %2433 = vrot.lane.b32.xlu0 %v1757, 124
  %v2434 = vpop.permute.xlu0 %2433
  %2435 = vrot.lane.b32.xlu0 %v1758, 124
  %v2436 = vpop.permute.xlu0 %2435
  %2437 = vrot.lane.b32.xlu0 %v1759, 124
  %v2438 = vpop.permute.xlu0 %2437
  %2439 = vrot.lane.b32.xlu0 %v1760, 124
  %v2440 = vpop.permute.xlu0 %2439
  %2441 = vrot.lane.b32.xlu0 %v1761, 124
  %v2442 = vpop.permute.xlu0 %2441
  %2443 = vrot.lane.b32.xlu0 %v1762, 124
  %v2444 = vpop.permute.xlu0 %2443
  %2445 = vrot.lane.b32.xlu0 %v1763, 124
  %v2446 = vpop.permute.xlu0 %2445
  %2447 = vrot.lane.b32.xlu0 %v1764, 124
  %v2448 = vpop.permute.xlu0 %2447
  %2449 = vrot.lane.b32.xlu0 %v1765, 124
  %v2450 = vpop.permute.xlu0 %2449
  %2451 = vrot.lane.b32.xlu0 %v1766, 124
  %v2452 = vpop.permute.xlu0 %2451
  %2453 = vrot.lane.b32.xlu0 %v1767, 124
  %v2454 = vpop.permute.xlu0 %2453
  %2455 = vrot.lane.b32.xlu0 %v1768, 124
  %v2456 = vpop.permute.xlu0 %2455
  %2457 = vrot.lane.b32.xlu0 %v1769, 124
  %v2458 = vpop.permute.xlu0 %2457
  %2459 = vrot.lane.b32.xlu0 %v1770, 124
  %v2460 = vpop.permute.xlu0 %2459
  %2461 = vrot.lane.b32.xlu0 %v1771, 124
  %v2462 = vpop.permute.xlu0 %2461
  %2463 = vrot.lane.b32.xlu0 %v1772, 124
  %v2464 = vpop.permute.xlu0 %2463
  %2465 = vrot.lane.b32.xlu0 %v1773, 124
  %v2466 = vpop.permute.xlu0 %2465
  %2467 = vrot.lane.b32.xlu0 %v1774, 124
  %v2468 = vpop.permute.xlu0 %2467
  %2469 = vrot.lane.b32.xlu0 %v1775, 124
  %v2470 = vpop.permute.xlu0 %2469
  %2471 = vrot.lane.b32.xlu0 %v1776, 124
  %v2472 = vpop.permute.xlu0 %2471
  %2473 = vrot.lane.b32.xlu0 %v1777, 124
  %v2474 = vpop.permute.xlu0 %2473
  %2475 = vrot.lane.b32.xlu0 %v1778, 124
  %v2476 = vpop.permute.xlu0 %2475
  %2477 = vrot.lane.b32.xlu0 %v1779, 124
  %v2478 = vpop.permute.xlu0 %2477
  %2479 = vrot.lane.b32.xlu0 %v1780, 124
  %v2480 = vpop.permute.xlu0 %2479
  %2481 = vrot.lane.b32.xlu0 %v1781, 124
  %v2482 = vpop.permute.xlu0 %2481
  %2483 = vrot.lane.b32.xlu0 %v1782, 124
  %v2484 = vpop.permute.xlu0 %2483
  %2485 = vrot.lane.b32.xlu0 %v1783, 124
  %v2486 = vpop.permute.xlu0 %2485
  %2487 = vrot.lane.b32.xlu0 %v1784, 124
  %v2488 = vpop.permute.xlu0 %2487
  %2489 = vrot.lane.b32.xlu0 %v1785, 124
  %v2490 = vpop.permute.xlu0 %2489
  %2491 = vrot.lane.b32.xlu0 %v1786, 124
  %v2492 = vpop.permute.xlu0 %2491
  %2493 = vrot.lane.b32.xlu0 %v1787, 124
  %v2494 = vpop.permute.xlu0 %2493
  %2495 = vrot.lane.b32.xlu0 %v1788, 124
  %v2496 = vpop.permute.xlu0 %2495
  %2497 = vrot.lane.b32.xlu0 %v1789, 124
  %v2498 = vpop.permute.xlu0 %2497
  %2499 = vrot.lane.b32.xlu0 %v1790, 124
  %v2500 = vpop.permute.xlu0 %2499
  %2501 = vrot.lane.b32.xlu0 %v1791, 124
  %v2502 = vpop.permute.xlu0 %2501
  %2503 = vrot.lane.b32.xlu0 %v1792, 124
  %v2504 = vpop.permute.xlu0 %2503
  %2505 = vrot.lane.b32.xlu0 %v1793, 124
  %v2506 = vpop.permute.xlu0 %2505
  %2507 = vrot.lane.b32.xlu0 %v1794, 124
  %v2508 = vpop.permute.xlu0 %2507
  %2509 = vrot.lane.b32.xlu0 %v1795, 124
  %v2510 = vpop.permute.xlu0 %2509
  %2511 = vrot.lane.b32.xlu0 %v1796, 124
  %v2512 = vpop.permute.xlu0 %2511
  %2513 = vrot.lane.b32.xlu0 %v1797, 124
  %v2514 = vpop.permute.xlu0 %2513
  %2515 = vrot.lane.b32.xlu0 %v1798, 124
  %v2516 = vpop.permute.xlu0 %2515
  %2517 = vrot.lane.b32.xlu0 %v1799, 124
  %v2518 = vpop.permute.xlu0 %2517
  %2519 = vrot.lane.b32.xlu0 %v1800, 124
  %v2520 = vpop.permute.xlu0 %2519
  %2521 = vrot.lane.b32.xlu0 %v1801, 124
  %v2522 = vpop.permute.xlu0 %2521
  %2523 = vrot.lane.b32.xlu0 %v1802, 124
  %v2524 = vpop.permute.xlu0 %2523
  %2525 = vrot.lane.b32.xlu0 %v1803, 124
  %v2526 = vpop.permute.xlu0 %2525
  %2527 = vrot.lane.b32.xlu0 %v1804, 124
  %v2528 = vpop.permute.xlu0 %2527
  %2529 = vrot.lane.b32.xlu0 %v1805, 124
  %v2530 = vpop.permute.xlu0 %2529
  %2531 = vrot.lane.b32.xlu0 %v1806, 124
  %v2532 = vpop.permute.xlu0 %2531
  %2533 = vrot.lane.b32.xlu0 %v1807, 124
  %v2534 = vpop.permute.xlu0 %2533
  %2535 = vrot.lane.b32.xlu0 %v1808, 124
  %v2536 = vpop.permute.xlu0 %2535
  %2537 = vrot.lane.b32.xlu0 %v1809, 124
  %v2538 = vpop.permute.xlu0 %2537
  %2539 = vrot.lane.b32.xlu0 %v1810, 124
  %v2540 = vpop.permute.xlu0 %2539
  %2541 = vrot.lane.b32.xlu0 %v1811, 124
  %v2542 = vpop.permute.xlu0 %2541
  %2543 = vrot.lane.b32.xlu0 %v1812, 124
  %v2544 = vpop.permute.xlu0 %2543
  %2545 = vrot.lane.b32.xlu0 %v1813, 124
  %v2546 = vpop.permute.xlu0 %2545
  %2547 = vrot.lane.b32.xlu0 %v1814, 124
  %v2548 = vpop.permute.xlu0 %2547
  %2549 = vrot.lane.b32.xlu0 %v1815, 124
  %v2550 = vpop.permute.xlu0 %2549
  %2551 = vrot.lane.b32.xlu0 %v1816, 124
  %v2552 = vpop.permute.xlu0 %2551
  %2553 = vrot.lane.b32.xlu0 %v1817, 124
  %v2554 = vpop.permute.xlu0 %2553
  %2555 = vrot.lane.b32.xlu0 %v1818, 124
  %v2556 = vpop.permute.xlu0 %2555
  %2557 = vrot.lane.b32.xlu0 %v1819, 124
  %v2558 = vpop.permute.xlu0 %2557
  %2559 = vrot.lane.b32.xlu0 %v1820, 124
  %v2560 = vpop.permute.xlu0 %2559
  %2561 = vrot.lane.b32.xlu0 %v1821, 124
  %v2562 = vpop.permute.xlu0 %2561
  %2563 = vrot.lane.b32.xlu0 %v1822, 124
  %v2564 = vpop.permute.xlu0 %2563
  %2565 = vrot.lane.b32.xlu0 %v1823, 124
  %v2566 = vpop.permute.xlu0 %2565
  %2567 = vrot.lane.b32.xlu0 %v1824, 124
  %v2568 = vpop.permute.xlu0 %2567
  %2569 = vrot.lane.b32.xlu0 %v1825, 124
  %v2570 = vpop.permute.xlu0 %2569
  %2571 = vrot.lane.b32.xlu0 %v1826, 124
  %v2572 = vpop.permute.xlu0 %2571
  %2573 = vrot.lane.b32.xlu0 %v1827, 124
  %v2574 = vpop.permute.xlu0 %2573
  %2575 = vrot.lane.b32.xlu0 %v1828, 124
  %v2576 = vpop.permute.xlu0 %2575
  %2577 = vrot.lane.b32.xlu0 %v1829, 124
  %v2578 = vpop.permute.xlu0 %2577
  %2579 = vrot.lane.b32.xlu0 %v1830, 124
  %v2580 = vpop.permute.xlu0 %2579
  %vm2581 = vcmask 1014784
  %v2582 = vsel %vm2581, %v2418, %v2420
  %v2583 = vsel %vm2581, %v2420, %v2422
  %v2584 = vsel %vm2581, %v2422, %v2424
  %v2585 = vsel %vm2581, %v2424, %v2426
  %v2586 = vsel %vm2581, %v2426, %v2428
  %v2587 = vsel %vm2581, %v2428, %v2430
  %v2588 = vsel %vm2581, %v2430, %v2432
  %v2589 = vsel %vm2581, %v2432, %v2434
  %v2590 = vsel %vm2581, %v2434, %v2436
  %v2591 = vsel %vm2581, %v2436, %v2438
  %v2592 = vsel %vm2581, %v2438, %v2440
  %v2593 = vsel %vm2581, %v2440, %v2442
  %v2594 = vsel %vm2581, %v2444, %v2446
  %v2595 = vsel %vm2581, %v2446, %v2448
  %v2596 = vsel %vm2581, %v2448, %v2450
  %v2597 = vsel %vm2581, %v2450, %v2452
  %v2598 = vsel %vm2581, %v2452, %v2454
  %v2599 = vsel %vm2581, %v2454, %v2456
  %v2600 = vsel %vm2581, %v2456, %v2458
  %v2601 = vsel %vm2581, %v2458, %v2460
  %v2602 = vsel %vm2581, %v2460, %v2462
  %v2603 = vsel %vm2581, %v2462, %v2464
  %v2604 = vsel %vm2581, %v2464, %v2466
  %v2605 = vsel %vm2581, %v2466, %v2468
  %v2606 = vsel %vm2581, %v2470, %v2472
  %v2607 = vsel %vm2581, %v2472, %v2474
  %v2608 = vsel %vm2581, %v2474, %v2476
  %v2609 = vsel %vm2581, %v2476, %v2478
  %v2610 = vsel %vm2581, %v2478, %v2480
  %v2611 = vsel %vm2581, %v2480, %v2482
  %v2612 = vsel %vm2581, %v2482, %v2484
  %v2613 = vsel %vm2581, %v2484, %v2486
  %v2614 = vsel %vm2581, %v2486, %v2488
  %v2615 = vsel %vm2581, %v2488, %v2490
  %v2616 = vsel %vm2581, %v2490, %v2492
  %v2617 = vsel %vm2581, %v2492, %v2494
  %v2618 = vsel %vm2581, %v2496, %v2498
  %v2619 = vsel %vm2581, %v2498, %v2500
  %v2620 = vsel %vm2581, %v2500, %v2502
  %v2621 = vsel %vm2581, %v2502, %v2504
  %v2622 = vsel %vm2581, %v2504, %v2506
  %v2623 = vsel %vm2581, %v2506, %v2508
  %v2624 = vsel %vm2581, %v2508, %v2510
  %v2625 = vsel %vm2581, %v2510, %v2512
  %v2626 = vsel %vm2581, %v2512, %v2514
  %v2627 = vsel %vm2581, %v2514, %v2516
  %v2628 = vsel %vm2581, %v2516, %v2518
  %v2629 = vsel %vm2581, %v2518, %v2520
  %v2630 = vsel %vm2581, %v2522, %v2524
  %v2631 = vsel %vm2581, %v2524, %v2526
  %v2632 = vsel %vm2581, %v2526, %v2528
  %v2633 = vsel %vm2581, %v2528, %v2530
  %v2634 = vsel %vm2581, %v2530, %v2532
  %v2635 = vsel %vm2581, %v2532, %v2534
  %v2636 = vsel %vm2581, %v2534, %v2536
  %v2637 = vsel %vm2581, %v2536, %v2538
  %v2638 = vsel %vm2581, %v2538, %v2540
  %v2639 = vsel %vm2581, %v2540, %v2542
  %v2640 = vsel %vm2581, %v2542, %v2544
  %v2641 = vsel %vm2581, %v2544, %v2546
  %v2642 = vsel %vm2581, %v2492, %v2548
  %v2643 = vsel %vm2581, %v2548, %v2550
  %v2644 = vsel %vm2581, %v2550, %v2552
  %v2645 = vsel %vm2581, %v2552, %v2554
  %v2646 = vsel %vm2581, %v2556, %v2558
  %v2647 = vsel %vm2581, %v2558, %v2560
  %v2648 = vsel %vm2581, %v2560, %v2562
  %v2649 = vsel %vm2581, %v2562, %v2564
  %v2650 = vsel %vm2581, %v2564, %v2566
  %v2651 = vsel %vm2581, %v2566, %v2568
  %v2652 = vsel %vm2581, %v2568, %v2570
  %v2653 = vsel %vm2581, %v2570, %v2572
  %v2654 = vsel %vm2581, %v2572, %v2574
  %v2655 = vsel %vm2581, %v2574, %v2576
  %v2656 = vsel %vm2581, %v2576, %v2578
  %v2657 = vsel %vm2581, %v2578, %v2580
  %v2722 = vld [vmem:[%s1] sm:$0xff]
  %v2723 = vld [vmem:[%s1 + $0x8] sm:$0xff]
  %v2724 = vld [vmem:[%s1 + $0x10] sm:$0xff]
  %v2725 = vld [vmem:[%s1 + $0x18] sm:$0xff]
  %v2726 = vld [vmem:[%s1 + $0x20] sm:$0xff]
  %v2727 = vld [vmem:[%s1 + $0x28] sm:$0xff]
  %v2728 = vld [vmem:[%s1 + $0x30] sm:$0xff]
  %v2729 = vld [vmem:[%s1 + $0x38] sm:$0xff]
  %v2730 = vld [vmem:[%s1 + $0x40] sm:$0xff]
  %v2731 = vld [vmem:[%s1 + $0x48] sm:$0xff]
  %v2732 = vld [vmem:[%s1 + $0x50] sm:$0x1]
  %v2733 = vld [vmem:[%s1 + $0x58] sm:$0x1]
  %vm2734 = vcmask 433152
  %v2736 = vsel %vm2734, %v2723, 0
  %v2739 = vsel %vm2734, %v2725, 0
  %v2742 = vsel %vm2734, %v2727, 0
  %v2745 = vsel %vm2734, %v2729, 0
  %v2748 = vsel %vm2734, %v2731, 0
  %v2751 = vsel %vm2734, %v2733, 0
  %vm2753 = vcmask 1044480
  %v2754 = vsel %vm2753, %v2646, 0
  %v2756 = vsel %vm2753, %v2647, 0
  %v2758 = vsel %vm2753, %v2648, 0
  %v2760 = vsel %vm2753, %v2649, 0
  %v2762 = vsel %vm2753, %v2650, 0
  %v2764 = vsel %vm2753, %v2651, 0
  %v2766 = vsel %vm2753, %v2652, 0
  %v2768 = vsel %vm2753, %v2653, 0
  %v2770 = vsel %vm2753, %v2654, 0
  %v2772 = vsel %vm2753, %v2655, 0
  %v2774 = vsel %vm2753, %v2656, 0
  %v2776 = vsel %vm2753, %v2657, 0
  %2778 = vmatprep.subr.mxu0 %v2228
  %2779 = vmatpush1.msra.mxu0 %v2227
  %2780 = vmatprep.subr.mxu0 %v2216
  %2781 = vmatpush1.msra.mxu0 %v2215
  %2782 = vmatprep.subr.mxu0 %v2204
  %2783 = vmatpush1.msra.mxu0 %v2203
  %2784 = vmatprep.subr.mxu0 %v2192
  %2785 = vmatpush1.msra.mxu0 %v2191
  %2786 = vmatprep.subr.mxu0 %v2180
  %2787 = vmatpush1.msra.mxu0 %v2179
  %2788 = vmatprep.subr.mxu0 %v2168
  %2789 = vmatpush1.msra.mxu0 %v2167
  %2790 = vmatprep.subr.mxu0 %v2156
  %2791 = vmatpush1.msra.mxu0 %v2155
  %2792 = vmatprep.subr.mxu0 %v2144
  %2793 = vmatpush1.msra.mxu0 %v2143
  %2794 = vmatprep.subr.mxu0 %v809
  %2795 = vmatpush1.msra.mxu0 %v808
  %2796 = vmatprep.subr.mxu0 %v797
  %2797 = vmatpush1.msra.mxu0 %v796
  %2798 = vmatprep.subr.mxu0 %v785
  %2799 = vmatpush1.msra.mxu0 %v784
  %2800 = vmatprep.subr.mxu0 %v773
  %2801 = vmatpush1.msra.mxu0 %v772
  %2802 = vmatprep.subr.mxu0 %v761
  %2803 = vmatpush1.msra.mxu0 %v760
  %2804 = vmatprep.subr.mxu0 %v749
  %2805 = vmatpush1.msra.mxu0 %v748
  %2806 = vmatprep.subr.mxu0 %v737
  %2807 = vmatpush1.msra.mxu0 %v736
  %2808 = vmatprep.subr.mxu0 %v725
  %2809 = vmatpush1.msra.mxu0 %v724
  %2810 = vmatprep.subr.mxu0 0.0
  %2811 = vmatpush2.msra.mxu0 0.0
  %2812 = vmatprep.subr.mxu0 0.0
  %2813 = vmatpush2.msra.mxu0 0.0
  %2814 = vmatprep.subr.mxu0 0.0
  %2815 = vmatpush2.msra.mxu0 0.0
  %2816 = vmatprep.subr.mxu0 0.0
  %2817 = vmatpush2.msra.mxu0 0.0
  %2818 = vmatprep.subr.mxu0 0.0
  %2819 = vmatpush2.msra.mxu0 0.0
  %2820 = vmatprep.subr.mxu0 0.0
  %2821 = vmatpush2.msra.mxu0 0.0
  %2822 = vmatprep.subr.mxu0 0.0
  %2823 = vmatpush2.msra.mxu0 0.0
  %2824 = vmatprep.subr.mxu0 0.0
  %2825 = vmatpush2.msra.mxu0 0.0
  %2826 = vmatprep.subr.mxu0 0.0
  %2827 = vmatpush2.msra.mxu0 0.0
  %2828 = vmatprep.subr.mxu0 %v2756
  %2829 = vmatpush2.msra.mxu0 %v2754
  %2830 = vmatprep.subr.mxu0 %v2610
  %2831 = vmatpush2.msra.mxu0 %v2609
  %2832 = vmatprep.subr.mxu0 %v2631
  %2833 = vmatpush2.msra.mxu0 %v2630
  %2834 = vmatprep.subr.mxu0 %v2619
  %2835 = vmatpush2.msra.mxu0 %v2618
  %2836 = vmatprep.subr.mxu0 %v2607
  %2837 = vmatpush2.msra.mxu0 %v2606
  %2838 = vmatprep.subr.mxu0 %v2595
  %2839 = vmatpush2.msra.mxu0 %v2594
  %2840 = vmatprep.subr.mxu0 %v2583
  %2841 = vmatpush2.msra.mxu0 %v2582
  %2842 = vmatprep.mubr.f32.mxu0 %v2736
  %2843 = vmatmul.mubr.f32.gmra.mxu0 %v2722
  %v2844 = vpop.f32.mrf.mxu0
  %v2845 = vadd.f32 0.0, %v2844
  %v2846 = vpop.f32.mrf.mxu0
  %v2847 = vadd.f32 0.0, %v2846
  %2848 = vmatprep.mubr.f32.mxu0 %v2739
  %2849 = vmatmul.mubr.f32.gmra.mxu0 %v2724
  %v2850 = vpop.f32.mrf.mxu0
  %v2851 = vadd.f32 0.0, %v2850
  %v2852 = vpop.f32.mrf.mxu0
  %v2853 = vadd.f32 0.0, %v2852
  %2854 = vmatprep.mubr.f32.mxu0 %v2742
  %2855 = vmatmul.mubr.f32.gmra.mxu0 %v2726
  %v2856 = vpop.f32.mrf.mxu0
  %v2857 = vadd.f32 0.0, %v2856
  %v2858 = vpop.f32.mrf.mxu0
  %v2859 = vadd.f32 0.0, %v2858
  %2860 = vmatprep.mubr.f32.mxu0 %v2745
  %2861 = vmatmul.mubr.f32.gmra.mxu0 %v2728
  %v2862 = vpop.f32.mrf.mxu0
  %v2863 = vadd.f32 0.0, %v2862
  %v2864 = vpop.f32.mrf.mxu0
  %v2865 = vadd.f32 0.0, %v2864
  %2866 = vmatprep.mubr.f32.mxu0 %v2748
  %2867 = vmatmul.mubr.f32.gmra.mxu0 %v2730
  %v2868 = vpop.f32.mrf.mxu0
  %v2869 = vadd.f32 0.0, %v2868
  %v2870 = vpop.f32.mrf.mxu0
  %v2871 = vadd.f32 0.0, %v2870
  %2872 = vmatprep.mubr.f32.mxu0 %v2751
  %2873 = vmatmul.mubr.f32.gmra.mxu0 %v2732
  %v2874 = vpop.f32.mrf.mxu0
  %v2875 = vadd.f32 0.0, %v2874
  %v2876 = vpop.f32.mrf.mxu0
  %v2877 = vadd.f32 0.0, %v2876
  %2878 = vdwg.mxu0
  %2879 = vmatprep.subr.mxu0 %v2230
  %2880 = vmatpush1.msra.mxu0 %v2229
  %2881 = vmatprep.subr.mxu0 %v2218
  %2882 = vmatpush1.msra.mxu0 %v2217
  %2883 = vmatprep.subr.mxu0 %v2206
  %2884 = vmatpush1.msra.mxu0 %v2205
  %2885 = vmatprep.subr.mxu0 %v2194
  %2886 = vmatpush1.msra.mxu0 %v2193
  %2887 = vmatprep.subr.mxu0 %v2182
  %2888 = vmatpush1.msra.mxu0 %v2181
  %2889 = vmatprep.subr.mxu0 %v2170
  %2890 = vmatpush1.msra.mxu0 %v2169
  %2891 = vmatprep.subr.mxu0 %v2158
  %2892 = vmatpush1.msra.mxu0 %v2157
  %2893 = vmatprep.subr.mxu0 %v2146
  %2894 = vmatpush1.msra.mxu0 %v2145
  %2895 = vmatprep.subr.mxu0 %v811
  %2896 = vmatpush1.msra.mxu0 %v810
  %2897 = vmatprep.subr.mxu0 %v799
  %2898 = vmatpush1.msra.mxu0 %v798
  %2899 = vmatprep.subr.mxu0 %v787
  %2900 = vmatpush1.msra.mxu0 %v786
  %2901 = vmatprep.subr.mxu0 %v775
  %2902 = vmatpush1.msra.mxu0 %v774
  %2903 = vmatprep.subr.mxu0 %v763
  %2904 = vmatpush1.msra.mxu0 %v762
  %2905 = vmatprep.subr.mxu0 %v751
  %2906 = vmatpush1.msra.mxu0 %v750
  %2907 = vmatprep.subr.mxu0 %v739
  %2908 = vmatpush1.msra.mxu0 %v738
  %2909 = vmatprep.subr.mxu0 %v727
  %2910 = vmatpush1.msra.mxu0 %v726
  %2911 = vmatprep.subr.mxu0 0.0
  %2912 = vmatpush2.msra.mxu0 0.0
  %2913 = vmatprep.subr.mxu0 0.0
  %2914 = vmatpush2.msra.mxu0 0.0
  %2915 = vmatprep.subr.mxu0 0.0
  %2916 = vmatpush2.msra.mxu0 0.0
  %2917 = vmatprep.subr.mxu0 0.0
  %2918 = vmatpush2.msra.mxu0 0.0
  %2919 = vmatprep.subr.mxu0 0.0
  %2920 = vmatpush2.msra.mxu0 0.0
  %2921 = vmatprep.subr.mxu0 0.0
  %2922 = vmatpush2.msra.mxu0 0.0
  %2923 = vmatprep.subr.mxu0 0.0
  %2924 = vmatpush2.msra.mxu0 0.0
  %2925 = vmatprep.subr.mxu0 0.0
  %2926 = vmatpush2.msra.mxu0 0.0
  %2927 = vmatprep.subr.mxu0 0.0
  %2928 = vmatpush2.msra.mxu0 0.0
  %2929 = vmatprep.subr.mxu0 %v2760
  %2930 = vmatpush2.msra.mxu0 %v2758
  %2931 = vmatprep.subr.mxu0 %v2612
  %2932 = vmatpush2.msra.mxu0 %v2611
  %2933 = vmatprep.subr.mxu0 %v2633
  %2934 = vmatpush2.msra.mxu0 %v2632
  %2935 = vmatprep.subr.mxu0 %v2621
  %2936 = vmatpush2.msra.mxu0 %v2620
  %2937 = vmatprep.subr.mxu0 %v2609
  %2938 = vmatpush2.msra.mxu0 %v2608
  %2939 = vmatprep.subr.mxu0 %v2597
  %2940 = vmatpush2.msra.mxu0 %v2596
  %2941 = vmatprep.subr.mxu0 %v2585
  %2942 = vmatpush2.msra.mxu0 %v2584
  %2943 = vmatprep.mubr.f32.mxu0 %v2736
  %2944 = vmatmul.mubr.f32.gmra.mxu0 %v2722
  %v2945 = vpop.f32.mrf.mxu0
  %v2946 = vadd.f32 0.0, %v2945
  %v2947 = vpop.f32.mrf.mxu0
  %v2948 = vadd.f32 0.0, %v2947
  %2949 = vmatprep.mubr.f32.mxu0 %v2739
  %2950 = vmatmul.mubr.f32.gmra.mxu0 %v2724
  %v2951 = vpop.f32.mrf.mxu0
  %v2952 = vadd.f32 0.0, %v2951
  %v2953 = vpop.f32.mrf.mxu0
  %v2954 = vadd.f32 0.0, %v2953
  %2955 = vmatprep.mubr.f32.mxu0 %v2742
  %2956 = vmatmul.mubr.f32.gmra.mxu0 %v2726
  %v2957 = vpop.f32.mrf.mxu0
  %v2958 = vadd.f32 0.0, %v2957
  %v2959 = vpop.f32.mrf.mxu0
  %v2960 = vadd.f32 0.0, %v2959
  %2961 = vmatprep.mubr.f32.mxu0 %v2745
  %2962 = vmatmul.mubr.f32.gmra.mxu0 %v2728
  %v2963 = vpop.f32.mrf.mxu0
  %v2964 = vadd.f32 0.0, %v2963
  %v2965 = vpop.f32.mrf.mxu0
  %v2966 = vadd.f32 0.0, %v2965
  %2967 = vmatprep.mubr.f32.mxu0 %v2748
  %2968 = vmatmul.mubr.f32.gmra.mxu0 %v2730
  %v2969 = vpop.f32.mrf.mxu0
  %v2970 = vadd.f32 0.0, %v2969
  %v2971 = vpop.f32.mrf.mxu0
  %v2972 = vadd.f32 0.0, %v2971
  %2973 = vmatprep.mubr.f32.mxu0 %v2751
  %2974 = vmatmul.mubr.f32.gmra.mxu0 %v2732
  %v2975 = vpop.f32.mrf.mxu0
  %v2976 = vadd.f32 0.0, %v2975
  %v2977 = vpop.f32.mrf.mxu0
  %v2978 = vadd.f32 0.0, %v2977
  %2979 = vdwg.mxu0
  %2980 = vmatprep.subr.mxu0 %v2232
  %2981 = vmatpush1.msra.mxu0 %v2231
  %2982 = vmatprep.subr.mxu0 %v2220
  %2983 = vmatpush1.msra.mxu0 %v2219
  %2984 = vmatprep.subr.mxu0 %v2208
  %2985 = vmatpush1.msra.mxu0 %v2207
  %2986 = vmatprep.subr.mxu0 %v2196
  %2987 = vmatpush1.msra.mxu0 %v2195
  %2988 = vmatprep.subr.mxu0 %v2184
  %2989 = vmatpush1.msra.mxu0 %v2183
  %2990 = vmatprep.subr.mxu0 %v2172
  %2991 = vmatpush1.msra.mxu0 %v2171
  %2992 = vmatprep.subr.mxu0 %v2160
  %2993 = vmatpush1.msra.mxu0 %v2159
  %2994 = vmatprep.subr.mxu0 %v2148
  %2995 = vmatpush1.msra.mxu0 %v2147
  %2996 = vmatprep.subr.mxu0 %v813
  %2997 = vmatpush1.msra.mxu0 %v812
  %2998 = vmatprep.subr.mxu0 %v801
  %2999 = vmatpush1.msra.mxu0 %v800
  %3000 = vmatprep.subr.mxu0 %v789
  %3001 = vmatpush1.msra.mxu0 %v788
  %3002 = vmatprep.subr.mxu0 %v777
  %3003 = vmatpush1.msra.mxu0 %v776
  %3004 = vmatprep.subr.mxu0 %v765
  %3005 = vmatpush1.msra.mxu0 %v764
  %3006 = vmatprep.subr.mxu0 %v753
  %3007 = vmatpush1.msra.mxu0 %v752
  %3008 = vmatprep.subr.mxu0 %v741
  %3009 = vmatpush1.msra.mxu0 %v740
  %3010 = vmatprep.subr.mxu0 %v729
  %3011 = vmatpush1.msra.mxu0 %v728
  %3012 = vmatprep.subr.mxu0 0.0
  %3013 = vmatpush2.msra.mxu0 0.0
  %3014 = vmatprep.subr.mxu0 0.0
  %3015 = vmatpush2.msra.mxu0 0.0
  %3016 = vmatprep.subr.mxu0 0.0
  %3017 = vmatpush2.msra.mxu0 0.0
  %3018 = vmatprep.subr.mxu0 0.0
  %3019 = vmatpush2.msra.mxu0 0.0
  %3020 = vmatprep.subr.mxu0 0.0
  %3021 = vmatpush2.msra.mxu0 0.0
  %3022 = vmatprep.subr.mxu0 0.0
  %3023 = vmatpush2.msra.mxu0 0.0
  %3024 = vmatprep.subr.mxu0 0.0
  %3025 = vmatpush2.msra.mxu0 0.0
  %3026 = vmatprep.subr.mxu0 0.0
  %3027 = vmatpush2.msra.mxu0 0.0
  %3028 = vmatprep.subr.mxu0 0.0
  %3029 = vmatpush2.msra.mxu0 0.0
  %3030 = vmatprep.subr.mxu0 %v2764
  %3031 = vmatpush2.msra.mxu0 %v2762
  %3032 = vmatprep.subr.mxu0 %v2614
  %3033 = vmatpush2.msra.mxu0 %v2613
  %3034 = vmatprep.subr.mxu0 %v2635
  %3035 = vmatpush2.msra.mxu0 %v2634
  %3036 = vmatprep.subr.mxu0 %v2623
  %3037 = vmatpush2.msra.mxu0 %v2622
  %3038 = vmatprep.subr.mxu0 %v2611
  %3039 = vmatpush2.msra.mxu0 %v2610
  %3040 = vmatprep.subr.mxu0 %v2599
  %3041 = vmatpush2.msra.mxu0 %v2598
  %3042 = vmatprep.subr.mxu0 %v2587
  %3043 = vmatpush2.msra.mxu0 %v2586
  %3044 = vmatprep.mubr.f32.mxu0 %v2736
  %3045 = vmatmul.mubr.f32.gmra.mxu0 %v2722
  %v3046 = vpop.f32.mrf.mxu0
  %v3047 = vadd.f32 0.0, %v3046
  %v3048 = vpop.f32.mrf.mxu0
  %v3049 = vadd.f32 0.0, %v3048
  %3050 = vmatprep.mubr.f32.mxu0 %v2739
  %3051 = vmatmul.mubr.f32.gmra.mxu0 %v2724
  %v3052 = vpop.f32.mrf.mxu0
  %v3053 = vadd.f32 0.0, %v3052
  %v3054 = vpop.f32.mrf.mxu0
  %v3055 = vadd.f32 0.0, %v3054
  %3056 = vmatprep.mubr.f32.mxu0 %v2742
  %3057 = vmatmul.mubr.f32.gmra.mxu0 %v2726
  %v3058 = vpop.f32.mrf.mxu0
  %v3059 = vadd.f32 0.0, %v3058
  %v3060 = vpop.f32.mrf.mxu0
  %v3061 = vadd.f32 0.0, %v3060
  %3062 = vmatprep.mubr.f32.mxu0 %v2745
  %3063 = vmatmul.mubr.f32.gmra.mxu0 %v2728
  %v3064 = vpop.f32.mrf.mxu0
  %v3065 = vadd.f32 0.0, %v3064
  %v3066 = vpop.f32.mrf.mxu0
  %v3067 = vadd.f32 0.0, %v3066
  %3068 = vmatprep.mubr.f32.mxu0 %v2748
  %3069 = vmatmul.mubr.f32.gmra.mxu0 %v2730
  %v3070 = vpop.f32.mrf.mxu0
  %v3071 = vadd.f32 0.0, %v3070
  %v3072 = vpop.f32.mrf.mxu0
  %v3073 = vadd.f32 0.0, %v3072
  %3074 = vmatprep.mubr.f32.mxu0 %v2751
  %3075 = vmatmul.mubr.f32.gmra.mxu0 %v2732
  %v3076 = vpop.f32.mrf.mxu0
  %v3077 = vadd.f32 0.0, %v3076
  %v3078 = vpop.f32.mrf.mxu0
  %v3079 = vadd.f32 0.0, %v3078
  %3080 = vdwg.mxu0
  %3081 = vmatprep.subr.mxu0 %v2234
  %3082 = vmatpush1.msra.mxu0 %v2233
  %3083 = vmatprep.subr.mxu0 %v2222
  %3084 = vmatpush1.msra.mxu0 %v2221
  %3085 = vmatprep.subr.mxu0 %v2210
  %3086 = vmatpush1.msra.mxu0 %v2209
  %3087 = vmatprep.subr.mxu0 %v2198
  %3088 = vmatpush1.msra.mxu0 %v2197
  %3089 = vmatprep.subr.mxu0 %v2186
  %3090 = vmatpush1.msra.mxu0 %v2185
  %3091 = vmatprep.subr.mxu0 %v2174
  %3092 = vmatpush1.msra.mxu0 %v2173
  %3093 = vmatprep.subr.mxu0 %v2162
  %3094 = vmatpush1.msra.mxu0 %v2161
  %3095 = vmatprep.subr.mxu0 %v2150
  %3096 = vmatpush1.msra.mxu0 %v2149
  %3097 = vmatprep.subr.mxu0 %v815
  %3098 = vmatpush1.msra.mxu0 %v814
  %3099 = vmatprep.subr.mxu0 %v803
  %3100 = vmatpush1.msra.mxu0 %v802
  %3101 = vmatprep.subr.mxu0 %v791
  %3102 = vmatpush1.msra.mxu0 %v790
  %3103 = vmatprep.subr.mxu0 %v779
  %3104 = vmatpush1.msra.mxu0 %v778
  %3105 = vmatprep.subr.mxu0 %v767
  %3106 = vmatpush1.msra.mxu0 %v766
  %3107 = vmatprep.subr.mxu0 %v755
  %3108 = vmatpush1.msra.mxu0 %v754
  %3109 = vmatprep.subr.mxu0 %v743
  %3110 = vmatpush1.msra.mxu0 %v742
  %3111 = vmatprep.subr.mxu0 %v731
  %3112 = vmatpush1.msra.mxu0 %v730
  %3113 = vmatprep.subr.mxu0 0.0
  %3114 = vmatpush2.msra.mxu0 0.0
  %3115 = vmatprep.subr.mxu0 0.0
  %3116 = vmatpush2.msra.mxu0 0.0
  %3117 = vmatprep.subr.mxu0 0.0
  %3118 = vmatpush2.msra.mxu0 0.0
  %3119 = vmatprep.subr.mxu0 0.0
  %3120 = vmatpush2.msra.mxu0 0.0
  %3121 = vmatprep.subr.mxu0 0.0
  %3122 = vmatpush2.msra.mxu0 0.0
  %3123 = vmatprep.subr.mxu0 0.0
  %3124 = vmatpush2.msra.mxu0 0.0
  %3125 = vmatprep.subr.mxu0 0.0
  %3126 = vmatpush2.msra.mxu0 0.0
  %3127 = vmatprep.subr.mxu0 0.0
  %3128 = vmatpush2.msra.mxu0 0.0
  %3129 = vmatprep.subr.mxu0 0.0
  %3130 = vmatpush2.msra.mxu0 0.0
  %3131 = vmatprep.subr.mxu0 %v2768
  %3132 = vmatpush2.msra.mxu0 %v2766
  %3133 = vmatprep.subr.mxu0 %v2616
  %3134 = vmatpush2.msra.mxu0 %v2615
  %3135 = vmatprep.subr.mxu0 %v2637
  %3136 = vmatpush2.msra.mxu0 %v2636
  %3137 = vmatprep.subr.mxu0 %v2625
  %3138 = vmatpush2.msra.mxu0 %v2624
  %3139 = vmatprep.subr.mxu0 %v2613
  %3140 = vmatpush2.msra.mxu0 %v2612
  %3141 = vmatprep.subr.mxu0 %v2601
  %3142 = vmatpush2.msra.mxu0 %v2600
  %3143 = vmatprep.subr.mxu0 %v2589
  %3144 = vmatpush2.msra.mxu0 %v2588
  %3145 = vmatprep.mubr.f32.mxu0 %v2736
  %3146 = vmatmul.mubr.f32.gmra.mxu0 %v2722
  %v3147 = vpop.f32.mrf.mxu0
  %v3148 = vadd.f32 0.0, %v3147
  %v3149 = vpop.f32.mrf.mxu0
  %v3150 = vadd.f32 0.0, %v3149
  %3151 = vmatprep.mubr.f32.mxu0 %v2739
  %3152 = vmatmul.mubr.f32.gmra.mxu0 %v2724
  %v3153 = vpop.f32.mrf.mxu0
  %v3154 = vadd.f32 0.0, %v3153
  %v3155 = vpop.f32.mrf.mxu0
  %v3156 = vadd.f32 0.0, %v3155
  %3157 = vmatprep.mubr.f32.mxu0 %v2742
  %3158 = vmatmul.mubr.f32.gmra.mxu0 %v2726
  %v3159 = vpop.f32.mrf.mxu0
  %v3160 = vadd.f32 0.0, %v3159
  %v3161 = vpop.f32.mrf.mxu0
  %v3162 = vadd.f32 0.0, %v3161
  %3163 = vmatprep.mubr.f32.mxu0 %v2745
  %3164 = vmatmul.mubr.f32.gmra.mxu0 %v2728
  %v3165 = vpop.f32.mrf.mxu0
  %v3166 = vadd.f32 0.0, %v3165
  %v3167 = vpop.f32.mrf.mxu0
  %v3168 = vadd.f32 0.0, %v3167
  %3169 = vmatprep.mubr.f32.mxu0 %v2748
  %3170 = vmatmul.mubr.f32.gmra.mxu0 %v2730
  %v3171 = vpop.f32.mrf.mxu0
  %v3172 = vadd.f32 0.0, %v3171
  %v3173 = vpop.f32.mrf.mxu0
  %v3174 = vadd.f32 0.0, %v3173
  %3175 = vmatprep.mubr.f32.mxu0 %v2751
  %3176 = vmatmul.mubr.f32.gmra.mxu0 %v2732
  %v3177 = vpop.f32.mrf.mxu0
  %v3178 = vadd.f32 0.0, %v3177
  %v3179 = vpop.f32.mrf.mxu0
  %v3180 = vadd.f32 0.0, %v3179
  %3181 = vdwg.mxu0
  %3182 = vmatprep.subr.mxu0 %v2236
  %3183 = vmatpush1.msra.mxu0 %v2235
  %3184 = vmatprep.subr.mxu0 %v2224
  %3185 = vmatpush1.msra.mxu0 %v2223
  %3186 = vmatprep.subr.mxu0 %v2212
  %3187 = vmatpush1.msra.mxu0 %v2211
  %3188 = vmatprep.subr.mxu0 %v2200
  %3189 = vmatpush1.msra.mxu0 %v2199
  %3190 = vmatprep.subr.mxu0 %v2188
  %3191 = vmatpush1.msra.mxu0 %v2187
  %3192 = vmatprep.subr.mxu0 %v2176
  %3193 = vmatpush1.msra.mxu0 %v2175
  %3194 = vmatprep.subr.mxu0 %v2164
  %3195 = vmatpush1.msra.mxu0 %v2163
  %3196 = vmatprep.subr.mxu0 %v2152
  %3197 = vmatpush1.msra.mxu0 %v2151
  %3198 = vmatprep.subr.mxu0 %v817
  %3199 = vmatpush1.msra.mxu0 %v816
  %3200 = vmatprep.subr.mxu0 %v805
  %3201 = vmatpush1.msra.mxu0 %v804
  %3202 = vmatprep.subr.mxu0 %v793
  %3203 = vmatpush1.msra.mxu0 %v792
  %3204 = vmatprep.subr.mxu0 %v781
  %3205 = vmatpush1.msra.mxu0 %v780
  %3206 = vmatprep.subr.mxu0 %v769
  %3207 = vmatpush1.msra.mxu0 %v768
  %3208 = vmatprep.subr.mxu0 %v757
  %3209 = vmatpush1.msra.mxu0 %v756
  %3210 = vmatprep.subr.mxu0 %v745
  %3211 = vmatpush1.msra.mxu0 %v744
  %3212 = vmatprep.subr.mxu0 %v733
  %3213 = vmatpush1.msra.mxu0 %v732
  %3214 = vmatprep.subr.mxu0 0.0
  %3215 = vmatpush2.msra.mxu0 0.0
  %3216 = vmatprep.subr.mxu0 0.0
  %3217 = vmatpush2.msra.mxu0 0.0
  %3218 = vmatprep.subr.mxu0 0.0
  %3219 = vmatpush2.msra.mxu0 0.0
  %3220 = vmatprep.subr.mxu0 0.0
  %3221 = vmatpush2.msra.mxu0 0.0
  %3222 = vmatprep.subr.mxu0 0.0
  %3223 = vmatpush2.msra.mxu0 0.0
  %3224 = vmatprep.subr.mxu0 0.0
  %3225 = vmatpush2.msra.mxu0 0.0
  %3226 = vmatprep.subr.mxu0 0.0
  %3227 = vmatpush2.msra.mxu0 0.0
  %3228 = vmatprep.subr.mxu0 0.0
  %3229 = vmatpush2.msra.mxu0 0.0
  %3230 = vmatprep.subr.mxu0 0.0
  %3231 = vmatpush2.msra.mxu0 0.0
  %3232 = vmatprep.subr.mxu0 %v2772
  %3233 = vmatpush2.msra.mxu0 %v2770
  %3234 = vmatprep.subr.mxu0 %v2643
  %3235 = vmatpush2.msra.mxu0 %v2642
  %3236 = vmatprep.subr.mxu0 %v2639
  %3237 = vmatpush2.msra.mxu0 %v2638
  %3238 = vmatprep.subr.mxu0 %v2627
  %3239 = vmatpush2.msra.mxu0 %v2626
  %3240 = vmatprep.subr.mxu0 %v2615
  %3241 = vmatpush2.msra.mxu0 %v2614
  %3242 = vmatprep.subr.mxu0 %v2603
  %3243 = vmatpush2.msra.mxu0 %v2602
  %3244 = vmatprep.subr.mxu0 %v2591
  %3245 = vmatpush2.msra.mxu0 %v2590
  %3246 = vmatprep.mubr.f32.mxu0 %v2736
  %3247 = vmatmul.mubr.f32.gmra.mxu0 %v2722
  %v3248 = vpop.f32.mrf.mxu0
  %v3249 = vadd.f32 0.0, %v3248
  %v3250 = vpop.f32.mrf.mxu0
  %v3251 = vadd.f32 0.0, %v3250
  %3252 = vmatprep.mubr.f32.mxu0 %v2739
  %3253 = vmatmul.mubr.f32.gmra.mxu0 %v2724
  %v3254 = vpop.f32.mrf.mxu0
  %v3255 = vadd.f32 0.0, %v3254
  %v3256 = vpop.f32.mrf.mxu0
  %v3257 = vadd.f32 0.0, %v3256
  %3258 = vmatprep.mubr.f32.mxu0 %v2742
  %3259 = vmatmul.mubr.f32.gmra.mxu0 %v2726
  %v3260 = vpop.f32.mrf.mxu0
  %v3261 = vadd.f32 0.0, %v3260
  %v3262 = vpop.f32.mrf.mxu0
  %v3263 = vadd.f32 0.0, %v3262
  %3264 = vmatprep.mubr.f32.mxu0 %v2745
  %3265 = vmatmul.mubr.f32.gmra.mxu0 %v2728
  %v3266 = vpop.f32.mrf.mxu0
  %v3267 = vadd.f32 0.0, %v3266
  %v3268 = vpop.f32.mrf.mxu0
  %v3269 = vadd.f32 0.0, %v3268
  %3270 = vmatprep.mubr.f32.mxu0 %v2748
  %3271 = vmatmul.mubr.f32.gmra.mxu0 %v2730
  %v3272 = vpop.f32.mrf.mxu0
  %v3273 = vadd.f32 0.0, %v3272
  %v3274 = vpop.f32.mrf.mxu0
  %v3275 = vadd.f32 0.0, %v3274
  %3276 = vmatprep.mubr.f32.mxu0 %v2751
  %3277 = vmatmul.mubr.f32.gmra.mxu0 %v2732
  %v3278 = vpop.f32.mrf.mxu0
  %v3279 = vadd.f32 0.0, %v3278
  %v3280 = vpop.f32.mrf.mxu0
  %v3281 = vadd.f32 0.0, %v3280
  %3282 = vdwg.mxu0
  %3283 = vmatprep.subr.mxu0 %v2238
  %3284 = vmatpush1.msra.mxu0 %v2237
  %3285 = vmatprep.subr.mxu0 %v2226
  %3286 = vmatpush1.msra.mxu0 %v2225
  %3287 = vmatprep.subr.mxu0 %v2214
  %3288 = vmatpush1.msra.mxu0 %v2213
  %3289 = vmatprep.subr.mxu0 %v2202
  %3290 = vmatpush1.msra.mxu0 %v2201
  %3291 = vmatprep.subr.mxu0 %v2190
  %3292 = vmatpush1.msra.mxu0 %v2189
  %3293 = vmatprep.subr.mxu0 %v2178
  %3294 = vmatpush1.msra.mxu0 %v2177
  %3295 = vmatprep.subr.mxu0 %v2166
  %3296 = vmatpush1.msra.mxu0 %v2165
  %3297 = vmatprep.subr.mxu0 %v2154
  %3298 = vmatpush1.msra.mxu0 %v2153
  %3299 = vmatprep.subr.mxu0 %v819
  %3300 = vmatpush1.msra.mxu0 %v818
  %3301 = vmatprep.subr.mxu0 %v807
  %3302 = vmatpush1.msra.mxu0 %v806
  %3303 = vmatprep.subr.mxu0 %v795
  %3304 = vmatpush1.msra.mxu0 %v794
  %3305 = vmatprep.subr.mxu0 %v783
  %3306 = vmatpush1.msra.mxu0 %v782
  %3307 = vmatprep.subr.mxu0 %v771
  %3308 = vmatpush1.msra.mxu0 %v770
  %3309 = vmatprep.subr.mxu0 %v759
  %3310 = vmatpush1.msra.mxu0 %v758
  %3311 = vmatprep.subr.mxu0 %v747
  %3312 = vmatpush1.msra.mxu0 %v746
  %3313 = vmatprep.subr.mxu0 %v735
  %3314 = vmatpush1.msra.mxu0 %v734
  %3315 = vmatprep.subr.mxu0 0.0
  %3316 = vmatpush2.msra.mxu0 0.0
  %3317 = vmatprep.subr.mxu0 0.0
  %3318 = vmatpush2.msra.mxu0 0.0
  %3319 = vmatprep.subr.mxu0 0.0
  %3320 = vmatpush2.msra.mxu0 0.0
  %3321 = vmatprep.subr.mxu0 0.0
  %3322 = vmatpush2.msra.mxu0 0.0
  %3323 = vmatprep.subr.mxu0 0.0
  %3324 = vmatpush2.msra.mxu0 0.0
  %3325 = vmatprep.subr.mxu0 0.0
  %3326 = vmatpush2.msra.mxu0 0.0
  %3327 = vmatprep.subr.mxu0 0.0
  %3328 = vmatpush2.msra.mxu0 0.0
  %3329 = vmatprep.subr.mxu0 0.0
  %3330 = vmatpush2.msra.mxu0 0.0
  %3331 = vmatprep.subr.mxu0 0.0
  %3332 = vmatpush2.msra.mxu0 0.0
  %3333 = vmatprep.subr.mxu0 %v2776
  %3334 = vmatpush2.msra.mxu0 %v2774
  %3335 = vmatprep.subr.mxu0 %v2645
  %3336 = vmatpush2.msra.mxu0 %v2644
  %3337 = vmatprep.subr.mxu0 %v2641
  %3338 = vmatpush2.msra.mxu0 %v2640
  %3339 = vmatprep.subr.mxu0 %v2629
  %3340 = vmatpush2.msra.mxu0 %v2628
  %3341 = vmatprep.subr.mxu0 %v2617
  %3342 = vmatpush2.msra.mxu0 %v2616
  %3343 = vmatprep.subr.mxu0 %v2605
  %3344 = vmatpush2.msra.mxu0 %v2604
  %3345 = vmatprep.subr.mxu0 %v2593
  %3346 = vmatpush2.msra.mxu0 %v2592
  %3347 = vmatprep.mubr.f32.mxu0 %v2736
  %3348 = vmatmul.mubr.f32.gmra.mxu0 %v2722
  %v3349 = vpop.f32.mrf.mxu0
  %v3350 = vadd.f32 0.0, %v3349
  %v3351 = vpop.f32.mrf.mxu0
  %v3352 = vadd.f32 0.0, %v3351
  %3353 = vmatprep.mubr.f32.mxu0 %v2739
  %3354 = vmatmul.mubr.f32.gmra.mxu0 %v2724
  %v3355 = vpop.f32.mrf.mxu0
  %v3356 = vadd.f32 0.0, %v3355
  %v3357 = vpop.f32.mrf.mxu0
  %v3358 = vadd.f32 0.0, %v3357
  %3359 = vmatprep.mubr.f32.mxu0 %v2742
  %3360 = vmatmul.mubr.f32.gmra.mxu0 %v2726
  %v3361 = vpop.f32.mrf.mxu0
  %v3362 = vadd.f32 0.0, %v3361
  %v3363 = vpop.f32.mrf.mxu0
  %v3364 = vadd.f32 0.0, %v3363
  %3365 = vmatprep.mubr.f32.mxu0 %v2745
  %3366 = vmatmul.mubr.f32.gmra.mxu0 %v2728
  %v3367 = vpop.f32.mrf.mxu0
  %v3368 = vadd.f32 0.0, %v3367
  %v3369 = vpop.f32.mrf.mxu0
  %v3370 = vadd.f32 0.0, %v3369
  %3371 = vmatprep.mubr.f32.mxu0 %v2748
  %3372 = vmatmul.mubr.f32.gmra.mxu0 %v2730
  %v3373 = vpop.f32.mrf.mxu0
  %v3374 = vadd.f32 0.0, %v3373
  %v3375 = vpop.f32.mrf.mxu0
  %v3376 = vadd.f32 0.0, %v3375
  %3377 = vmatprep.mubr.f32.mxu0 %v2751
  %3378 = vmatmul.mubr.f32.gmra.mxu0 %v2732
  %v3379 = vpop.f32.mrf.mxu0
  %v3380 = vadd.f32 0.0, %v3379
  %v3381 = vpop.f32.mrf.mxu0
  %v3382 = vadd.f32 0.0, %v3381
  %3383 = vdwg.mxu0
  %v3384 = vmax.f32 %v2845, 0.0
  %v3385 = vmax.f32 %v2847, 0.0
  %v3386 = vmax.f32 %v2946, 0.0
  %v3387 = vmax.f32 %v2948, 0.0
  %v3388 = vmax.f32 %v3047, 0.0
  %v3389 = vmax.f32 %v3049, 0.0
  %v3390 = vmax.f32 %v3148, 0.0
  %v3391 = vmax.f32 %v3150, 0.0
  %v3392 = vmax.f32 %v3249, 0.0
  %v3393 = vmax.f32 %v3251, 0.0
  %v3394 = vmax.f32 %v3350, 0.0
  %v3395 = vmax.f32 %v3352, 0.0
  %v3396 = vmax.f32 %v2851, 0.0
  %v3397 = vmax.f32 %v2853, 0.0
  %v3398 = vmax.f32 %v2952, 0.0
  %v3399 = vmax.f32 %v2954, 0.0
  %v3400 = vmax.f32 %v3053, 0.0
  %v3401 = vmax.f32 %v3055, 0.0
  %v3402 = vmax.f32 %v3154, 0.0
  %v3403 = vmax.f32 %v3156, 0.0
  %v3404 = vmax.f32 %v3255, 0.0
  %v3405 = vmax.f32 %v3257, 0.0
  %v3406 = vmax.f32 %v3356, 0.0
  %v3407 = vmax.f32 %v3358, 0.0
  %v3408 = vmax.f32 %v2857, 0.0
  %v3409 = vmax.f32 %v2859, 0.0
  %v3410 = vmax.f32 %v2958, 0.0
  %v3411 = vmax.f32 %v2960, 0.0
  %v3412 = vmax.f32 %v3059, 0.0
  %v3413 = vmax.f32 %v3061, 0.0
  %v3414 = vmax.f32 %v3160, 0.0
  %v3415 = vmax.f32 %v3162, 0.0
  %v3416 = vmax.f32 %v3261, 0.0
  %v3417 = vmax.f32 %v3263, 0.0
  %v3418 = vmax.f32 %v3362, 0.0
  %v3419 = vmax.f32 %v3364, 0.0
  %v3420 = vmax.f32 %v2863, 0.0
  %v3421 = vmax.f32 %v2865, 0.0
  %v3422 = vmax.f32 %v2964, 0.0
  %v3423 = vmax.f32 %v2966, 0.0
  %v3424 = vmax.f32 %v3065, 0.0
  %v3425 = vmax.f32 %v3067, 0.0
  %v3426 = vmax.f32 %v3166, 0.0
  %v3427 = vmax.f32 %v3168, 0.0
  %v3428 = vmax.f32 %v3267, 0.0
  %v3429 = vmax.f32 %v3269, 0.0
  %v3430 = vmax.f32 %v3368, 0.0
  %v3431 = vmax.f32 %v3370, 0.0
  %v3432 = vmax.f32 %v2869, 0.0
  %v3433 = vmax.f32 %v2871, 0.0
  %v3434 = vmax.f32 %v2970, 0.0
  %v3435 = vmax.f32 %v2972, 0.0
  %v3436 = vmax.f32 %v3071, 0.0
  %v3437 = vmax.f32 %v3073, 0.0
  %v3438 = vmax.f32 %v3172, 0.0
  %v3439 = vmax.f32 %v3174, 0.0
  %v3440 = vmax.f32 %v3273, 0.0
  %v3441 = vmax.f32 %v3275, 0.0
  %v3442 = vmax.f32 %v3374, 0.0
  %v3443 = vmax.f32 %v3376, 0.0
  %v3444 = vmax.f32 %v2875, 0.0
  %v3445 = vmax.f32 %v2877, 0.0
  %v3446 = vmax.f32 %v2976, 0.0
  %v3447 = vmax.f32 %v2978, 0.0
  %v3448 = vmax.f32 %v3077, 0.0
  %v3449 = vmax.f32 %v3079, 0.0
  %v3450 = vmax.f32 %v3178, 0.0
  %v3451 = vmax.f32 %v3180, 0.0
  %v3452 = vmax.f32 %v3279, 0.0
  %v3453 = vmax.f32 %v3281, 0.0
  %v3454 = vmax.f32 %v3380, 0.0
  %v3455 = vmax.f32 %v3382, 0.0
  %v3456 = vld [vmem:[%s2] sm:$0xf]
  %vm3457 = vcmask 334848
  %v3459 = vsel %vm3457, %v3456, 0
  %vm3461 = vcmask 1040384
  %v3463 = vsel %vm3461, %v3444, 0
  %v3466 = vsel %vm3461, %v3445, 0
  %v3469 = vsel %vm3461, %v3446, 0
  %v3472 = vsel %vm3461, %v3447, 0
  %v3475 = vsel %vm3461, %v3448, 0
  %v3478 = vsel %vm3461, %v3449, 0
  %v3481 = vsel %vm3461, %v3450, 0
  %v3484 = vsel %vm3461, %v3451, 0
  %v3487 = vsel %vm3461, %v3452, 0
  %v3490 = vsel %vm3461, %v3453, 0
  %v3493 = vsel %vm3461, %v3454, 0
  %v3496 = vsel %vm3461, %v3455, 0
  %3498 = vmatprep.subr.mxu0 0.0
  %3499 = vmatpush1.msra.mxu0 0.0
  %3500 = vmatprep.subr.mxu0 0.0
  %3501 = vmatpush1.msra.mxu0 0.0
  %3502 = vmatprep.subr.mxu0 0.0
  %3503 = vmatpush1.msra.mxu0 0.0
  %3504 = vmatprep.subr.mxu0 0.0
  %3505 = vmatpush1.msra.mxu0 0.0
  %3506 = vmatprep.subr.mxu0 0.0
  %3507 = vmatpush1.msra.mxu0 0.0
  %3508 = vmatprep.subr.mxu0 0.0
  %3509 = vmatpush1.msra.mxu0 0.0
  %3510 = vmatprep.subr.mxu0 0.0
  %3511 = vmatpush1.msra.mxu0 0.0
  %3512 = vmatprep.subr.mxu0 0.0
  %3513 = vmatpush1.msra.mxu0 0.0
  %3514 = vmatprep.subr.mxu0 0.0
  %3515 = vmatpush1.msra.mxu0 0.0
  %3516 = vmatprep.subr.mxu0 0.0
  %3517 = vmatpush1.msra.mxu0 0.0
  %3518 = vmatprep.subr.mxu0 %v3466
  %3519 = vmatpush1.msra.mxu0 %v3463
  %3520 = vmatprep.subr.mxu0 %v3433
  %3521 = vmatpush1.msra.mxu0 %v3432
  %3522 = vmatprep.subr.mxu0 %v3421
  %3523 = vmatpush1.msra.mxu0 %v3420
  %3524 = vmatprep.subr.mxu0 %v3409
  %3525 = vmatpush1.msra.mxu0 %v3408
  %3526 = vmatprep.subr.mxu0 %v3397
  %3527 = vmatpush1.msra.mxu0 %v3396
  %3528 = vmatprep.subr.mxu0 %v3385
  %3529 = vmatpush1.msra.mxu0 %v3384
  %3530 = vmatprep.subr.mxu0 0.0
  %3531 = vmatpush2.msra.mxu0 0.0
  %3532 = vmatprep.subr.mxu0 0.0
  %3533 = vmatpush2.msra.mxu0 0.0
  %3534 = vmatprep.subr.mxu0 0.0
  %3535 = vmatpush2.msra.mxu0 0.0
  %3536 = vmatprep.subr.mxu0 0.0
  %3537 = vmatpush2.msra.mxu0 0.0
  %3538 = vmatprep.subr.mxu0 0.0
  %3539 = vmatpush2.msra.mxu0 0.0
  %3540 = vmatprep.subr.mxu0 0.0
  %3541 = vmatpush2.msra.mxu0 0.0
  %3542 = vmatprep.subr.mxu0 0.0
  %3543 = vmatpush2.msra.mxu0 0.0
  %3544 = vmatprep.subr.mxu0 0.0
  %3545 = vmatpush2.msra.mxu0 0.0
  %3546 = vmatprep.subr.mxu0 0.0
  %3547 = vmatpush2.msra.mxu0 0.0
  %3548 = vmatprep.subr.mxu0 0.0
  %3549 = vmatpush2.msra.mxu0 0.0
  %3550 = vmatprep.subr.mxu0 0.0
  %3551 = vmatpush2.msra.mxu0 0.0
  %3552 = vmatprep.subr.mxu0 0.0
  %3553 = vmatpush2.msra.mxu0 0.0
  %3554 = vmatprep.subr.mxu0 0.0
  %3555 = vmatpush2.msra.mxu0 0.0
  %3556 = vmatprep.subr.mxu0 0.0
  %3557 = vmatpush2.msra.mxu0 0.0
  %3558 = vmatprep.subr.mxu0 0.0
  %3559 = vmatpush2.msra.mxu0 0.0
  %3560 = vmatprep.subr.mxu0 0.0
  %3561 = vmatpush2.msra.mxu0 0.0
  %3562 = vmatprep.mubr.f32.mxu0 0.0
  %3563 = vmatmul.mubr.f32.gmra.mxu0 %v3459
  %v3564 = vpop.f32.mrf.mxu0
  %v3565 = vadd.f32 0.0, %v3564
  %v3566 = vpop.f32.mrf.mxu0
  %v3567 = vadd.f32 0.0, %v3566
  %3568 = vdwg.mxu0
  %3569 = vmatprep.subr.mxu0 0.0
  %3570 = vmatpush1.msra.mxu0 0.0
  %3571 = vmatprep.subr.mxu0 0.0
  %3572 = vmatpush1.msra.mxu0 0.0
  %3573 = vmatprep.subr.mxu0 0.0
  %3574 = vmatpush1.msra.mxu0 0.0
  %3575 = vmatprep.subr.mxu0 0.0
  %3576 = vmatpush1.msra.mxu0 0.0
  %3577 = vmatprep.subr.mxu0 0.0
  %3578 = vmatpush1.msra.mxu0 0.0
  %3579 = vmatprep.subr.mxu0 0.0
  %3580 = vmatpush1.msra.mxu0 0.0
  %3581 = vmatprep.subr.mxu0 0.0
  %3582 = vmatpush1.msra.mxu0 0.0
  %3583 = vmatprep.subr.mxu0 0.0
  %3584 = vmatpush1.msra.mxu0 0.0
  %3585 = vmatprep.subr.mxu0 0.0
  %3586 = vmatpush1.msra.mxu0 0.0
  %3587 = vmatprep.subr.mxu0 0.0
  %3588 = vmatpush1.msra.mxu0 0.0
  %3589 = vmatprep.subr.mxu0 %v3472
  %3590 = vmatpush1.msra.mxu0 %v3469
  %3591 = vmatprep.subr.mxu0 %v3435
  %3592 = vmatpush1.msra.mxu0 %v3434
  %3593 = vmatprep.subr.mxu0 %v3423
  %3594 = vmatpush1.msra.mxu0 %v3422
  %3595 = vmatprep.subr.mxu0 %v3411
  %3596 = vmatpush1.msra.mxu0 %v3410
  %3597 = vmatprep.subr.mxu0 %v3399
  %3598 = vmatpush1.msra.mxu0 %v3398
  %3599 = vmatprep.subr.mxu0 %v3387
  %3600 = vmatpush1.msra.mxu0 %v3386
  %3601 = vmatprep.subr.mxu0 0.0
  %3602 = vmatpush2.msra.mxu0 0.0
  %3603 = vmatprep.subr.mxu0 0.0
  %3604 = vmatpush2.msra.mxu0 0.0
  %3605 = vmatprep.subr.mxu0 0.0
  %3606 = vmatpush2.msra.mxu0 0.0
  %3607 = vmatprep.subr.mxu0 0.0
  %3608 = vmatpush2.msra.mxu0 0.0
  %3609 = vmatprep.subr.mxu0 0.0
  %3610 = vmatpush2.msra.mxu0 0.0
  %3611 = vmatprep.subr.mxu0 0.0
  %3612 = vmatpush2.msra.mxu0 0.0
  %3613 = vmatprep.subr.mxu0 0.0
  %3614 = vmatpush2.msra.mxu0 0.0
  %3615 = vmatprep.subr.mxu0 0.0
  %3616 = vmatpush2.msra.mxu0 0.0
  %3617 = vmatprep.subr.mxu0 0.0
  %3618 = vmatpush2.msra.mxu0 0.0
  %3619 = vmatprep.subr.mxu0 0.0
  %3620 = vmatpush2.msra.mxu0 0.0
  %3621 = vmatprep.subr.mxu0 0.0
  %3622 = vmatpush2.msra.mxu0 0.0
  %3623 = vmatprep.subr.mxu0 0.0
  %3624 = vmatpush2.msra.mxu0 0.0
  %3625 = vmatprep.subr.mxu0 0.0
  %3626 = vmatpush2.msra.mxu0 0.0
  %3627 = vmatprep.subr.mxu0 0.0
  %3628 = vmatpush2.msra.mxu0 0.0
  %3629 = vmatprep.subr.mxu0 0.0
  %3630 = vmatpush2.msra.mxu0 0.0
  %3631 = vmatprep.subr.mxu0 0.0
  %3632 = vmatpush2.msra.mxu0 0.0
  %3633 = vmatprep.mubr.f32.mxu0 0.0
  %3634 = vmatmul.mubr.f32.gmra.mxu0 %v3459
  %v3635 = vpop.f32.mrf.mxu0
  %v3636 = vadd.f32 0.0, %v3635
  %v3637 = vpop.f32.mrf.mxu0
  %v3638 = vadd.f32 0.0, %v3637
  %3639 = vdwg.mxu0
  %3640 = vmatprep.subr.mxu0 0.0
  %3641 = vmatpush1.msra.mxu0 0.0
  %3642 = vmatprep.subr.mxu0 0.0
  %3643 = vmatpush1.msra.mxu0 0.0
  %3644 = vmatprep.subr.mxu0 0.0
  %3645 = vmatpush1.msra.mxu0 0.0
  %3646 = vmatprep.subr.mxu0 0.0
  %3647 = vmatpush1.msra.mxu0 0.0
  %3648 = vmatprep.subr.mxu0 0.0
  %3649 = vmatpush1.msra.mxu0 0.0
  %3650 = vmatprep.subr.mxu0 0.0
  %3651 = vmatpush1.msra.mxu0 0.0
  %3652 = vmatprep.subr.mxu0 0.0
  %3653 = vmatpush1.msra.mxu0 0.0
  %3654 = vmatprep.subr.mxu0 0.0
  %3655 = vmatpush1.msra.mxu0 0.0
  %3656 = vmatprep.subr.mxu0 0.0
  %3657 = vmatpush1.msra.mxu0 0.0
  %3658 = vmatprep.subr.mxu0 0.0
  %3659 = vmatpush1.msra.mxu0 0.0
  %3660 = vmatprep.subr.mxu0 %v3478
  %3661 = vmatpush1.msra.mxu0 %v3475
  %3662 = vmatprep.subr.mxu0 %v3437
  %3663 = vmatpush1.msra.mxu0 %v3436
  %3664 = vmatprep.subr.mxu0 %v3425
  %3665 = vmatpush1.msra.mxu0 %v3424
  %3666 = vmatprep.subr.mxu0 %v3413
  %3667 = vmatpush1.msra.mxu0 %v3412
  %3668 = vmatprep.subr.mxu0 %v3401
  %3669 = vmatpush1.msra.mxu0 %v3400
  %3670 = vmatprep.subr.mxu0 %v3389
  %3671 = vmatpush1.msra.mxu0 %v3388
  %3672 = vmatprep.subr.mxu0 0.0
  %3673 = vmatpush2.msra.mxu0 0.0
  %3674 = vmatprep.subr.mxu0 0.0
  %3675 = vmatpush2.msra.mxu0 0.0
  %3676 = vmatprep.subr.mxu0 0.0
  %3677 = vmatpush2.msra.mxu0 0.0
  %3678 = vmatprep.subr.mxu0 0.0
  %3679 = vmatpush2.msra.mxu0 0.0
  %3680 = vmatprep.subr.mxu0 0.0
  %3681 = vmatpush2.msra.mxu0 0.0
  %3682 = vmatprep.subr.mxu0 0.0
  %3683 = vmatpush2.msra.mxu0 0.0
  %3684 = vmatprep.subr.mxu0 0.0
  %3685 = vmatpush2.msra.mxu0 0.0
  %3686 = vmatprep.subr.mxu0 0.0
  %3687 = vmatpush2.msra.mxu0 0.0
  %3688 = vmatprep.subr.mxu0 0.0
  %3689 = vmatpush2.msra.mxu0 0.0
  %3690 = vmatprep.subr.mxu0 0.0
  %3691 = vmatpush2.msra.mxu0 0.0
  %3692 = vmatprep.subr.mxu0 0.0
  %3693 = vmatpush2.msra.mxu0 0.0
  %3694 = vmatprep.subr.mxu0 0.0
  %3695 = vmatpush2.msra.mxu0 0.0
  %3696 = vmatprep.subr.mxu0 0.0
  %3697 = vmatpush2.msra.mxu0 0.0
  %3698 = vmatprep.subr.mxu0 0.0
  %3699 = vmatpush2.msra.mxu0 0.0
  %3700 = vmatprep.subr.mxu0 0.0
  %3701 = vmatpush2.msra.mxu0 0.0
  %3702 = vmatprep.subr.mxu0 0.0
  %3703 = vmatpush2.msra.mxu0 0.0
  %3704 = vmatprep.mubr.f32.mxu0 0.0
  %3705 = vmatmul.mubr.f32.gmra.mxu0 %v3459
  %v3706 = vpop.f32.mrf.mxu0
  %v3707 = vadd.f32 0.0, %v3706
  %v3708 = vpop.f32.mrf.mxu0
  %v3709 = vadd.f32 0.0, %v3708
  %3710 = vdwg.mxu0
  %3711 = vmatprep.subr.mxu0 0.0
  %3712 = vmatpush1.msra.mxu0 0.0
  %3713 = vmatprep.subr.mxu0 0.0
  %3714 = vmatpush1.msra.mxu0 0.0
  %3715 = vmatprep.subr.mxu0 0.0
  %3716 = vmatpush1.msra.mxu0 0.0
  %3717 = vmatprep.subr.mxu0 0.0
  %3718 = vmatpush1.msra.mxu0 0.0
  %3719 = vmatprep.subr.mxu0 0.0
  %3720 = vmatpush1.msra.mxu0 0.0
  %3721 = vmatprep.subr.mxu0 0.0
  %3722 = vmatpush1.msra.mxu0 0.0
  %3723 = vmatprep.subr.mxu0 0.0
  %3724 = vmatpush1.msra.mxu0 0.0
  %3725 = vmatprep.subr.mxu0 0.0
  %3726 = vmatpush1.msra.mxu0 0.0
  %3727 = vmatprep.subr.mxu0 0.0
  %3728 = vmatpush1.msra.mxu0 0.0
  %3729 = vmatprep.subr.mxu0 0.0
  %3730 = vmatpush1.msra.mxu0 0.0
  %3731 = vmatprep.subr.mxu0 %v3484
  %3732 = vmatpush1.msra.mxu0 %v3481
  %3733 = vmatprep.subr.mxu0 %v3439
  %3734 = vmatpush1.msra.mxu0 %v3438
  %3735 = vmatprep.subr.mxu0 %v3427
  %3736 = vmatpush1.msra.mxu0 %v3426
  %3737 = vmatprep.subr.mxu0 %v3415
  %3738 = vmatpush1.msra.mxu0 %v3414
  %3739 = vmatprep.subr.mxu0 %v3403
  %3740 = vmatpush1.msra.mxu0 %v3402
  %3741 = vmatprep.subr.mxu0 %v3391
  %3742 = vmatpush1.msra.mxu0 %v3390
  %3743 = vmatprep.subr.mxu0 0.0
  %3744 = vmatpush2.msra.mxu0 0.0
  %3745 = vmatprep.subr.mxu0 0.0
  %3746 = vmatpush2.msra.mxu0 0.0
  %3747 = vmatprep.subr.mxu0 0.0
  %3748 = vmatpush2.msra.mxu0 0.0
  %3749 = vmatprep.subr.mxu0 0.0
  %3750 = vmatpush2.msra.mxu0 0.0
  %3751 = vmatprep.subr.mxu0 0.0
  %3752 = vmatpush2.msra.mxu0 0.0
  %3753 = vmatprep.subr.mxu0 0.0
  %3754 = vmatpush2.msra.mxu0 0.0
  %3755 = vmatprep.subr.mxu0 0.0
  %3756 = vmatpush2.msra.mxu0 0.0
  %3757 = vmatprep.subr.mxu0 0.0
  %3758 = vmatpush2.msra.mxu0 0.0
  %3759 = vmatprep.subr.mxu0 0.0
  %3760 = vmatpush2.msra.mxu0 0.0
  %3761 = vmatprep.subr.mxu0 0.0
  %3762 = vmatpush2.msra.mxu0 0.0
  %3763 = vmatprep.subr.mxu0 0.0
  %3764 = vmatpush2.msra.mxu0 0.0
  %3765 = vmatprep.subr.mxu0 0.0
  %3766 = vmatpush2.msra.mxu0 0.0
  %3767 = vmatprep.subr.mxu0 0.0
  %3768 = vmatpush2.msra.mxu0 0.0
  %3769 = vmatprep.subr.mxu0 0.0
  %3770 = vmatpush2.msra.mxu0 0.0
  %3771 = vmatprep.subr.mxu0 0.0
  %3772 = vmatpush2.msra.mxu0 0.0
  %3773 = vmatprep.subr.mxu0 0.0
  %3774 = vmatpush2.msra.mxu0 0.0
  %3775 = vmatprep.mubr.f32.mxu0 0.0
  %3776 = vmatmul.mubr.f32.gmra.mxu0 %v3459
  %v3777 = vpop.f32.mrf.mxu0
  %v3778 = vadd.f32 0.0, %v3777
  %v3779 = vpop.f32.mrf.mxu0
  %v3780 = vadd.f32 0.0, %v3779
  %3781 = vdwg.mxu0
  %3782 = vmatprep.subr.mxu0 0.0
  %3783 = vmatpush1.msra.mxu0 0.0
  %3784 = vmatprep.subr.mxu0 0.0
  %3785 = vmatpush1.msra.mxu0 0.0
  %3786 = vmatprep.subr.mxu0 0.0
  %3787 = vmatpush1.msra.mxu0 0.0
  %3788 = vmatprep.subr.mxu0 0.0
  %3789 = vmatpush1.msra.mxu0 0.0
  %3790 = vmatprep.subr.mxu0 0.0
  %3791 = vmatpush1.msra.mxu0 0.0
  %3792 = vmatprep.subr.mxu0 0.0
  %3793 = vmatpush1.msra.mxu0 0.0
  %3794 = vmatprep.subr.mxu0 0.0
  %3795 = vmatpush1.msra.mxu0 0.0
  %3796 = vmatprep.subr.mxu0 0.0
  %3797 = vmatpush1.msra.mxu0 0.0
  %3798 = vmatprep.subr.mxu0 0.0
  %3799 = vmatpush1.msra.mxu0 0.0
  %3800 = vmatprep.subr.mxu0 0.0
  %3801 = vmatpush1.msra.mxu0 0.0
  %3802 = vmatprep.subr.mxu0 %v3490
  %3803 = vmatpush1.msra.mxu0 %v3487
  %3804 = vmatprep.subr.mxu0 %v3441
  %3805 = vmatpush1.msra.mxu0 %v3440
  %3806 = vmatprep.subr.mxu0 %v3429
  %3807 = vmatpush1.msra.mxu0 %v3428
  %3808 = vmatprep.subr.mxu0 %v3417
  %3809 = vmatpush1.msra.mxu0 %v3416
  %3810 = vmatprep.subr.mxu0 %v3405
  %3811 = vmatpush1.msra.mxu0 %v3404
  %3812 = vmatprep.subr.mxu0 %v3393
  %3813 = vmatpush1.msra.mxu0 %v3392
  %3814 = vmatprep.subr.mxu0 0.0
  %3815 = vmatpush2.msra.mxu0 0.0
  %3816 = vmatprep.subr.mxu0 0.0
  %3817 = vmatpush2.msra.mxu0 0.0
  %3818 = vmatprep.subr.mxu0 0.0
  %3819 = vmatpush2.msra.mxu0 0.0
  %3820 = vmatprep.subr.mxu0 0.0
  %3821 = vmatpush2.msra.mxu0 0.0
  %3822 = vmatprep.subr.mxu0 0.0
  %3823 = vmatpush2.msra.mxu0 0.0
  %3824 = vmatprep.subr.mxu0 0.0
  %3825 = vmatpush2.msra.mxu0 0.0
  %3826 = vmatprep.subr.mxu0 0.0
  %3827 = vmatpush2.msra.mxu0 0.0
  %3828 = vmatprep.subr.mxu0 0.0
  %3829 = vmatpush2.msra.mxu0 0.0
  %3830 = vmatprep.subr.mxu0 0.0
  %3831 = vmatpush2.msra.mxu0 0.0
  %3832 = vmatprep.subr.mxu0 0.0
  %3833 = vmatpush2.msra.mxu0 0.0
  %3834 = vmatprep.subr.mxu0 0.0
  %3835 = vmatpush2.msra.mxu0 0.0
  %3836 = vmatprep.subr.mxu0 0.0
  %3837 = vmatpush2.msra.mxu0 0.0
  %3838 = vmatprep.subr.mxu0 0.0
  %3839 = vmatpush2.msra.mxu0 0.0
  %3840 = vmatprep.subr.mxu0 0.0
  %3841 = vmatpush2.msra.mxu0 0.0
  %3842 = vmatprep.subr.mxu0 0.0
  %3843 = vmatpush2.msra.mxu0 0.0
  %3844 = vmatprep.subr.mxu0 0.0
  %3845 = vmatpush2.msra.mxu0 0.0
  %3846 = vmatprep.mubr.f32.mxu0 0.0
  %3847 = vmatmul.mubr.f32.gmra.mxu0 %v3459
  %v3848 = vpop.f32.mrf.mxu0
  %v3849 = vadd.f32 0.0, %v3848
  %v3850 = vpop.f32.mrf.mxu0
  %v3851 = vadd.f32 0.0, %v3850
  %3852 = vdwg.mxu0
  %3853 = vmatprep.subr.mxu0 0.0
  %3854 = vmatpush1.msra.mxu0 0.0
  %3855 = vmatprep.subr.mxu0 0.0
  %3856 = vmatpush1.msra.mxu0 0.0
  %3857 = vmatprep.subr.mxu0 0.0
  %3858 = vmatpush1.msra.mxu0 0.0
  %3859 = vmatprep.subr.mxu0 0.0
  %3860 = vmatpush1.msra.mxu0 0.0
  %3861 = vmatprep.subr.mxu0 0.0
  %3862 = vmatpush1.msra.mxu0 0.0
  %3863 = vmatprep.subr.mxu0 0.0
  %3864 = vmatpush1.msra.mxu0 0.0
  %3865 = vmatprep.subr.mxu0 0.0
  %3866 = vmatpush1.msra.mxu0 0.0
  %3867 = vmatprep.subr.mxu0 0.0
  %3868 = vmatpush1.msra.mxu0 0.0
  %3869 = vmatprep.subr.mxu0 0.0
  %3870 = vmatpush1.msra.mxu0 0.0
  %3871 = vmatprep.subr.mxu0 0.0
  %3872 = vmatpush1.msra.mxu0 0.0
  %3873 = vmatprep.subr.mxu0 %v3496
  %3874 = vmatpush1.msra.mxu0 %v3493
  %3875 = vmatprep.subr.mxu0 %v3443
  %3876 = vmatpush1.msra.mxu0 %v3442
  %3877 = vmatprep.subr.mxu0 %v3431
  %3878 = vmatpush1.msra.mxu0 %v3430
  %3879 = vmatprep.subr.mxu0 %v3419
  %3880 = vmatpush1.msra.mxu0 %v3418
  %3881 = vmatprep.subr.mxu0 %v3407
  %3882 = vmatpush1.msra.mxu0 %v3406
  %3883 = vmatprep.subr.mxu0 %v3395
  %3884 = vmatpush1.msra.mxu0 %v3394
  %3885 = vmatprep.subr.mxu0 0.0
  %3886 = vmatpush2.msra.mxu0 0.0
  %3887 = vmatprep.subr.mxu0 0.0
  %3888 = vmatpush2.msra.mxu0 0.0
  %3889 = vmatprep.subr.mxu0 0.0
  %3890 = vmatpush2.msra.mxu0 0.0
  %3891 = vmatprep.subr.mxu0 0.0
  %3892 = vmatpush2.msra.mxu0 0.0
  %3893 = vmatprep.subr.mxu0 0.0
  %3894 = vmatpush2.msra.mxu0 0.0
  %3895 = vmatprep.subr.mxu0 0.0
  %3896 = vmatpush2.msra.mxu0 0.0
  %3897 = vmatprep.subr.mxu0 0.0
  %3898 = vmatpush2.msra.mxu0 0.0
  %3899 = vmatprep.subr.mxu0 0.0
  %3900 = vmatpush2.msra.mxu0 0.0
  %3901 = vmatprep.subr.mxu0 0.0
  %3902 = vmatpush2.msra.mxu0 0.0
  %3903 = vmatprep.subr.mxu0 0.0
  %3904 = vmatpush2.msra.mxu0 0.0
  %3905 = vmatprep.subr.mxu0 0.0
  %3906 = vmatpush2.msra.mxu0 0.0
  %3907 = vmatprep.subr.mxu0 0.0
  %3908 = vmatpush2.msra.mxu0 0.0
  %3909 = vmatprep.subr.mxu0 0.0
  %3910 = vmatpush2.msra.mxu0 0.0
  %3911 = vmatprep.subr.mxu0 0.0
  %3912 = vmatpush2.msra.mxu0 0.0
  %3913 = vmatprep.subr.mxu0 0.0
  %3914 = vmatpush2.msra.mxu0 0.0
  %3915 = vmatprep.subr.mxu0 0.0
  %3916 = vmatpush2.msra.mxu0 0.0
  %3917 = vmatprep.mubr.f32.mxu0 0.0
  %3918 = vmatmul.mubr.f32.gmra.mxu0 %v3459
  %v3919 = vpop.f32.mrf.mxu0
  %v3920 = vadd.f32 0.0, %v3919
  %v3921 = vpop.f32.mrf.mxu0
  %v3922 = vadd.f32 0.0, %v3921
  %3923 = vdwg.mxu0
  %v3924 = vmax.f32 %v3565, 0.0
  %v3925 = vmax.f32 %v3567, 0.0
  %v3926 = vmax.f32 %v3636, 0.0
  %v3927 = vmax.f32 %v3638, 0.0
  %v3928 = vmax.f32 %v3707, 0.0
  %v3929 = vmax.f32 %v3709, 0.0
  %v3930 = vmax.f32 %v3778, 0.0
  %v3931 = vmax.f32 %v3780, 0.0
  %v3932 = vmax.f32 %v3849, 0.0
  %v3933 = vmax.f32 %v3851, 0.0
  %v3934 = vmax.f32 %v3920, 0.0
  %v3935 = vmax.f32 %v3922, 0.0
  %v3948 = vcombine.low %v3924, %v3925
  %v3949 = vcombine.low %v3926, %v3927
  %v3950 = vcombine.low %v3928, %v3929
  %v3951 = vcombine.low %v3930, %v3931
  %v3952 = vcombine.low %v3932, %v3933
  %v3953 = vcombine.low %v3934, %v3935
  %3960 = vst [vmem:[%s3] sm:$0xff] %v3948
  %3961 = vst [vmem:[%s3 + $0x8] sm:$0xff] %v3949
  %3962 = vst [vmem:[%s3 + $0x10] sm:$0xff] %v3950
  %3963 = vst [vmem:[%s3 + $0x18] sm:$0xff] %v3951
  %3964 = vst [vmem:[%s3 + $0x20] sm:$0xff] %v3952
  %3965 = vst [vmem:[%s3 + $0x28] sm:$0xff] %v3953
  // Predicated region
  $region14: #{aspp_pallas.1} parent=0 // pred_check
    _
  $region15: #{aspp_pallas.1} parent=0 // pred_check_branch
    %3967 = sbr.rel (0) target = $region17
  $region16: #{aspp_pallas.1} parent=0 // pred_region
    _
  $region17: #{aspp_pallas.1} parent=0 // pred_fallthru
    _
  // Predicated region
  $region18: #{aspp_pallas.1} parent=0 // pred_check
    _
  $region19: #{aspp_pallas.1} parent=0 // pred_check_branch
    %3969 = sbr.rel (0) target = $region21
  $region20: #{aspp_pallas.1} parent=0 // pred_region
    _
  $region21: #{aspp_pallas.1} parent=0 // pred_fallthru
    _

</llo_original>
